<compile_context>
chip_gen: v5e
topology: v5e:2x2
jax: 0.10.0
libtpu: 0.0.40
codegen_flags: <defaults>
</compile_context>

<pallas_src>
import functools

import jax
import jax.numpy as jnp
from jax import lax
from jax.experimental import pallas as pl
from jax.experimental.pallas import tpu as pltpu

# MXU operand dtype (accumulation is always f32 via preferred_element_type).
# Set to jnp.float32 for a bit-tight debug build against the f32 reference.
MXU_DTYPE = jnp.bfloat16


# ----------------------------------------------------------------------------
# small helpers / chip gating
# ----------------------------------------------------------------------------
def _round_up(n, m):
    return ((n + m - 1) // m) * m


def _device_kind():
    try:
        return (jax.devices()[0].device_kind or "").lower()
    except Exception:
        return ""


def _num_tensorcores():
    # v7x has 2 TensorCores per chip; v5e/v6e have 1.
    return 2 if "v7" in _device_kind() else 1


def _vmem_limit_bytes():
    # v7x: 64 MiB physical -> stay well under; v5e/v6e: 128 MiB physical.
    return (48 if "v7" in _device_kind() else 64) * 1024 * 1024


def _batch_chunk(b):
    """Only split the batch when there are 2 TensorCores (v7x) and each half
    still fills a full sublane set; on v5e/v6e splitting only adds serial grid
    steps and shrinks the per-step matmul M."""
    nc = _num_tensorcores()
    if nc > 1 and b % nc == 0 and (b // nc) >= 8:
        return b // nc
    return b


def _time_chunk(t, bb, hp, din, dp, budget=24 * 1024 * 1024):
    """Timesteps per grid step: as large as possible (amortizes ~0.35us/step grid
    overhead) while the chunk's VMEM scratch + double-buffered I/O blocks fit."""
    def vmem_bytes(tb):
        scratch = bb * tb * (4 * hp + hp) * 4      # xg slab + z slab (f32)
        blocks = 2 * bb * tb * (din + dp) * 4      # double-buffered x + out blocks
        return scratch + blocks

    for cand in (64, 32, 16, 8):
        if t % cand == 0 and vmem_bytes(cand) <= budget:
            return cand
    return 8 if t % 8 == 0 else t


# ----------------------------------------------------------------------------
# Fused kernel: input projection + LSTM recurrence + both output heads.
# Grid = (batch blocks [parallel], time chunks [arbitrary, sequential]).
# Gate order follows PyTorch: i, f, g, o; Hp is a multiple of 128 so every gate
# slice, the z slab and the head store are lane-aligned.
# ----------------------------------------------------------------------------
def _fused_lstm_kernel(x_ref, w_ih_ref, b_ref, w_hh_ref, w_head_ref, b_head_ref,
                       out_ref, h_scr, c_scr, xg_scr, z_scr,
                       *, hp, dp, bb, tb, din):
    # Reset carried state at the start of each batch block's time sweep.
    @pl.when(pl.program_id(1) == 0)
    def _():
        h_scr[...] = jnp.zeros_like(h_scr)
        c_scr[...] = jnp.zeros_like(c_scr)

    # ---- fused input projection: gate pre-activations for the whole chunk ----
    # One big (BB*TB, Din) @ (Din, 4Hp) matmul; rides the MXU slack of the
    # latency-bound recurrence instead of a separate kernel + HBM round trip.
    x2 = x_ref[...].reshape(bb * tb, din).astype(MXU_DTYPE)
    xg = jnp.dot(x2, w_ih_ref[...], preferred_element_type=jnp.float32)
    xg_scr[...] = (xg + b_ref[...]).reshape(bb, tb, 4 * hp)

    whh = w_hh_ref[...]          # resident bf16 weight, hoisted out of the loop
    h = h_scr[...]
    c = c_scr[...]

    # ---- serial recurrence over the chunk ----
    # Static unroll; per-step store into the VMEM z slab bounds live ranges to
    # h/c only (no hs-stack, no spills on the serial critical path).
    for t in range(tb):
        gates = xg_scr[:, t, :] + jnp.dot(
            h.astype(MXU_DTYPE), whh, preferred_element_type=jnp.float32)
        i = jax.nn.sigmoid(gates[:, 0 * hp:1 * hp])
        f = jax.nn.sigmoid(gates[:, 1 * hp:2 * hp])
        g = jnp.tanh(gates[:, 2 * hp:3 * hp])
        o = jax.nn.sigmoid(gates[:, 3 * hp:4 * hp])
        c = f * c + i * g
        h = o * jnp.tanh(c)
        z_scr[:, t, :] = h

    h_scr[...] = h
    c_scr[...] = c

    # ---- fused output heads (y | x_rec packed into one lane-dense slab) ----
    z2 = z_scr[...].reshape(bb * tb, hp).astype(MXU_DTYPE)
    heads = jnp.dot(z2, w_head_ref[...], preferred_element_type=jnp.float32)
    out_ref[...] = (heads + b_head_ref[...]).reshape(bb, tb, dp).astype(out_ref.dtype)


def _fused_lstm(x, w_ih, b, w_hh, w_head, b_head, *, hp, dp):
    B, T, Din = x.shape
    BB = _batch_chunk(B)
    TB = _time_chunk(T, BB, hp, Din, dp)

    kernel = functools.partial(_fused_lstm_kernel,
                               hp=hp, dp=dp, bb=BB, tb=TB, din=Din)
    return pl.pallas_call(
        kernel,
        out_shape=jax.ShapeDtypeStruct((B, T, dp), jnp.float32),
        grid_spec=pltpu.PrefetchScalarGridSpec(
            num_scalar_prefetch=0,
            grid=(B // BB, T // TB),
            in_specs=[
                pl.BlockSpec((BB, TB, Din), lambda bi, s: (bi, s, 0)),   # x chunk
                pl.BlockSpec((Din, 4 * hp), lambda bi, s: (0, 0)),       # W_ih (resident)
                pl.BlockSpec((1, 4 * hp), lambda bi, s: (0, 0)),         # fused bias
                pl.BlockSpec((hp, 4 * hp), lambda bi, s: (0, 0)),        # W_hh (resident)
                pl.BlockSpec((hp, dp), lambda bi, s: (0, 0)),            # [W_y | W_dec]
                pl.BlockSpec((1, dp), lambda bi, s: (0, 0)),             # [0 | b_dec]
            ],
            out_specs=pl.BlockSpec((BB, TB, dp), lambda bi, s: (bi, s, 0)),
            scratch_shapes=[
                pltpu.VMEM((BB, hp), jnp.float32),          # h carry
                pltpu.VMEM((BB, hp), jnp.float32),          # c carry
                pltpu.VMEM((BB, TB, 4 * hp), jnp.float32),  # gate pre-activations
                pltpu.VMEM((BB, TB, hp), jnp.float32),      # hidden-state slab
            ],
        ),
        compiler_params=pltpu.CompilerParams(
            # batch axis independent (shardable across v7x's 2 TCs);
            # time axis carries the recurrence -> strictly sequential.
            dimension_semantics=("parallel", "arbitrary"),
            vmem_limit_bytes=_vmem_limit_bytes(),
        ),
    )(x, w_ih, b, w_hh, w_head, b_head)


# ----------------------------------------------------------------------------
# Parameter padding: hidden size -> multiple of 128 (lane-aligned gates / z).
# Padded hidden units stay exactly 0 (zero gate columns + zero initial state),
# and padded head-weight rows multiply those zeros, so results equal the
# unpadded reference.
# ----------------------------------------------------------------------------
def _pad_gate_cols(a, h, hp):
    """Pad last dim from 4H to 4Hp, padding each of the i/f/g/o blocks with 0."""
    if hp == h:
        return a
    parts = []
    for k in range(4):
        blk = a[..., k * h:(k + 1) * h]
        pad = [(0, 0)] * (a.ndim - 1) + [(0, hp - h)]
        parts.append(jnp.pad(blk, pad))
    return jnp.concatenate(parts, axis=-1)


# ----------------------------------------------------------------------------
# Full forward: (x_rec, y) = LSTM(x, w)
# Note: params["b"] is the fused bias b_ih + b_hh (pre-summed).
# ----------------------------------------------------------------------------
def lstm_forward(x, w, params):
    B, T, Din = x.shape
    H = params["w_hh"].shape[0]
    Dout = w.shape[1]
    Hp = _round_up(H, 128)
    Dheads = Dout + Din
    Dp = _round_up(Dheads, 128)   # lane-dense packed head output width

    # Weights pre-cast to the MXU operand dtype once in the wrapper (halves
    # weight DMA bytes / VMEM residency); biases stay f32 (added post-matmul).
    w_ih_p = _pad_gate_cols(params["w_ih"], H, Hp).astype(MXU_DTYPE)        # [Din, 4Hp]
    w_hh_p = jnp.pad(_pad_gate_cols(params["w_hh"], H, Hp),
                     ((0, Hp - H), (0, 0))).astype(MXU_DTYPE)               # [Hp, 4Hp]
    b_p = _pad_gate_cols(params["b"], H, Hp).astype(jnp.float32)            # [1, 4Hp]

    # Pack both heads into one lane-padded weight / bias: columns [0:Dout] -> y,
    # [Dout:Dout+Din] -> x_rec, remaining lanes are zero padding.
    w_head = jnp.concatenate([w, params["w_dec"]], axis=1)                  # [H, Dy+Dx]
    w_head = jnp.pad(w_head, ((0, Hp - H), (0, Dp - Dheads))).astype(MXU_DTYPE)
    b_head = jnp.concatenate(
        [jnp.zeros((1, Dout), jnp.float32), params["b_dec"].astype(jnp.float32)],
        axis=1)
    b_head = jnp.pad(b_head, ((0, 0), (0, Dp - Dheads)))                    # [1, Dp]

    out = _fused_lstm(x, w_ih_p, b_p, w_hh_p, w_head, b_head, hp=Hp, dp=Dp)
    y = out[..., :Dout]
    x_rec = out[..., Dout:Dheads]
    return x_rec, y


# ----------------------------------------------------------------------------
# Pure-JAX f32 reference (sanity check)
# ----------------------------------------------------------------------------
def lstm_forward_ref(x, w, params):
    B, T, D = x.shape
    H = params["w_hh"].shape[0]

    def step(carry, x_t):
        h, c = carry
        gates = x_t @ params["w_ih"] + h @ params["w_hh"] + params["b"][0]
        i = jax.nn.sigmoid(gates[:, 0 * H:1 * H])
        f = jax.nn.sigmoid(gates[:, 1 * H:2 * H])
        g = jnp.tanh(gates[:, 2 * H:3 * H])
        o = jax.nn.sigmoid(gates[:, 3 * H:4 * H])
        c = f * c + i * g
        h = o * jnp.tanh(c)
        return (h, c), h

    x_tbd = x.transpose(1, 0, 2)
    (_, _), z_tbh = lax.scan(
        step, (jnp.zeros((B, H), jnp.float32), jnp.zeros((B, H), jnp.float32)), x_tbd
    )
    z = z_tbh.transpose(1, 0, 2)
    y = z @ w
    x_rec = z @ params["w_dec"] + params["b_dec"][0]
    return x_rec, y


if __name__ == "__main__":
    B, T, D_IN, H, D_OUT = 8, 8, 16, 32, 16

    key = jax.random.PRNGKey(0)
    k_x, k_w, k_ih, k_hh, k_b, k_dec, k_bdec = jax.random.split(key, 7)

    x = jax.random.normal(k_x, (B, T, D_IN), jnp.float32)
    w = jax.random.normal(k_w, (H, D_OUT), jnp.float32) * 0.1

    params = {
        "w_ih": jax.random.normal(k_ih, (D_IN, 4 * H), jnp.float32) * 0.1,
        "w_hh": jax.random.normal(k_hh, (H, 4 * H), jnp.float32) * 0.1,
        "b": jax.random.normal(k_b, (1, 4 * H), jnp.float32) * 0.1,
        "w_dec": jax.random.normal(k_dec, (H, D_IN), jnp.float32) * 0.1,
        "b_dec": jax.random.normal(k_bdec, (1, D_IN), jnp.float32) * 0.1,
    }

    x_rec, y = jax.jit(lambda a, b: lstm_forward(a, b, params))(x, w)
    jax.block_until_ready((x_rec, y))

    x_rec_ref, y_ref = lstm_forward_ref(x, w, params)
    assert x_rec.shape == (B, T, D_IN) and y.shape == (B, T, D_OUT)
    # bf16 MXU operands (f32 accumulation) -> loosened tolerance vs. f32 reference.
    assert jnp.allclose(x_rec, x_rec_ref, rtol=5e-2, atol=5e-2)
    assert jnp.allclose(y, y_ref, rtol=5e-2, atol=5e-2)

    print("KERNEL_OK")
</pallas_src>

<mosaic_0001>
module attributes {stable_mosaic.version = 11 : i64} {
  func.func @_fused_lstm_kernel(%arg0: i32, %arg1: i32, %arg2: memref<8x8x16xf32, #tpu.memory_space<vmem>>, %arg3: memref<16x512xbf16, #tpu.memory_space<vmem>>, %arg4: memref<1x512xf32, #tpu.memory_space<vmem>>, %arg5: memref<128x512xbf16, #tpu.memory_space<vmem>>, %arg6: memref<128x128xbf16, #tpu.memory_space<vmem>>, %arg7: memref<1x128xf32, #tpu.memory_space<vmem>>, %arg8: memref<8x8x128xf32, #tpu.memory_space<vmem>>, %arg9: memref<8x128xf32, #tpu.memory_space<vmem>>, %arg10: memref<8x128xf32, #tpu.memory_space<vmem>>, %arg11: memref<8x8x512xf32, #tpu.memory_space<vmem>>, %arg12: memref<8x8x128xf32, #tpu.memory_space<vmem>>) attributes {dimension_semantics = [#tpu.dimension_semantics<parallel>, #tpu.dimension_semantics<arbitrary>], iteration_bounds = array<i64: 1, 1>, scalar_prefetch = 0 : i64, scratch_operands = 4 : i64, tpu.core_type = #tpu.core_type<tc>, window_params = [{transform_indices = @transform_0, window_bounds = array<i64: 8, 8, 16>}, {pipeline_mode = #tpu.pipeline_mode<synchronous>, transform_indices = @transform_1, window_bounds = array<i64: 16, 512>}, {pipeline_mode = #tpu.pipeline_mode<synchronous>, transform_indices = @transform_2, window_bounds = array<i64: 1, 512>}, {pipeline_mode = #tpu.pipeline_mode<synchronous>, transform_indices = @transform_3, window_bounds = array<i64: 128, 512>}, {pipeline_mode = #tpu.pipeline_mode<synchronous>, transform_indices = @transform_4, window_bounds = array<i64: 128, 128>}, {pipeline_mode = #tpu.pipeline_mode<synchronous>, transform_indices = @transform_5, window_bounds = array<i64: 1, 128>}, {transform_indices = @transform_6, window_bounds = array<i64: 8, 8, 128>}]} {
    %c0_i32 = arith.constant 0 : i32
    %0 = arith.cmpi eq, %arg1, %c0_i32 : i32
    %1 = arith.extui %0 : i1 to i32
    %c0_i32_0 = arith.constant 0 : i32
    %2 = arith.cmpi ne, %1, %c0_i32_0 : i32
    scf.if %2 {
      %cst_104 = arith.constant 0.000000e+00 : f32
      %292 = vector.broadcast %cst_104 : f32 to vector<8x128xf32>
      %c0_105 = arith.constant 0 : index
      %c0_106 = arith.constant 0 : index
      %293 = vector.load %arg9[%c0_105, %c0_106] : memref<8x128xf32, #tpu.memory_space<vmem>>, vector<8x128xf32>
      tpu.vector_store %arg9[%c0_105, %c0_106], %292 {strides = array<i32>} : memref<8x128xf32, #tpu.memory_space<vmem>>, vector<8x128xf32>,
      %cst_107 = arith.constant 0.000000e+00 : f32
      %294 = vector.broadcast %cst_107 : f32 to vector<8x128xf32>
      %c0_108 = arith.constant 0 : index
      %c0_109 = arith.constant 0 : index
      %295 = vector.load %arg10[%c0_108, %c0_109] : memref<8x128xf32, #tpu.memory_space<vmem>>, vector<8x128xf32>
      tpu.vector_store %arg10[%c0_108, %c0_109], %294 {strides = array<i32>} : memref<8x128xf32, #tpu.memory_space<vmem>>, vector<8x128xf32>,
    } else {
    }
    %c0 = arith.constant 0 : index
    %c0_1 = arith.constant 0 : index
    %c0_2 = arith.constant 0 : index
    %3 = vector.load %arg2[%c0, %c0_1, %c0_2] : memref<8x8x16xf32, #tpu.memory_space<vmem>>, vector<8x8x16xf32>
    %4 = vector.shape_cast %3 : vector<8x8x16xf32> to vector<64x16xf32>
    %5 = arith.truncf %4 : vector<64x16xf32> to vector<64x16xbf16>
    %c0_3 = arith.constant 0 : index
    %c0_4 = arith.constant 0 : index
    %6 = vector.load %arg3[%c0_3, %c0_4] : memref<16x512xbf16, #tpu.memory_space<vmem>>, vector<16x512xbf16>
    %cst = arith.constant dense<0.000000e+00> : vector<64x512xf32>
    %7 = tpu.matmul %5, %6, %cst {dimension_numbers = #tpu.dot_dimension_numbers<[1], [0], [0], [1], [0, 0, 1, 1], [], []>} : vector<64x16xbf16>, vector<16x512xbf16>, vector<64x512xf32> -> vector<64x512xf32>
    %c0_5 = arith.constant 0 : index
    %c0_6 = arith.constant 0 : index
    %8 = vector.load %arg4[%c0_5, %c0_6] : memref<1x512xf32, #tpu.memory_space<vmem>>, vector<1x512xf32>
    %9 = vector.broadcast %8 : vector<1x512xf32> to vector<64x512xf32>
    %10 = arith.addf %7, %9 : vector<64x512xf32>
    %11 = vector.shape_cast %10 : vector<64x512xf32> to vector<8x8x512xf32>
    %c0_7 = arith.constant 0 : index
    %c0_8 = arith.constant 0 : index
    %c0_9 = arith.constant 0 : index
    %12 = vector.load %arg11[%c0_7, %c0_8, %c0_9] : memref<8x8x512xf32, #tpu.memory_space<vmem>>, vector<8x8x512xf32>
    tpu.vector_store %arg11[%c0_7, %c0_8, %c0_9], %11 {strides = array<i32>} : memref<8x8x512xf32, #tpu.memory_space<vmem>>, vector<8x8x512xf32>,
    %c0_10 = arith.constant 0 : index
    %c0_11 = arith.constant 0 : index
    %13 = vector.load %arg5[%c0_10, %c0_11] : memref<128x512xbf16, #tpu.memory_space<vmem>>, vector<128x512xbf16>
    %c0_12 = arith.constant 0 : index
    %c0_13 = arith.constant 0 : index
    %14 = vector.load %arg9[%c0_12, %c0_13] : memref<8x128xf32, #tpu.memory_space<vmem>>, vector<8x128xf32>
    %c0_14 = arith.constant 0 : index
    %c0_15 = arith.constant 0 : index
    %15 = vector.load %arg10[%c0_14, %c0_15] : memref<8x128xf32, #tpu.memory_space<vmem>>, vector<8x128xf32>
    %c0_16 = arith.constant 0 : index
    %c0_17 = arith.constant 0 : index
    %c0_18 = arith.constant 0 : index
    %16 = vector.load %arg11[%c0_16, %c0_17, %c0_18] : memref<8x8x512xf32, #tpu.memory_space<vmem>>, vector<8x1x512xf32>
    %17 = vector.shape_cast %16 : vector<8x1x512xf32> to vector<8x512xf32>
    %18 = arith.truncf %14 : vector<8x128xf32> to vector<8x128xbf16>
    %cst_19 = arith.constant dense<0.000000e+00> : vector<8x512xf32>
    %19 = tpu.matmul %18, %13, %cst_19 {dimension_numbers = #tpu.dot_dimension_numbers<[1], [0], [0], [1], [0, 0, 1, 1], [], []>} : vector<8x128xbf16>, vector<128x512xbf16>, vector<8x512xf32> -> vector<8x512xf32>
    %20 = arith.addf %17, %19 : vector<8x512xf32>
    %21 = vector.extract_strided_slice %20 {offsets = [0, 0], sizes = [8, 128], strides = [1, 1]} : vector<8x512xf32> to vector<8x128xf32>
    %22 = arith.negf %21 : vector<8x128xf32>
    %23 = math.exp %22 : vector<8x128xf32>
    %cst_20 = arith.constant 1.000000e+00 : f32
    %24 = vector.broadcast %cst_20 : f32 to vector<8x128xf32>
    %25 = arith.addf %24, %23 : vector<8x128xf32>
    %26 = arith.divf %24, %25 : vector<8x128xf32>
    %27 = vector.extract_strided_slice %20 {offsets = [0, 128], sizes = [8, 128], strides = [1, 1]} : vector<8x512xf32> to vector<8x128xf32>
    %28 = arith.negf %27 : vector<8x128xf32>
    %29 = math.exp %28 : vector<8x128xf32>
    %cst_21 = arith.constant 1.000000e+00 : f32
    %30 = vector.broadcast %cst_21 : f32 to vector<8x128xf32>
    %31 = arith.addf %30, %29 : vector<8x128xf32>
    %32 = arith.divf %30, %31 : vector<8x128xf32>
    %33 = vector.extract_strided_slice %20 {offsets = [0, 256], sizes = [8, 128], strides = [1, 1]} : vector<8x512xf32> to vector<8x128xf32>
    %34 = math.tanh %33 : vector<8x128xf32>
    %35 = vector.extract_strided_slice %20 {offsets = [0, 384], sizes = [8, 128], strides = [1, 1]} : vector<8x512xf32> to vector<8x128xf32>
    %36 = arith.negf %35 : vector<8x128xf32>
    %37 = math.exp %36 : vector<8x128xf32>
    %cst_22 = arith.constant 1.000000e+00 : f32
    %38 = vector.broadcast %cst_22 : f32 to vector<8x128xf32>
    %39 = arith.addf %38, %37 : vector<8x128xf32>
    %40 = arith.divf %38, %39 : vector<8x128xf32>
    %41 = arith.mulf %32, %15 : vector<8x128xf32>
    %42 = arith.mulf %26, %34 : vector<8x128xf32>
    %43 = arith.addf %41, %42 : vector<8x128xf32>
    %44 = math.tanh %43 : vector<8x128xf32>
    %45 = arith.mulf %40, %44 : vector<8x128xf32>
    %c0_23 = arith.constant 0 : index
    %c0_24 = arith.constant 0 : index
    %c0_25 = arith.constant 0 : index
    %46 = vector.load %arg12[%c0_23, %c0_24, %c0_25] : memref<8x8x128xf32, #tpu.memory_space<vmem>>, vector<8x1x128xf32>
    %47 = vector.shape_cast %46 : vector<8x1x128xf32> to vector<8x128xf32>
    %48 = vector.shape_cast %45 : vector<8x128xf32> to vector<8x1x128xf32>
    tpu.vector_store %arg12[%c0_23, %c0_24, %c0_25], %48 {strides = array<i32>} : memref<8x8x128xf32, #tpu.memory_space<vmem>>, vector<8x1x128xf32>,
    %c0_26 = arith.constant 0 : index
    %c1 = arith.constant 1 : index
    %c0_27 = arith.constant 0 : index
    %49 = vector.load %arg11[%c0_26, %c1, %c0_27] : memref<8x8x512xf32, #tpu.memory_space<vmem>>, vector<8x1x512xf32>
    %50 = vector.shape_cast %49 : vector<8x1x512xf32> to vector<8x512xf32>
    %51 = arith.truncf %45 : vector<8x128xf32> to vector<8x128xbf16>
    %cst_28 = arith.constant dense<0.000000e+00> : vector<8x512xf32>
    %52 = tpu.matmul %51, %13, %cst_28 {dimension_numbers = #tpu.dot_dimension_numbers<[1], [0], [0], [1], [0, 0, 1, 1], [], []>} : vector<8x128xbf16>, vector<128x512xbf16>, vector<8x512xf32> -> vector<8x512xf32>
    %53 = arith.addf %50, %52 : vector<8x512xf32>
    %54 = vector.extract_strided_slice %53 {offsets = [0, 0], sizes = [8, 128], strides = [1, 1]} : vector<8x512xf32> to vector<8x128xf32>
    %55 = arith.negf %54 : vector<8x128xf32>
    %56 = math.exp %55 : vector<8x128xf32>
    %cst_29 = arith.constant 1.000000e+00 : f32
    %57 = vector.broadcast %cst_29 : f32 to vector<8x128xf32>
    %58 = arith.addf %57, %56 : vector<8x128xf32>
    %59 = arith.divf %57, %58 : vector<8x128xf32>
    %60 = vector.extract_strided_slice %53 {offsets = [0, 128], sizes = [8, 128], strides = [1, 1]} : vector<8x512xf32> to vector<8x128xf32>
    %61 = arith.negf %60 : vector<8x128xf32>
    %62 = math.exp %61 : vector<8x128xf32>
    %cst_30 = arith.constant 1.000000e+00 : f32
    %63 = vector.broadcast %cst_30 : f32 to vector<8x128xf32>
    %64 = arith.addf %63, %62 : vector<8x128xf32>
    %65 = arith.divf %63, %64 : vector<8x128xf32>
    %66 = vector.extract_strided_slice %53 {offsets = [0, 256], sizes = [8, 128], strides = [1, 1]} : vector<8x512xf32> to vector<8x128xf32>
    %67 = math.tanh %66 : vector<8x128xf32>
    %68 = vector.extract_strided_slice %53 {offsets = [0, 384], sizes = [8, 128], strides = [1, 1]} : vector<8x512xf32> to vector<8x128xf32>
    %69 = arith.negf %68 : vector<8x128xf32>
    %70 = math.exp %69 : vector<8x128xf32>
    %cst_31 = arith.constant 1.000000e+00 : f32
    %71 = vector.broadcast %cst_31 : f32 to vector<8x128xf32>
    %72 = arith.addf %71, %70 : vector<8x128xf32>
    %73 = arith.divf %71, %72 : vector<8x128xf32>
    %74 = arith.mulf %65, %43 : vector<8x128xf32>
    %75 = arith.mulf %59, %67 : vector<8x128xf32>
    %76 = arith.addf %74, %75 : vector<8x128xf32>
    %77 = math.tanh %76 : vector<8x128xf32>
    %78 = arith.mulf %73, %77 : vector<8x128xf32>
    %c0_32 = arith.constant 0 : index
    %c1_33 = arith.constant 1 : index
    %c0_34 = arith.constant 0 : index
    %79 = vector.load %arg12[%c0_32, %c1_33, %c0_34] : memref<8x8x128xf32, #tpu.memory_space<vmem>>, vector<8x1x128xf32>
    %80 = vector.shape_cast %79 : vector<8x1x128xf32> to vector<8x128xf32>
    %81 = vector.shape_cast %78 : vector<8x128xf32> to vector<8x1x128xf32>
    tpu.vector_store %arg12[%c0_32, %c1_33, %c0_34], %81 {strides = array<i32>} : memref<8x8x128xf32, #tpu.memory_space<vmem>>, vector<8x1x128xf32>,
    %c0_35 = arith.constant 0 : index
    %c2 = arith.constant 2 : index
    %c0_36 = arith.constant 0 : index
    %82 = vector.load %arg11[%c0_35, %c2, %c0_36] : memref<8x8x512xf32, #tpu.memory_space<vmem>>, vector<8x1x512xf32>
    %83 = vector.shape_cast %82 : vector<8x1x512xf32> to vector<8x512xf32>
    %84 = arith.truncf %78 : vector<8x128xf32> to vector<8x128xbf16>
    %cst_37 = arith.constant dense<0.000000e+00> : vector<8x512xf32>
    %85 = tpu.matmul %84, %13, %cst_37 {dimension_numbers = #tpu.dot_dimension_numbers<[1], [0], [0], [1], [0, 0, 1, 1], [], []>} : vector<8x128xbf16>, vector<128x512xbf16>, vector<8x512xf32> -> vector<8x512xf32>
    %86 = arith.addf %83, %85 : vector<8x512xf32>
    %87 = vector.extract_strided_slice %86 {offsets = [0, 0], sizes = [8, 128], strides = [1, 1]} : vector<8x512xf32> to vector<8x128xf32>
    %88 = arith.negf %87 : vector<8x128xf32>
    %89 = math.exp %88 : vector<8x128xf32>
    %cst_38 = arith.constant 1.000000e+00 : f32
    %90 = vector.broadcast %cst_38 : f32 to vector<8x128xf32>
    %91 = arith.addf %90, %89 : vector<8x128xf32>
    %92 = arith.divf %90, %91 : vector<8x128xf32>
    %93 = vector.extract_strided_slice %86 {offsets = [0, 128], sizes = [8, 128], strides = [1, 1]} : vector<8x512xf32> to vector<8x128xf32>
    %94 = arith.negf %93 : vector<8x128xf32>
    %95 = math.exp %94 : vector<8x128xf32>
    %cst_39 = arith.constant 1.000000e+00 : f32
    %96 = vector.broadcast %cst_39 : f32 to vector<8x128xf32>
    %97 = arith.addf %96, %95 : vector<8x128xf32>
    %98 = arith.divf %96, %97 : vector<8x128xf32>
    %99 = vector.extract_strided_slice %86 {offsets = [0, 256], sizes = [8, 128], strides = [1, 1]} : vector<8x512xf32> to vector<8x128xf32>
    %100 = math.tanh %99 : vector<8x128xf32>
    %101 = vector.extract_strided_slice %86 {offsets = [0, 384], sizes = [8, 128], strides = [1, 1]} : vector<8x512xf32> to vector<8x128xf32>
    %102 = arith.negf %101 : vector<8x128xf32>
    %103 = math.exp %102 : vector<8x128xf32>
    %cst_40 = arith.constant 1.000000e+00 : f32
    %104 = vector.broadcast %cst_40 : f32 to vector<8x128xf32>
    %105 = arith.addf %104, %103 : vector<8x128xf32>
    %106 = arith.divf %104, %105 : vector<8x128xf32>
    %107 = arith.mulf %98, %76 : vector<8x128xf32>
    %108 = arith.mulf %92, %100 : vector<8x128xf32>
    %109 = arith.addf %107, %108 : vector<8x128xf32>
    %110 = math.tanh %109 : vector<8x128xf32>
    %111 = arith.mulf %106, %110 : vector<8x128xf32>
    %c0_41 = arith.constant 0 : index
    %c2_42 = arith.constant 2 : index
    %c0_43 = arith.constant 0 : index
    %112 = vector.load %arg12[%c0_41, %c2_42, %c0_43] : memref<8x8x128xf32, #tpu.memory_space<vmem>>, vector<8x1x128xf32>
    %113 = vector.shape_cast %112 : vector<8x1x128xf32> to vector<8x128xf32>
    %114 = vector.shape_cast %111 : vector<8x128xf32> to vector<8x1x128xf32>
    tpu.vector_store %arg12[%c0_41, %c2_42, %c0_43], %114 {strides = array<i32>} : memref<8x8x128xf32, #tpu.memory_space<vmem>>, vector<8x1x128xf32>,
    %c0_44 = arith.constant 0 : index
    %c3 = arith.constant 3 : index
    %c0_45 = arith.constant 0 : index
    %115 = vector.load %arg11[%c0_44, %c3, %c0_45] : memref<8x8x512xf32, #tpu.memory_space<vmem>>, vector<8x1x512xf32>
    %116 = vector.shape_cast %115 : vector<8x1x512xf32> to vector<8x512xf32>
    %117 = arith.truncf %111 : vector<8x128xf32> to vector<8x128xbf16>
    %cst_46 = arith.constant dense<0.000000e+00> : vector<8x512xf32>
    %118 = tpu.matmul %117, %13, %cst_46 {dimension_numbers = #tpu.dot_dimension_numbers<[1], [0], [0], [1], [0, 0, 1, 1], [], []>} : vector<8x128xbf16>, vector<128x512xbf16>, vector<8x512xf32> -> vector<8x512xf32>
    %119 = arith.addf %116, %118 : vector<8x512xf32>
    %120 = vector.extract_strided_slice %119 {offsets = [0, 0], sizes = [8, 128], strides = [1, 1]} : vector<8x512xf32> to vector<8x128xf32>
    %121 = arith.negf %120 : vector<8x128xf32>
    %122 = math.exp %121 : vector<8x128xf32>
    %cst_47 = arith.constant 1.000000e+00 : f32
    %123 = vector.broadcast %cst_47 : f32 to vector<8x128xf32>
    %124 = arith.addf %123, %122 : vector<8x128xf32>
    %125 = arith.divf %123, %124 : vector<8x128xf32>
    %126 = vector.extract_strided_slice %119 {offsets = [0, 128], sizes = [8, 128], strides = [1, 1]} : vector<8x512xf32> to vector<8x128xf32>
    %127 = arith.negf %126 : vector<8x128xf32>
    %128 = math.exp %127 : vector<8x128xf32>
    %cst_48 = arith.constant 1.000000e+00 : f32
    %129 = vector.broadcast %cst_48 : f32 to vector<8x128xf32>
    %130 = arith.addf %129, %128 : vector<8x128xf32>
    %131 = arith.divf %129, %130 : vector<8x128xf32>
    %132 = vector.extract_strided_slice %119 {offsets = [0, 256], sizes = [8, 128], strides = [1, 1]} : vector<8x512xf32> to vector<8x128xf32>
    %133 = math.tanh %132 : vector<8x128xf32>
    %134 = vector.extract_strided_slice %119 {offsets = [0, 384], sizes = [8, 128], strides = [1, 1]} : vector<8x512xf32> to vector<8x128xf32>
    %135 = arith.negf %134 : vector<8x128xf32>
    %136 = math.exp %135 : vector<8x128xf32>
    %cst_49 = arith.constant 1.000000e+00 : f32
    %137 = vector.broadcast %cst_49 : f32 to vector<8x128xf32>
    %138 = arith.addf %137, %136 : vector<8x128xf32>
    %139 = arith.divf %137, %138 : vector<8x128xf32>
    %140 = arith.mulf %131, %109 : vector<8x128xf32>
    %141 = arith.mulf %125, %133 : vector<8x128xf32>
    %142 = arith.addf %140, %141 : vector<8x128xf32>
    %143 = math.tanh %142 : vector<8x128xf32>
    %144 = arith.mulf %139, %143 : vector<8x128xf32>
    %c0_50 = arith.constant 0 : index
    %c3_51 = arith.constant 3 : index
    %c0_52 = arith.constant 0 : index
    %145 = vector.load %arg12[%c0_50, %c3_51, %c0_52] : memref<8x8x128xf32, #tpu.memory_space<vmem>>, vector<8x1x128xf32>
    %146 = vector.shape_cast %145 : vector<8x1x128xf32> to vector<8x128xf32>
    %147 = vector.shape_cast %144 : vector<8x128xf32> to vector<8x1x128xf32>
    tpu.vector_store %arg12[%c0_50, %c3_51, %c0_52], %147 {strides = array<i32>} : memref<8x8x128xf32, #tpu.memory_space<vmem>>, vector<8x1x128xf32>,
    %c0_53 = arith.constant 0 : index
    %c4 = arith.constant 4 : index
    %c0_54 = arith.constant 0 : index
    %148 = vector.load %arg11[%c0_53, %c4, %c0_54] : memref<8x8x512xf32, #tpu.memory_space<vmem>>, vector<8x1x512xf32>
    %149 = vector.shape_cast %148 : vector<8x1x512xf32> to vector<8x512xf32>
    %150 = arith.truncf %144 : vector<8x128xf32> to vector<8x128xbf16>
    %cst_55 = arith.constant dense<0.000000e+00> : vector<8x512xf32>
    %151 = tpu.matmul %150, %13, %cst_55 {dimension_numbers = #tpu.dot_dimension_numbers<[1], [0], [0], [1], [0, 0, 1, 1], [], []>} : vector<8x128xbf16>, vector<128x512xbf16>, vector<8x512xf32> -> vector<8x512xf32>
    %152 = arith.addf %149, %151 : vector<8x512xf32>
    %153 = vector.extract_strided_slice %152 {offsets = [0, 0], sizes = [8, 128], strides = [1, 1]} : vector<8x512xf32> to vector<8x128xf32>
    %154 = arith.negf %153 : vector<8x128xf32>
    %155 = math.exp %154 : vector<8x128xf32>
    %cst_56 = arith.constant 1.000000e+00 : f32
    %156 = vector.broadcast %cst_56 : f32 to vector<8x128xf32>
    %157 = arith.addf %156, %155 : vector<8x128xf32>
    %158 = arith.divf %156, %157 : vector<8x128xf32>
    %159 = vector.extract_strided_slice %152 {offsets = [0, 128], sizes = [8, 128], strides = [1, 1]} : vector<8x512xf32> to vector<8x128xf32>
    %160 = arith.negf %159 : vector<8x128xf32>
    %161 = math.exp %160 : vector<8x128xf32>
    %cst_57 = arith.constant 1.000000e+00 : f32
    %162 = vector.broadcast %cst_57 : f32 to vector<8x128xf32>
    %163 = arith.addf %162, %161 : vector<8x128xf32>
    %164 = arith.divf %162, %163 : vector<8x128xf32>
    %165 = vector.extract_strided_slice %152 {offsets = [0, 256], sizes = [8, 128], strides = [1, 1]} : vector<8x512xf32> to vector<8x128xf32>
    %166 = math.tanh %165 : vector<8x128xf32>
    %167 = vector.extract_strided_slice %152 {offsets = [0, 384], sizes = [8, 128], strides = [1, 1]} : vector<8x512xf32> to vector<8x128xf32>
    %168 = arith.negf %167 : vector<8x128xf32>
    %169 = math.exp %168 : vector<8x128xf32>
    %cst_58 = arith.constant 1.000000e+00 : f32
    %170 = vector.broadcast %cst_58 : f32 to vector<8x128xf32>
    %171 = arith.addf %170, %169 : vector<8x128xf32>
    %172 = arith.divf %170, %171 : vector<8x128xf32>
    %173 = arith.mulf %164, %142 : vector<8x128xf32>
    %174 = arith.mulf %158, %166 : vector<8x128xf32>
    %175 = arith.addf %173, %174 : vector<8x128xf32>
    %176 = math.tanh %175 : vector<8x128xf32>
    %177 = arith.mulf %172, %176 : vector<8x128xf32>
    %c0_59 = arith.constant 0 : index
    %c4_60 = arith.constant 4 : index
    %c0_61 = arith.constant 0 : index
    %178 = vector.load %arg12[%c0_59, %c4_60, %c0_61] : memref<8x8x128xf32, #tpu.memory_space<vmem>>, vector<8x1x128xf32>
    %179 = vector.shape_cast %178 : vector<8x1x128xf32> to vector<8x128xf32>
    %180 = vector.shape_cast %177 : vector<8x128xf32> to vector<8x1x128xf32>
    tpu.vector_store %arg12[%c0_59, %c4_60, %c0_61], %180 {strides = array<i32>} : memref<8x8x128xf32, #tpu.memory_space<vmem>>, vector<8x1x128xf32>,
    %c0_62 = arith.constant 0 : index
    %c5 = arith.constant 5 : index
    %c0_63 = arith.constant 0 : index
    %181 = vector.load %arg11[%c0_62, %c5, %c0_63] : memref<8x8x512xf32, #tpu.memory_space<vmem>>, vector<8x1x512xf32>
    %182 = vector.shape_cast %181 : vector<8x1x512xf32> to vector<8x512xf32>
    %183 = arith.truncf %177 : vector<8x128xf32> to vector<8x128xbf16>
    %cst_64 = arith.constant dense<0.000000e+00> : vector<8x512xf32>
    %184 = tpu.matmul %183, %13, %cst_64 {dimension_numbers = #tpu.dot_dimension_numbers<[1], [0], [0], [1], [0, 0, 1, 1], [], []>} : vector<8x128xbf16>, vector<128x512xbf16>, vector<8x512xf32> -> vector<8x512xf32>
    %185 = arith.addf %182, %184 : vector<8x512xf32>
    %186 = vector.extract_strided_slice %185 {offsets = [0, 0], sizes = [8, 128], strides = [1, 1]} : vector<8x512xf32> to vector<8x128xf32>
    %187 = arith.negf %186 : vector<8x128xf32>
    %188 = math.exp %187 : vector<8x128xf32>
    %cst_65 = arith.constant 1.000000e+00 : f32
    %189 = vector.broadcast %cst_65 : f32 to vector<8x128xf32>
    %190 = arith.addf %189, %188 : vector<8x128xf32>
    %191 = arith.divf %189, %190 : vector<8x128xf32>
    %192 = vector.extract_strided_slice %185 {offsets = [0, 128], sizes = [8, 128], strides = [1, 1]} : vector<8x512xf32> to vector<8x128xf32>
    %193 = arith.negf %192 : vector<8x128xf32>
    %194 = math.exp %193 : vector<8x128xf32>
    %cst_66 = arith.constant 1.000000e+00 : f32
    %195 = vector.broadcast %cst_66 : f32 to vector<8x128xf32>
    %196 = arith.addf %195, %194 : vector<8x128xf32>
    %197 = arith.divf %195, %196 : vector<8x128xf32>
    %198 = vector.extract_strided_slice %185 {offsets = [0, 256], sizes = [8, 128], strides = [1, 1]} : vector<8x512xf32> to vector<8x128xf32>
    %199 = math.tanh %198 : vector<8x128xf32>
    %200 = vector.extract_strided_slice %185 {offsets = [0, 384], sizes = [8, 128], strides = [1, 1]} : vector<8x512xf32> to vector<8x128xf32>
    %201 = arith.negf %200 : vector<8x128xf32>
    %202 = math.exp %201 : vector<8x128xf32>
    %cst_67 = arith.constant 1.000000e+00 : f32
    %203 = vector.broadcast %cst_67 : f32 to vector<8x128xf32>
    %204 = arith.addf %203, %202 : vector<8x128xf32>
    %205 = arith.divf %203, %204 : vector<8x128xf32>
    %206 = arith.mulf %197, %175 : vector<8x128xf32>
    %207 = arith.mulf %191, %199 : vector<8x128xf32>
    %208 = arith.addf %206, %207 : vector<8x128xf32>
    %209 = math.tanh %208 : vector<8x128xf32>
    %210 = arith.mulf %205, %209 : vector<8x128xf32>
    %c0_68 = arith.constant 0 : index
    %c5_69 = arith.constant 5 : index
    %c0_70 = arith.constant 0 : index
    %211 = vector.load %arg12[%c0_68, %c5_69, %c0_70] : memref<8x8x128xf32, #tpu.memory_space<vmem>>, vector<8x1x128xf32>
    %212 = vector.shape_cast %211 : vector<8x1x128xf32> to vector<8x128xf32>
    %213 = vector.shape_cast %210 : vector<8x128xf32> to vector<8x1x128xf32>
    tpu.vector_store %arg12[%c0_68, %c5_69, %c0_70], %213 {strides = array<i32>} : memref<8x8x128xf32, #tpu.memory_space<vmem>>, vector<8x1x128xf32>,
    %c0_71 = arith.constant 0 : index
    %c6 = arith.constant 6 : index
    %c0_72 = arith.constant 0 : index
    %214 = vector.load %arg11[%c0_71, %c6, %c0_72] : memref<8x8x512xf32, #tpu.memory_space<vmem>>, vector<8x1x512xf32>
    %215 = vector.shape_cast %214 : vector<8x1x512xf32> to vector<8x512xf32>
    %216 = arith.truncf %210 : vector<8x128xf32> to vector<8x128xbf16>
    %cst_73 = arith.constant dense<0.000000e+00> : vector<8x512xf32>
    %217 = tpu.matmul %216, %13, %cst_73 {dimension_numbers = #tpu.dot_dimension_numbers<[1], [0], [0], [1], [0, 0, 1, 1], [], []>} : vector<8x128xbf16>, vector<128x512xbf16>, vector<8x512xf32> -> vector<8x512xf32>
    %218 = arith.addf %215, %217 : vector<8x512xf32>
    %219 = vector.extract_strided_slice %218 {offsets = [0, 0], sizes = [8, 128], strides = [1, 1]} : vector<8x512xf32> to vector<8x128xf32>
    %220 = arith.negf %219 : vector<8x128xf32>
    %221 = math.exp %220 : vector<8x128xf32>
    %cst_74 = arith.constant 1.000000e+00 : f32
    %222 = vector.broadcast %cst_74 : f32 to vector<8x128xf32>
    %223 = arith.addf %222, %221 : vector<8x128xf32>
    %224 = arith.divf %222, %223 : vector<8x128xf32>
    %225 = vector.extract_strided_slice %218 {offsets = [0, 128], sizes = [8, 128], strides = [1, 1]} : vector<8x512xf32> to vector<8x128xf32>
    %226 = arith.negf %225 : vector<8x128xf32>
    %227 = math.exp %226 : vector<8x128xf32>
    %cst_75 = arith.constant 1.000000e+00 : f32
    %228 = vector.broadcast %cst_75 : f32 to vector<8x128xf32>
    %229 = arith.addf %228, %227 : vector<8x128xf32>
    %230 = arith.divf %228, %229 : vector<8x128xf32>
    %231 = vector.extract_strided_slice %218 {offsets = [0, 256], sizes = [8, 128], strides = [1, 1]} : vector<8x512xf32> to vector<8x128xf32>
    %232 = math.tanh %231 : vector<8x128xf32>
    %233 = vector.extract_strided_slice %218 {offsets = [0, 384], sizes = [8, 128], strides = [1, 1]} : vector<8x512xf32> to vector<8x128xf32>
    %234 = arith.negf %233 : vector<8x128xf32>
    %235 = math.exp %234 : vector<8x128xf32>
    %cst_76 = arith.constant 1.000000e+00 : f32
    %236 = vector.broadcast %cst_76 : f32 to vector<8x128xf32>
    %237 = arith.addf %236, %235 : vector<8x128xf32>
    %238 = arith.divf %236, %237 : vector<8x128xf32>
    %239 = arith.mulf %230, %208 : vector<8x128xf32>
    %240 = arith.mulf %224, %232 : vector<8x128xf32>
    %241 = arith.addf %239, %240 : vector<8x128xf32>
    %242 = math.tanh %241 : vector<8x128xf32>
    %243 = arith.mulf %238, %242 : vector<8x128xf32>
    %c0_77 = arith.constant 0 : index
    %c6_78 = arith.constant 6 : index
    %c0_79 = arith.constant 0 : index
    %244 = vector.load %arg12[%c0_77, %c6_78, %c0_79] : memref<8x8x128xf32, #tpu.memory_space<vmem>>, vector<8x1x128xf32>
    %245 = vector.shape_cast %244 : vector<8x1x128xf32> to vector<8x128xf32>
    %246 = vector.shape_cast %243 : vector<8x128xf32> to vector<8x1x128xf32>
    tpu.vector_store %arg12[%c0_77, %c6_78, %c0_79], %246 {strides = array<i32>} : memref<8x8x128xf32, #tpu.memory_space<vmem>>, vector<8x1x128xf32>,
    %c0_80 = arith.constant 0 : index
    %c7 = arith.constant 7 : index
    %c0_81 = arith.constant 0 : index
    %247 = vector.load %arg11[%c0_80, %c7, %c0_81] : memref<8x8x512xf32, #tpu.memory_space<vmem>>, vector<8x1x512xf32>
    %248 = vector.shape_cast %247 : vector<8x1x512xf32> to vector<8x512xf32>
    %249 = arith.truncf %243 : vector<8x128xf32> to vector<8x128xbf16>
    %cst_82 = arith.constant dense<0.000000e+00> : vector<8x512xf32>
    %250 = tpu.matmul %249, %13, %cst_82 {dimension_numbers = #tpu.dot_dimension_numbers<[1], [0], [0], [1], [0, 0, 1, 1], [], []>} : vector<8x128xbf16>, vector<128x512xbf16>, vector<8x512xf32> -> vector<8x512xf32>
    %251 = arith.addf %248, %250 : vector<8x512xf32>
    %252 = vector.extract_strided_slice %251 {offsets = [0, 0], sizes = [8, 128], strides = [1, 1]} : vector<8x512xf32> to vector<8x128xf32>
    %253 = arith.negf %252 : vector<8x128xf32>
    %254 = math.exp %253 : vector<8x128xf32>
    %cst_83 = arith.constant 1.000000e+00 : f32
    %255 = vector.broadcast %cst_83 : f32 to vector<8x128xf32>
    %256 = arith.addf %255, %254 : vector<8x128xf32>
    %257 = arith.divf %255, %256 : vector<8x128xf32>
    %258 = vector.extract_strided_slice %251 {offsets = [0, 128], sizes = [8, 128], strides = [1, 1]} : vector<8x512xf32> to vector<8x128xf32>
    %259 = arith.negf %258 : vector<8x128xf32>
    %260 = math.exp %259 : vector<8x128xf32>
    %cst_84 = arith.constant 1.000000e+00 : f32
    %261 = vector.broadcast %cst_84 : f32 to vector<8x128xf32>
    %262 = arith.addf %261, %260 : vector<8x128xf32>
    %263 = arith.divf %261, %262 : vector<8x128xf32>
    %264 = vector.extract_strided_slice %251 {offsets = [0, 256], sizes = [8, 128], strides = [1, 1]} : vector<8x512xf32> to vector<8x128xf32>
    %265 = math.tanh %264 : vector<8x128xf32>
    %266 = vector.extract_strided_slice %251 {offsets = [0, 384], sizes = [8, 128], strides = [1, 1]} : vector<8x512xf32> to vector<8x128xf32>
    %267 = arith.negf %266 : vector<8x128xf32>
    %268 = math.exp %267 : vector<8x128xf32>
    %cst_85 = arith.constant 1.000000e+00 : f32
    %269 = vector.broadcast %cst_85 : f32 to vector<8x128xf32>
    %270 = arith.addf %269, %268 : vector<8x128xf32>
    %271 = arith.divf %269, %270 : vector<8x128xf32>
    %272 = arith.mulf %263, %241 : vector<8x128xf32>
    %273 = arith.mulf %257, %265 : vector<8x128xf32>
    %274 = arith.addf %272, %273 : vector<8x128xf32>
    %275 = math.tanh %274 : vector<8x128xf32>
    %276 = arith.mulf %271, %275 : vector<8x128xf32>
    %c0_86 = arith.constant 0 : index
    %c7_87 = arith.constant 7 : index
    %c0_88 = arith.constant 0 : index
    %277 = vector.load %arg12[%c0_86, %c7_87, %c0_88] : memref<8x8x128xf32, #tpu.memory_space<vmem>>, vector<8x1x128xf32>
    %278 = vector.shape_cast %277 : vector<8x1x128xf32> to vector<8x128xf32>
    %279 = vector.shape_cast %276 : vector<8x128xf32> to vector<8x1x128xf32>
    tpu.vector_store %arg12[%c0_86, %c7_87, %c0_88], %279 {strides = array<i32>} : memref<8x8x128xf32, #tpu.memory_space<vmem>>, vector<8x1x128xf32>,
    %c0_89 = arith.constant 0 : index
    %c0_90 = arith.constant 0 : index
    %280 = vector.load %arg9[%c0_89, %c0_90] : memref<8x128xf32, #tpu.memory_space<vmem>>, vector<8x128xf32>
    tpu.vector_store %arg9[%c0_89, %c0_90], %276 {strides = array<i32>} : memref<8x128xf32, #tpu.memory_space<vmem>>, vector<8x128xf32>,
    %c0_91 = arith.constant 0 : index
    %c0_92 = arith.constant 0 : index
    %281 = vector.load %arg10[%c0_91, %c0_92] : memref<8x128xf32, #tpu.memory_space<vmem>>, vector<8x128xf32>
    tpu.vector_store %arg10[%c0_91, %c0_92], %274 {strides = array<i32>} : memref<8x128xf32, #tpu.memory_space<vmem>>, vector<8x128xf32>,
    %c0_93 = arith.constant 0 : index
    %c0_94 = arith.constant 0 : index
    %c0_95 = arith.constant 0 : index
    %282 = vector.load %arg12[%c0_93, %c0_94, %c0_95] : memref<8x8x128xf32, #tpu.memory_space<vmem>>, vector<8x8x128xf32>
    %283 = vector.shape_cast %282 : vector<8x8x128xf32> to vector<64x128xf32>
    %284 = arith.truncf %283 : vector<64x128xf32> to vector<64x128xbf16>
    %c0_96 = arith.constant 0 : index
    %c0_97 = arith.constant 0 : index
    %285 = vector.load %arg6[%c0_96, %c0_97] : memref<128x128xbf16, #tpu.memory_space<vmem>>, vector<128x128xbf16>
    %cst_98 = arith.constant dense<0.000000e+00> : vector<64x128xf32>
    %286 = tpu.matmul %284, %285, %cst_98 {dimension_numbers = #tpu.dot_dimension_numbers<[1], [0], [0], [1], [0, 0, 1, 1], [], []>} : vector<64x128xbf16>, vector<128x128xbf16>, vector<64x128xf32> -> vector<64x128xf32>
    %c0_99 = arith.constant 0 : index
    %c0_100 = arith.constant 0 : index
    %287 = vector.load %arg7[%c0_99, %c0_100] : memref<1x128xf32, #tpu.memory_space<vmem>>, vector<1x128xf32>
    %288 = vector.broadcast %287 : vector<1x128xf32> to vector<64x128xf32>
    %289 = arith.addf %286, %288 : vector<64x128xf32>
    %290 = vector.shape_cast %289 : vector<64x128xf32> to vector<8x8x128xf32>
    %c0_101 = arith.constant 0 : index
    %c0_102 = arith.constant 0 : index
    %c0_103 = arith.constant 0 : index
    %291 = vector.load %arg8[%c0_101, %c0_102, %c0_103] : memref<8x8x128xf32, #tpu.memory_space<vmem>>, vector<8x8x128xf32>
    tpu.vector_store %arg8[%c0_101, %c0_102, %c0_103], %290 {strides = array<i32>} : memref<8x8x128xf32, #tpu.memory_space<vmem>>, vector<8x8x128xf32>,
    return
  }
  func.func @transform_0(%arg0: i32, %arg1: i32) -> (i32, i32, i32) {
    %c0_i32 = arith.constant 0 : i32
    %c0_i32_0 = arith.constant 0 : i32
    return %arg0, %arg1, %c0_i32 : i32, i32, i32
  }
  func.func @transform_1(%arg0: i32, %arg1: i32) -> (i32, i32) {
    %c0_i32 = arith.constant 0 : i32
    %c0_i32_0 = arith.constant 0 : i32
    %c0_i32_1 = arith.constant 0 : i32
    return %c0_i32, %c0_i32_0 : i32, i32
  }
  func.func @transform_2(%arg0: i32, %arg1: i32) -> (i32, i32) {
    %c0_i32 = arith.constant 0 : i32
    %c0_i32_0 = arith.constant 0 : i32
    %c0_i32_1 = arith.constant 0 : i32
    return %c0_i32, %c0_i32_0 : i32, i32
  }
  func.func @transform_3(%arg0: i32, %arg1: i32) -> (i32, i32) {
    %c0_i32 = arith.constant 0 : i32
    %c0_i32_0 = arith.constant 0 : i32
    %c0_i32_1 = arith.constant 0 : i32
    return %c0_i32, %c0_i32_0 : i32, i32
  }
  func.func @transform_4(%arg0: i32, %arg1: i32) -> (i32, i32) {
    %c0_i32 = arith.constant 0 : i32
    %c0_i32_0 = arith.constant 0 : i32
    %c0_i32_1 = arith.constant 0 : i32
    return %c0_i32, %c0_i32_0 : i32, i32
  }
  func.func @transform_5(%arg0: i32, %arg1: i32) -> (i32, i32) {
    %c0_i32 = arith.constant 0 : i32
    %c0_i32_0 = arith.constant 0 : i32
    %c0_i32_1 = arith.constant 0 : i32
    return %c0_i32, %c0_i32_0 : i32, i32
  }
  func.func @transform_6(%arg0: i32, %arg1: i32) -> (i32, i32, i32) {
    %c0_i32 = arith.constant 0 : i32
    %c0_i32_0 = arith.constant 0 : i32
    return %arg0, %arg1, %c0_i32 : i32, i32, i32
  }
}

</mosaic_0001>

<llo_original>
// kernel: _lambda_.1
$region0: #{_lambda_.1}
  #allocation0 [shape = 'u32[]', space=smem, size = 0x4, offset = 0x4, fixed_abs, tag = 'smem constant byte address 0x4 - core index']
  #allocation1 [shape = 'u32[72,128]{1,0:T(1,128)}', space=vmem, size = 0x9000, scoped, tag = 'internal scratch']
  #allocation2 [shape = 'f32[8,128]{1,0:T(8,128)}', space=vmem, size = 0x1000, scoped, tag = 'scratch operand']
  #allocation3 [shape = 'f32[8,128]{1,0:T(8,128)}', space=vmem, size = 0x1000, scoped, tag = 'scratch operand']
  #allocation4 [shape = 'f32[8,8,512]{2,1,0:T(8,128)}', space=vmem, size = 0x20000, scoped, tag = 'scratch operand']
  #allocation5 [shape = 'f32[8,8,128]{2,1,0:T(8,128)}', space=vmem, size = 0x8000, scoped, tag = 'scratch operand']
  %s0 = inlined_call_operand.vmem [shape: f32[8,8,16], index: 0, kind: input, shape index: {}]
  %s1 = inlined_call_operand.vmem [shape: bf16[16,512], index: 1, kind: input, shape index: {}]
  %s2 = inlined_call_operand.vmem [shape: f32[1,512], index: 2, kind: input, shape index: {}]
  %s3 = inlined_call_operand.hbm [shape: bf16[128,512], index: 3, kind: input, shape index: {}]
  %s4 = inlined_call_operand.vmem [shape: bf16[128,128], index: 4, kind: input, shape index: {}]
  %s5 = inlined_call_operand.vmem [shape: f32[1,128], index: 5, kind: input, shape index: {}]
  %s6 = inlined_call_operand.vmem [shape: f32[8,8,128], index: 6, kind: output, shape index: {}]
  %s7 = sld [smem:[#allocation0]]
  $region42: #{_lambda_.1} parent=0
    _
  %s9 = ssub.s32 1, %s7
  %s10 = scalar_select 0, %s9, %s7
  $region1: #{_lambda_.1} parent=0
    #allocation6 [shape = 'u8[131072]{0}', space=vmem, size = 0x20000, scoped, tag = 'input window, operand 3, single buffered']
    #allocation7 [shape = 's32[1]{0}', space=sflag, size = 0x4, scoped, tag = 'scoped memory for _lambda_.1']
    %11 = vsyncpa [#allocation7], 0
    // Predicated region
    $region2: #{_lambda_.1} parent=1 // pred_check
      _
    $region3: #{_lambda_.1} parent=1 // pred_check_branch
      %13 = sbr.rel (0) target = $region5
    $region4: #{_lambda_.1} parent=1 // pred_region
      _
    $region5: #{_lambda_.1} parent=1 // pred_fallthru
      _
    // Predicated region
    $region6: #{_lambda_.1} parent=1 // pred_check
      _
    $region7: #{_lambda_.1} parent=1 // pred_check_branch
      %15 = sbr.rel (0) target = $region9
    $region8: #{_lambda_.1} parent=1 // pred_region
      _
    $region9: #{_lambda_.1} parent=1 // pred_fallthru
      _
    // Predicated region
    $region10: #{_lambda_.1} parent=1 // pred_check
      _
    $region11: #{_lambda_.1} parent=1 // pred_check_branch
      %17 = sbr.rel (0) target = $region13
    $region12: #{_lambda_.1} parent=1 // pred_region
      _
    $region13: #{_lambda_.1} parent=1 // pred_fallthru
      _
    // Predicated region
    $region14: #{_lambda_.1} parent=1 // pred_check
      _
    $region15: #{_lambda_.1} parent=1 // pred_check_branch
      %19 = sbr.rel (0) target = $region17
    $region16: #{_lambda_.1} parent=1 // pred_region
      %21 = vsyncadd [#allocation7], 0
      %s22 = sshll.u32 %s3, 4
      %s23 = int_to_ptr.hbm [resolvable:$true] %s22
      %s24 = sshll.u32 [#allocation6], 4
      %s25 = int_to_ptr.vmem [resolvable:$true] %s24
      %30 = dma.hbm_to_vmem [thread:$0]  %s23, 4096, %s25, [#allocation7], 256, 256, 16
    $region17: #{_lambda_.1} parent=1 // pred_fallthru
      _
    // Predicated region
    $region18: #{_lambda_.1} parent=1 // pred_check
      _
    $region19: #{_lambda_.1} parent=1 // pred_check_branch
      %32 = sbr.rel (0) target = $region21
    $region20: #{_lambda_.1} parent=1 // pred_region
      _
    $region21: #{_lambda_.1} parent=1 // pred_fallthru
      _
    // Predicated region
    $region22: #{_lambda_.1} parent=1 // pred_check
      _
    $region23: #{_lambda_.1} parent=1 // pred_check_branch
      %34 = sbr.rel (0) target = $region25
    $region24: #{_lambda_.1} parent=1 // pred_region
      _
    $region25: #{_lambda_.1} parent=1 // pred_fallthru
      _
    // Predicated region
    $region26: #{_lambda_.1} parent=1 // pred_check
      _
    $region27: #{_lambda_.1} parent=1 // pred_check_branch
      %36 = sbr.rel (0) target = $region29
    $region28: #{_lambda_.1} parent=1 // pred_region
      %38 = dma.done [#allocation7], 4096
    $region29: #{_lambda_.1} parent=1 // pred_fallthru
      _
    %p40 = scmp.eq.s32.totalorder 0, 0
    // Predicated region
    $region30: #{_lambda_.1} parent=1 // pred_check
      %p41 = pneg %p40
    $region31: #{_lambda_.1} parent=1 // pred_check_branch
      %43 = sbr.rel (%p41) target = $region33
    $region32: #{_lambda_.1} parent=1 // pred_region
      %44 = vst [vmem:[#allocation2] sm:$0xff] 0.0
      %45 = vst [vmem:[#allocation3] sm:$0xff] 0.0
    $region33: #{_lambda_.1} parent=1 // pred_fallthru
      _
    %v46 = vld [vmem:[%s0] sm:$0xff]
    %v47 = vld [vmem:[%s0 + $0x8] sm:$0xff]
    %v48 = vld [vmem:[%s0 + $0x10] sm:$0xff]
    %v49 = vld [vmem:[%s0 + $0x18] sm:$0xff]
    %v50 = vld [vmem:[%s0 + $0x20] sm:$0xff]
    %v51 = vld [vmem:[%s0 + $0x28] sm:$0xff]
    %v52 = vld [vmem:[%s0 + $0x30] sm:$0xff]
    %v53 = vld [vmem:[%s0 + $0x38] sm:$0xff]
    %v54 = vpack.c.bf16 %v47, %v46
    %v55 = vpack.c.bf16 %v49, %v48
    %v56 = vpack.c.bf16 %v51, %v50
    %v57 = vpack.c.bf16 %v53, %v52
    %v58 = vld [vmem:[%s1] sm:$0xff]
    %v59 = vld [vmem:[%s1 + $0x8] sm:$0xff]
    %v60 = vld [vmem:[%s1 + $0x10] sm:$0xff]
    %v61 = vld [vmem:[%s1 + $0x18] sm:$0xff]
    %v62 = vld [vmem:[%s2] sm:$0xf]
    %v64 = vperm.slane %v62, 0
    %v65 = vperm.slane %v62, 1
    %v66 = vperm.slane %v62, 2
    %v67 = vperm.slane %v62, 3
    %v76 = vunpack.c.l.b16 %v58
    %v77 = vunpack.c.h.b16 %v58
    %v78 = vunpack.c.l.b16 %v59
    %v79 = vunpack.c.h.b16 %v59
    %v80 = vunpack.c.l.b16 %v60
    %v81 = vunpack.c.h.b16 %v60
    %v82 = vunpack.c.l.b16 %v61
    %v83 = vunpack.c.h.b16 %v61
    %v84 = vpack.c.b16 %v80, %v76
    %v85 = vpack.c.b16 %v81, %v77
    %v86 = vpack.c.b16 %v82, %v78
    %v87 = vpack.c.b16 %v83, %v79
    %vm92 = vcmask 130048
    %v94 = vsel %vm92, %v54, 0
    %v97 = vsel %vm92, %v55, 0
    %v100 = vsel %vm92, %v56, 0
    %v103 = vsel %vm92, %v57, 0
    %105 = vmatpush.bf16.msra.mxu0 0
    %106 = vmatpush.bf16.msra.mxu0 0
    %107 = vmatpush.bf16.msra.mxu0 0
    %108 = vmatpush.bf16.msra.mxu0 0
    %109 = vmatpush.bf16.msra.mxu0 0
    %110 = vmatpush.bf16.msra.mxu0 0
    %111 = vmatpush.bf16.msra.mxu0 0
    %112 = vmatpush.bf16.msra.mxu0 %v84
    %113 = vmatmul.bf16.gmra.mxu0 %v94
    %v114 = vpop.f32.mrf.mxu0
    %v115 = vadd.f32 %v64, %v114
    %v116 = vpop.f32.mrf.mxu0
    %v117 = vadd.f32 %v64, %v116
    %118 = vmatmul.bf16.gmra.mxu0 %v97
    %v119 = vpop.f32.mrf.mxu0
    %v120 = vadd.f32 %v64, %v119
    %v121 = vpop.f32.mrf.mxu0
    %v122 = vadd.f32 %v64, %v121
    %123 = vmatmul.bf16.gmra.mxu0 %v100
    %v124 = vpop.f32.mrf.mxu0
    %v125 = vadd.f32 %v64, %v124
    %v126 = vpop.f32.mrf.mxu0
    %v127 = vadd.f32 %v64, %v126
    %128 = vmatmul.bf16.gmra.mxu0 %v103
    %v129 = vpop.f32.mrf.mxu0
    %v130 = vadd.f32 %v64, %v129
    %v131 = vpop.f32.mrf.mxu0
    %v132 = vadd.f32 %v64, %v131
    %133 = vdwg.mxu0
    %134 = vmatpush.bf16.msra.mxu0 0
    %135 = vmatpush.bf16.msra.mxu0 0
    %136 = vmatpush.bf16.msra.mxu0 0
    %137 = vmatpush.bf16.msra.mxu0 0
    %138 = vmatpush.bf16.msra.mxu0 0
    %139 = vmatpush.bf16.msra.mxu0 0
    %140 = vmatpush.bf16.msra.mxu0 0
    %141 = vmatpush.bf16.msra.mxu0 %v85
    %142 = vmatmul.bf16.gmra.mxu0 %v94
    %v143 = vpop.f32.mrf.mxu0
    %v144 = vadd.f32 %v65, %v143
    %v145 = vpop.f32.mrf.mxu0
    %v146 = vadd.f32 %v65, %v145
    %147 = vmatmul.bf16.gmra.mxu0 %v97
    %v148 = vpop.f32.mrf.mxu0
    %v149 = vadd.f32 %v65, %v148
    %v150 = vpop.f32.mrf.mxu0
    %v151 = vadd.f32 %v65, %v150
    %152 = vmatmul.bf16.gmra.mxu0 %v100
    %v153 = vpop.f32.mrf.mxu0
    %v154 = vadd.f32 %v65, %v153
    %v155 = vpop.f32.mrf.mxu0
    %v156 = vadd.f32 %v65, %v155
    %157 = vmatmul.bf16.gmra.mxu0 %v103
    %v158 = vpop.f32.mrf.mxu0
    %v159 = vadd.f32 %v65, %v158
    %v160 = vpop.f32.mrf.mxu0
    %v161 = vadd.f32 %v65, %v160
    %162 = vdwg.mxu0
    %163 = vmatpush.bf16.msra.mxu0 0
    %164 = vmatpush.bf16.msra.mxu0 0
    %165 = vmatpush.bf16.msra.mxu0 0
    %166 = vmatpush.bf16.msra.mxu0 0
    %167 = vmatpush.bf16.msra.mxu0 0
    %168 = vmatpush.bf16.msra.mxu0 0
    %169 = vmatpush.bf16.msra.mxu0 0
    %170 = vmatpush.bf16.msra.mxu0 %v86
    %171 = vmatmul.bf16.gmra.mxu0 %v94
    %v172 = vpop.f32.mrf.mxu0
    %v173 = vadd.f32 %v66, %v172
    %v174 = vpop.f32.mrf.mxu0
    %v175 = vadd.f32 %v66, %v174
    %176 = vmatmul.bf16.gmra.mxu0 %v97
    %v177 = vpop.f32.mrf.mxu0
    %v178 = vadd.f32 %v66, %v177
    %v179 = vpop.f32.mrf.mxu0
    %v180 = vadd.f32 %v66, %v179
    %181 = vmatmul.bf16.gmra.mxu0 %v100
    %v182 = vpop.f32.mrf.mxu0
    %v183 = vadd.f32 %v66, %v182
    %v184 = vpop.f32.mrf.mxu0
    %v185 = vadd.f32 %v66, %v184
    %186 = vmatmul.bf16.gmra.mxu0 %v103
    %v187 = vpop.f32.mrf.mxu0
    %v188 = vadd.f32 %v66, %v187
    %v189 = vpop.f32.mrf.mxu0
    %v190 = vadd.f32 %v66, %v189
    %191 = vdwg.mxu0
    %192 = vmatpush.bf16.msra.mxu0 0
    %193 = vmatpush.bf16.msra.mxu0 0
    %194 = vmatpush.bf16.msra.mxu0 0
    %195 = vmatpush.bf16.msra.mxu0 0
    %196 = vmatpush.bf16.msra.mxu0 0
    %197 = vmatpush.bf16.msra.mxu0 0
    %198 = vmatpush.bf16.msra.mxu0 0
    %199 = vmatpush.bf16.msra.mxu0 %v87
    %200 = vmatmul.bf16.gmra.mxu0 %v94
    %v201 = vpop.f32.mrf.mxu0
    %v202 = vadd.f32 %v67, %v201
    %v203 = vpop.f32.mrf.mxu0
    %v204 = vadd.f32 %v67, %v203
    %205 = vmatmul.bf16.gmra.mxu0 %v97
    %v206 = vpop.f32.mrf.mxu0
    %v207 = vadd.f32 %v67, %v206
    %v208 = vpop.f32.mrf.mxu0
    %v209 = vadd.f32 %v67, %v208
    %210 = vmatmul.bf16.gmra.mxu0 %v100
    %v211 = vpop.f32.mrf.mxu0
    %v212 = vadd.f32 %v67, %v211
    %v213 = vpop.f32.mrf.mxu0
    %v214 = vadd.f32 %v67, %v213
    %215 = vmatmul.bf16.gmra.mxu0 %v103
    %v216 = vpop.f32.mrf.mxu0
    %v217 = vadd.f32 %v67, %v216
    %v218 = vpop.f32.mrf.mxu0
    %v219 = vadd.f32 %v67, %v218
    %220 = vdwg.mxu0
    %221 = vst [vmem:[#allocation4] sm:$0xff] %v115
    %222 = vst [vmem:[#allocation4 + $0x8] sm:$0xff] %v144
    %223 = vst [vmem:[#allocation4 + $0x10] sm:$0xff] %v173
    %224 = vst [vmem:[#allocation4 + $0x18] sm:$0xff] %v202
    %225 = vst [vmem:[#allocation4 + $0x20] sm:$0xff] %v117
    %226 = vst [vmem:[#allocation4 + $0x28] sm:$0xff] %v146
    %227 = vst [vmem:[#allocation4 + $0x30] sm:$0xff] %v175
    %228 = vst [vmem:[#allocation4 + $0x38] sm:$0xff] %v204
    %229 = vst [vmem:[#allocation4 + $0x40] sm:$0xff] %v120
    %230 = vst [vmem:[#allocation4 + $0x48] sm:$0xff] %v149
    %231 = vst [vmem:[#allocation4 + $0x50] sm:$0xff] %v178
    %232 = vst [vmem:[#allocation4 + $0x58] sm:$0xff] %v207
    %233 = vst [vmem:[#allocation4 + $0x60] sm:$0xff] %v122
    %234 = vst [vmem:[#allocation4 + $0x68] sm:$0xff] %v151
    %235 = vst [vmem:[#allocation4 + $0x70] sm:$0xff] %v180
    %236 = vst [vmem:[#allocation4 + $0x78] sm:$0xff] %v209
    %237 = vst [vmem:[#allocation4 + $0x80] sm:$0xff] %v125
    %238 = vst [vmem:[#allocation4 + $0x88] sm:$0xff] %v154
    %239 = vst [vmem:[#allocation4 + $0x90] sm:$0xff] %v183
    %240 = vst [vmem:[#allocation4 + $0x98] sm:$0xff] %v212
    %241 = vst [vmem:[#allocation4 + $0xa0] sm:$0xff] %v127
    %242 = vst [vmem:[#allocation4 + $0xa8] sm:$0xff] %v156
    %243 = vst [vmem:[#allocation4 + $0xb0] sm:$0xff] %v185
    %244 = vst [vmem:[#allocation4 + $0xb8] sm:$0xff] %v214
    %245 = vst [vmem:[#allocation4 + $0xc0] sm:$0xff] %v130
    %246 = vst [vmem:[#allocation4 + $0xc8] sm:$0xff] %v159
    %247 = vst [vmem:[#allocation4 + $0xd0] sm:$0xff] %v188
    %248 = vst [vmem:[#allocation4 + $0xd8] sm:$0xff] %v217
    %249 = vst [vmem:[#allocation4 + $0xe0] sm:$0xff] %v132
    %250 = vst [vmem:[#allocation4 + $0xe8] sm:$0xff] %v161
    %251 = vst [vmem:[#allocation4 + $0xf0] sm:$0xff] %v190
    %252 = vst [vmem:[#allocation4 + $0xf8] sm:$0xff] %v219
    %v253 = vld [vmem:[#allocation6] sm:$0xff]
    %v254 = vld [vmem:[#allocation6 + $0x8] sm:$0xff]
    %v255 = vld [vmem:[#allocation6 + $0x10] sm:$0xff]
    %v256 = vld [vmem:[#allocation6 + $0x18] sm:$0xff]
    %v257 = vld [vmem:[#allocation6 + $0x20] sm:$0xff]
    %v258 = vld [vmem:[#allocation6 + $0x28] sm:$0xff]
    %v259 = vld [vmem:[#allocation6 + $0x30] sm:$0xff]
    %v260 = vld [vmem:[#allocation6 + $0x38] sm:$0xff]
    %v261 = vld [vmem:[#allocation6 + $0x40] sm:$0xff]
    %v262 = vld [vmem:[#allocation6 + $0x48] sm:$0xff]
    %v263 = vld [vmem:[#allocation6 + $0x50] sm:$0xff]
    %v264 = vld [vmem:[#allocation6 + $0x58] sm:$0xff]
    %v265 = vld [vmem:[#allocation6 + $0x60] sm:$0xff]
    %v266 = vld [vmem:[#allocation6 + $0x68] sm:$0xff]
    %v267 = vld [vmem:[#allocation6 + $0x70] sm:$0xff]
    %v268 = vld [vmem:[#allocation6 + $0x78] sm:$0xff]
    %v269 = vld [vmem:[#allocation6 + $0x80] sm:$0xff]
    %v270 = vld [vmem:[#allocation6 + $0x88] sm:$0xff]
    %v271 = vld [vmem:[#allocation6 + $0x90] sm:$0xff]
    %v272 = vld [vmem:[#allocation6 + $0x98] sm:$0xff]
    %v273 = vld [vmem:[#allocation6 + $0xa0] sm:$0xff]
    %v274 = vld [vmem:[#allocation6 + $0xa8] sm:$0xff]
    %v275 = vld [vmem:[#allocation6 + $0xb0] sm:$0xff]
    %v276 = vld [vmem:[#allocation6 + $0xb8] sm:$0xff]
    %v277 = vld [vmem:[#allocation6 + $0xc0] sm:$0xff]
    %v278 = vld [vmem:[#allocation6 + $0xc8] sm:$0xff]
    %v279 = vld [vmem:[#allocation6 + $0xd0] sm:$0xff]
    %v280 = vld [vmem:[#allocation6 + $0xd8] sm:$0xff]
    %v281 = vld [vmem:[#allocation6 + $0xe0] sm:$0xff]
    %v282 = vld [vmem:[#allocation6 + $0xe8] sm:$0xff]
    %v283 = vld [vmem:[#allocation6 + $0xf0] sm:$0xff]
    %v284 = vld [vmem:[#allocation6 + $0xf8] sm:$0xff]
    %v285 = vld [vmem:[#allocation2] sm:$0xff]
    %v286 = vld [vmem:[#allocation3] sm:$0xff]
    %v287 = vld [vmem:[#allocation4] ss:$8 sm:$0xf]
    %s288 = scalar_lea.vmem [#allocation4], 32
    %v289 = vld [vmem:[%s288] ss:$8 sm:$0xf]
    %s290 = scalar_lea.vmem [#allocation4], 64
    %v291 = vld [vmem:[%s290] ss:$8 sm:$0xf]
    %s292 = scalar_lea.vmem [#allocation4], 96
    %v293 = vld [vmem:[%s292] ss:$8 sm:$0xf]
    %s294 = scalar_lea.vmem [#allocation4], 128
    %v295 = vld [vmem:[%s294] ss:$8 sm:$0xf]
    %s296 = scalar_lea.vmem [#allocation4], 160
    %v297 = vld [vmem:[%s296] ss:$8 sm:$0xf]
    %s298 = scalar_lea.vmem [#allocation4], 192
    %v299 = vld [vmem:[%s298] ss:$8 sm:$0xf]
    %s300 = scalar_lea.vmem [#allocation4], 224
    %v301 = vld [vmem:[%s300] ss:$8 sm:$0xf]
    %v302 = vpack.c.bf16 %v285, %v285
    %v335 = vunpack.c.l.b16 %v253
    %v336 = vunpack.c.h.b16 %v253
    %v337 = vunpack.c.l.b16 %v254
    %v338 = vunpack.c.h.b16 %v254
    %v339 = vunpack.c.l.b16 %v255
    %v340 = vunpack.c.h.b16 %v255
    %v341 = vunpack.c.l.b16 %v256
    %v342 = vunpack.c.h.b16 %v256
    %v343 = vunpack.c.l.b16 %v257
    %v344 = vunpack.c.h.b16 %v257
    %v345 = vunpack.c.l.b16 %v258
    %v346 = vunpack.c.h.b16 %v258
    %v347 = vunpack.c.l.b16 %v259
    %v348 = vunpack.c.h.b16 %v259
    %v349 = vunpack.c.l.b16 %v260
    %v350 = vunpack.c.h.b16 %v260
    %v351 = vunpack.c.l.b16 %v261
    %v352 = vunpack.c.h.b16 %v261
    %v353 = vunpack.c.l.b16 %v262
    %v354 = vunpack.c.h.b16 %v262
    %v355 = vunpack.c.l.b16 %v263
    %v356 = vunpack.c.h.b16 %v263
    %v357 = vunpack.c.l.b16 %v264
    %v358 = vunpack.c.h.b16 %v264
    %v359 = vunpack.c.l.b16 %v265
    %v360 = vunpack.c.h.b16 %v265
    %v361 = vunpack.c.l.b16 %v266
    %v362 = vunpack.c.h.b16 %v266
    %v363 = vunpack.c.l.b16 %v267
    %v364 = vunpack.c.h.b16 %v267
    %v365 = vunpack.c.l.b16 %v268
    %v366 = vunpack.c.h.b16 %v268
    %v367 = vunpack.c.l.b16 %v269
    %v368 = vunpack.c.h.b16 %v269
    %v369 = vunpack.c.l.b16 %v270
    %v370 = vunpack.c.h.b16 %v270
    %v371 = vunpack.c.l.b16 %v271
    %v372 = vunpack.c.h.b16 %v271
    %v373 = vunpack.c.l.b16 %v272
    %v374 = vunpack.c.h.b16 %v272
    %v375 = vunpack.c.l.b16 %v273
    %v376 = vunpack.c.h.b16 %v273
    %v377 = vunpack.c.l.b16 %v274
    %v378 = vunpack.c.h.b16 %v274
    %v379 = vunpack.c.l.b16 %v275
    %v380 = vunpack.c.h.b16 %v275
    %v381 = vunpack.c.l.b16 %v276
    %v382 = vunpack.c.h.b16 %v276
    %v383 = vunpack.c.l.b16 %v277
    %v384 = vunpack.c.h.b16 %v277
    %v385 = vunpack.c.l.b16 %v278
    %v386 = vunpack.c.h.b16 %v278
    %v387 = vunpack.c.l.b16 %v279
    %v388 = vunpack.c.h.b16 %v279
    %v389 = vunpack.c.l.b16 %v280
    %v390 = vunpack.c.h.b16 %v280
    %v391 = vunpack.c.l.b16 %v281
    %v392 = vunpack.c.h.b16 %v281
    %v393 = vunpack.c.l.b16 %v282
    %v394 = vunpack.c.h.b16 %v282
    %v395 = vunpack.c.l.b16 %v283
    %v396 = vunpack.c.h.b16 %v283
    %v397 = vunpack.c.l.b16 %v284
    %v398 = vunpack.c.h.b16 %v284
    %v399 = vpack.c.b16 %v339, %v335
    %v400 = vpack.c.b16 %v340, %v336
    %v401 = vpack.c.b16 %v341, %v337
    %v402 = vpack.c.b16 %v342, %v338
    %v403 = vpack.c.b16 %v347, %v343
    %v404 = vpack.c.b16 %v348, %v344
    %v405 = vpack.c.b16 %v349, %v345
    %v406 = vpack.c.b16 %v350, %v346
    %v407 = vpack.c.b16 %v355, %v351
    %v408 = vpack.c.b16 %v356, %v352
    %v409 = vpack.c.b16 %v357, %v353
    %v410 = vpack.c.b16 %v358, %v354
    %v411 = vpack.c.b16 %v363, %v359
    %v412 = vpack.c.b16 %v364, %v360
    %v413 = vpack.c.b16 %v365, %v361
    %v414 = vpack.c.b16 %v366, %v362
    %v415 = vpack.c.b16 %v371, %v367
    %v416 = vpack.c.b16 %v372, %v368
    %v417 = vpack.c.b16 %v373, %v369
    %v418 = vpack.c.b16 %v374, %v370
    %v419 = vpack.c.b16 %v379, %v375
    %v420 = vpack.c.b16 %v380, %v376
    %v421 = vpack.c.b16 %v381, %v377
    %v422 = vpack.c.b16 %v382, %v378
    %v423 = vpack.c.b16 %v387, %v383
    %v424 = vpack.c.b16 %v388, %v384
    %v425 = vpack.c.b16 %v389, %v385
    %v426 = vpack.c.b16 %v390, %v386
    %v427 = vpack.c.b16 %v395, %v391
    %v428 = vpack.c.b16 %v396, %v392
    %v429 = vpack.c.b16 %v397, %v393
    %v430 = vpack.c.b16 %v398, %v394
    %463 = vmatpush.bf16.msra.mxu0 %v427
    %464 = vmatpush.bf16.msra.mxu0 %v423
    %465 = vmatpush.bf16.msra.mxu0 %v419
    %466 = vmatpush.bf16.msra.mxu0 %v415
    %467 = vmatpush.bf16.msra.mxu0 %v411
    %468 = vmatpush.bf16.msra.mxu0 %v407
    %469 = vmatpush.bf16.msra.mxu0 %v403
    %470 = vmatpush.bf16.msra.mxu0 %v399
    %471 = vmatmul.bf16.gmra.mxu0 %v302
    %v472 = vpop.f32.mrf.mxu0
    %v473 = vadd.f32 0.0, %v472
    %v474 = vpop.f32.mrf.mxu0
    %475 = vdwg.mxu0
    %476 = vmatpush.bf16.msra.mxu0 %v428
    %477 = vmatpush.bf16.msra.mxu0 %v424
    %478 = vmatpush.bf16.msra.mxu0 %v420
    %479 = vmatpush.bf16.msra.mxu0 %v416
    %480 = vmatpush.bf16.msra.mxu0 %v412
    %481 = vmatpush.bf16.msra.mxu0 %v408
    %482 = vmatpush.bf16.msra.mxu0 %v404
    %483 = vmatpush.bf16.msra.mxu0 %v400
    %484 = vmatmul.bf16.gmra.mxu0 %v302
    %v485 = vpop.f32.mrf.mxu0
    %v486 = vadd.f32 0.0, %v485
    %v487 = vpop.f32.mrf.mxu0
    %488 = vdwg.mxu0
    %489 = vmatpush.bf16.msra.mxu0 %v429
    %490 = vmatpush.bf16.msra.mxu0 %v425
    %491 = vmatpush.bf16.msra.mxu0 %v421
    %492 = vmatpush.bf16.msra.mxu0 %v417
    %493 = vmatpush.bf16.msra.mxu0 %v413
    %494 = vmatpush.bf16.msra.mxu0 %v409
    %495 = vmatpush.bf16.msra.mxu0 %v405
    %496 = vmatpush.bf16.msra.mxu0 %v401
    %497 = vmatmul.bf16.gmra.mxu0 %v302
    %v498 = vpop.f32.mrf.mxu0
    %v499 = vadd.f32 0.0, %v498
    %v500 = vpop.f32.mrf.mxu0
    %501 = vdwg.mxu0
    %502 = vmatpush.bf16.msra.mxu0 %v430
    %503 = vmatpush.bf16.msra.mxu0 %v426
    %504 = vmatpush.bf16.msra.mxu0 %v422
    %505 = vmatpush.bf16.msra.mxu0 %v418
    %506 = vmatpush.bf16.msra.mxu0 %v414
    %507 = vmatpush.bf16.msra.mxu0 %v410
    %508 = vmatpush.bf16.msra.mxu0 %v406
    %509 = vmatpush.bf16.msra.mxu0 %v402
    %510 = vmatmul.bf16.gmra.mxu0 %v302
    %v511 = vpop.f32.mrf.mxu0
    %v512 = vadd.f32 0.0, %v511
    %v513 = vpop.f32.mrf.mxu0
    %514 = vdwg.mxu0
    %v519 = vrot.slane %v486, 7
    %v520 = vrot.slane %v499, 6
    %v521 = vrot.slane %v512, 5
    %vm522 = vcmask 1040384
    %v523 = vsel %vm522, %v473, %v519
    %vm524 = vcmask 1042434
    %v525 = vsel %vm524, %v520, %v521
    %vm526 = vcmask 1041408
    %v527 = vsel %vm526, %v523, %v525
    %vm528 = vcmask 1041409
    %v529 = vsel %vm528, %v473, %v519
    %vm530 = vcmask 1043459
    %v531 = vsel %vm530, %v520, %v521
    %vm532 = vcmask 1042433
    %v533 = vsel %vm532, %v529, %v531
    %v534 = vrot.slane %v533, 1
    %v535 = vsel %vm524, %v473, %v519
    %vm536 = vcmask 1044484
    %v537 = vsel %vm536, %v520, %v521
    %vm538 = vcmask 1043458
    %v539 = vsel %vm538, %v535, %v537
    %v540 = vrot.slane %v539, 2
    %v541 = vsel %vm530, %v473, %v519
    %vm542 = vcmask 1045509
    %v543 = vsel %vm542, %v520, %v521
    %vm544 = vcmask 1044483
    %v545 = vsel %vm544, %v541, %v543
    %v546 = vrot.slane %v545, 3
    %v547 = vsel %vm536, %v473, %v519
    %vm548 = vcmask 1046534
    %v549 = vsel %vm548, %v520, %v521
    %vm550 = vcmask 1045508
    %v551 = vsel %vm550, %v547, %v549
    %v552 = vrot.slane %v551, 4
    %v553 = vsel %vm542, %v473, %v519
    %vm554 = vcmask 1046528
    %v555 = vsel %vm554, %v521, %v520
    %vm556 = vcmask 1046533
    %v557 = vsel %vm556, %v553, %v555
    %v558 = vrot.slane %v557, 5
    %v559 = vsel %vm548, %v473, %v519
    %v560 = vsel %vm522, %v520, %v521
    %vm561 = vcmask 1045504
    %v562 = vsel %vm561, %v560, %v559
    %v563 = vrot.slane %v562, 6
    %v564 = vsel %vm554, %v519, %v473
    %v565 = vsel %vm528, %v520, %v521
    %vm566 = vcmask 1046529
    %v567 = vsel %vm566, %v565, %v564
    %v568 = vrot.slane %v567, 7
    %v577 = vadd.f32 %v287, %v527
    %v578 = vadd.f32 %v289, %v534
    %v579 = vadd.f32 %v291, %v540
    %v580 = vadd.f32 %v293, %v546
    %v581 = vadd.f32 %v295, %v552
    %v582 = vadd.f32 %v297, %v558
    %v583 = vadd.f32 %v299, %v563
    %v584 = vadd.f32 %v301, %v568
    %v585 = vxor.u32 %v577, 2147483648
    %v586 = vxor.u32 %v578, 2147483648
    %v587 = vxor.u32 %v579, 2147483648
    %v588 = vxor.u32 %v580, 2147483648
    %v589 = vxor.u32 %v581, 2147483648
    %v590 = vxor.u32 %v582, 2147483648
    %v591 = vxor.u32 %v583, 2147483648
    %v592 = vxor.u32 %v584, 2147483648
    %v593 = vmul.f32 %v585, 1.442695
    %v594 = vpow.pop %v593
    %v595 = vmul.f32 %v586, 1.442695
    %v596 = vpow.pop %v595
    %v597 = vmul.f32 %v587, 1.442695
    %v598 = vpow.pop %v597
    %v599 = vmul.f32 %v588, 1.442695
    %v600 = vpow.pop %v599
    %v601 = vmul.f32 %v589, 1.442695
    %v602 = vpow.pop %v601
    %v603 = vmul.f32 %v590, 1.442695
    %v604 = vpow.pop %v603
    %v605 = vmul.f32 %v591, 1.442695
    %v606 = vpow.pop %v605
    %v607 = vmul.f32 %v592, 1.442695
    %v608 = vpow.pop %v607
    %v609 = vadd.f32 %v594, 1.0
    %v610 = vadd.f32 %v596, 1.0
    %v611 = vadd.f32 %v598, 1.0
    %v612 = vadd.f32 %v600, 1.0
    %v613 = vadd.f32 %v602, 1.0
    %v614 = vadd.f32 %v604, 1.0
    %v615 = vadd.f32 %v606, 1.0
    %v616 = vadd.f32 %v608, 1.0
    %v617 = vrcp.pop %v609
    %v618 = vmul.f32 %v609, %v617
    %v619 = vsub.f32 1.0, %v618
    %v620 = vmul.f32 %v617, %v619
    %v621 = vadd.f32 %v617, %v620
    %vm622 = vweird.f32 %v609
    %vm623 = vweird.f32 %v617
    %vm624 = vmor %vm622, %vm623
    %v625 = vsel %vm624, %v617, %v621
    %v626 = vand.u32 2147483647, %v609
    %vm627 = vcmp.eq.f32.partialorder %v626, 8.507059e+37
    %v628 = vand.u32 %v609, 2147483648
    %v629 = vor.u32 1.1754944e-38, %v628
    %v630 = vsel %vm627, %v629, %v625
    %v631 = vmul.f32 1.0, %v630
    %v632 = vrcp.pop %v610
    %v633 = vmul.f32 %v610, %v632
    %v634 = vsub.f32 1.0, %v633
    %v635 = vmul.f32 %v632, %v634
    %v636 = vadd.f32 %v632, %v635
    %vm637 = vweird.f32 %v610
    %vm638 = vweird.f32 %v632
    %vm639 = vmor %vm637, %vm638
    %v640 = vsel %vm639, %v632, %v636
    %v641 = vand.u32 2147483647, %v610
    %vm642 = vcmp.eq.f32.partialorder %v641, 8.507059e+37
    %v643 = vand.u32 %v610, 2147483648
    %v644 = vor.u32 1.1754944e-38, %v643
    %v645 = vsel %vm642, %v644, %v640
    %v646 = vmul.f32 1.0, %v645
    %v647 = vrcp.pop %v611
    %v648 = vmul.f32 %v611, %v647
    %v649 = vsub.f32 1.0, %v648
    %v650 = vmul.f32 %v647, %v649
    %v651 = vadd.f32 %v647, %v650
    %vm652 = vweird.f32 %v611
    %vm653 = vweird.f32 %v647
    %vm654 = vmor %vm652, %vm653
    %v655 = vsel %vm654, %v647, %v651
    %v656 = vand.u32 2147483647, %v611
    %vm657 = vcmp.eq.f32.partialorder %v656, 8.507059e+37
    %v658 = vand.u32 %v611, 2147483648
    %v659 = vor.u32 1.1754944e-38, %v658
    %v660 = vsel %vm657, %v659, %v655
    %v661 = vmul.f32 1.0, %v660
    %v662 = vrcp.pop %v612
    %v663 = vmul.f32 %v612, %v662
    %v664 = vsub.f32 1.0, %v663
    %v665 = vmul.f32 %v662, %v664
    %v666 = vadd.f32 %v662, %v665
    %vm667 = vweird.f32 %v612
    %vm668 = vweird.f32 %v662
    %vm669 = vmor %vm667, %vm668
    %v670 = vsel %vm669, %v662, %v666
    %v671 = vand.u32 2147483647, %v612
    %vm672 = vcmp.eq.f32.partialorder %v671, 8.507059e+37
    %v673 = vand.u32 %v612, 2147483648
    %v674 = vor.u32 1.1754944e-38, %v673
    %v675 = vsel %vm672, %v674, %v670
    %v676 = vmul.f32 1.0, %v675
    %v677 = vrcp.pop %v613
    %v678 = vmul.f32 %v613, %v677
    %v679 = vsub.f32 1.0, %v678
    %v680 = vmul.f32 %v677, %v679
    %v681 = vadd.f32 %v677, %v680
    %vm682 = vweird.f32 %v613
    %vm683 = vweird.f32 %v677
    %vm684 = vmor %vm682, %vm683
    %v685 = vsel %vm684, %v677, %v681
    %v686 = vand.u32 2147483647, %v613
    %vm687 = vcmp.eq.f32.partialorder %v686, 8.507059e+37
    %v688 = vand.u32 %v613, 2147483648
    %v689 = vor.u32 1.1754944e-38, %v688
    %v690 = vsel %vm687, %v689, %v685
    %v691 = vmul.f32 1.0, %v690
    %v692 = vrcp.pop %v614
    %v693 = vmul.f32 %v614, %v692
    %v694 = vsub.f32 1.0, %v693
    %v695 = vmul.f32 %v692, %v694
    %v696 = vadd.f32 %v692, %v695
    %vm697 = vweird.f32 %v614
    %vm698 = vweird.f32 %v692
    %vm699 = vmor %vm697, %vm698
    %v700 = vsel %vm699, %v692, %v696
    %v701 = vand.u32 2147483647, %v614
    %vm702 = vcmp.eq.f32.partialorder %v701, 8.507059e+37
    %v703 = vand.u32 %v614, 2147483648
    %v704 = vor.u32 1.1754944e-38, %v703
    %v705 = vsel %vm702, %v704, %v700
    %v706 = vmul.f32 1.0, %v705
    %v707 = vrcp.pop %v615
    %v708 = vmul.f32 %v615, %v707
    %v709 = vsub.f32 1.0, %v708
    %v710 = vmul.f32 %v707, %v709
    %v711 = vadd.f32 %v707, %v710
    %vm712 = vweird.f32 %v615
    %vm713 = vweird.f32 %v707
    %vm714 = vmor %vm712, %vm713
    %v715 = vsel %vm714, %v707, %v711
    %v716 = vand.u32 2147483647, %v615
    %vm717 = vcmp.eq.f32.partialorder %v716, 8.507059e+37
    %v718 = vand.u32 %v615, 2147483648
    %v719 = vor.u32 1.1754944e-38, %v718
    %v720 = vsel %vm717, %v719, %v715
    %v721 = vmul.f32 1.0, %v720
    %v722 = vrcp.pop %v616
    %v723 = vmul.f32 %v616, %v722
    %v724 = vsub.f32 1.0, %v723
    %v725 = vmul.f32 %v722, %v724
    %v726 = vadd.f32 %v722, %v725
    %vm727 = vweird.f32 %v616
    %vm728 = vweird.f32 %v722
    %vm729 = vmor %vm727, %vm728
    %v730 = vsel %vm729, %v722, %v726
    %v731 = vand.u32 2147483647, %v616
    %vm732 = vcmp.eq.f32.partialorder %v731, 8.507059e+37
    %v733 = vand.u32 %v616, 2147483648
    %v734 = vor.u32 1.1754944e-38, %v733
    %v735 = vsel %vm732, %v734, %v730
    %v736 = vmul.f32 1.0, %v735
    %v745 = vrot.slane %v577, 1
    %v746 = vrot.slane %v578, 1
    %v747 = vrot.slane %v579, 1
    %v748 = vrot.slane %v580, 1
    %v749 = vrot.slane %v581, 1
    %v750 = vrot.slane %v582, 1
    %v751 = vrot.slane %v583, 1
    %v752 = vrot.slane %v584, 1
    %v761 = vxor.u32 %v745, 2147483648
    %v762 = vxor.u32 %v746, 2147483648
    %v763 = vxor.u32 %v747, 2147483648
    %v764 = vxor.u32 %v748, 2147483648
    %v765 = vxor.u32 %v749, 2147483648
    %v766 = vxor.u32 %v750, 2147483648
    %v767 = vxor.u32 %v751, 2147483648
    %v768 = vxor.u32 %v752, 2147483648
    %v769 = vmul.f32 %v761, 1.442695
    %v770 = vpow.pop %v769
    %v771 = vmul.f32 %v762, 1.442695
    %v772 = vpow.pop %v771
    %v773 = vmul.f32 %v763, 1.442695
    %v774 = vpow.pop %v773
    %v775 = vmul.f32 %v764, 1.442695
    %v776 = vpow.pop %v775
    %v777 = vmul.f32 %v765, 1.442695
    %v778 = vpow.pop %v777
    %v779 = vmul.f32 %v766, 1.442695
    %v780 = vpow.pop %v779
    %v781 = vmul.f32 %v767, 1.442695
    %v782 = vpow.pop %v781
    %v783 = vmul.f32 %v768, 1.442695
    %v784 = vpow.pop %v783
    %v785 = vadd.f32 %v770, 1.0
    %v786 = vadd.f32 %v772, 1.0
    %v787 = vadd.f32 %v774, 1.0
    %v788 = vadd.f32 %v776, 1.0
    %v789 = vadd.f32 %v778, 1.0
    %v790 = vadd.f32 %v780, 1.0
    %v791 = vadd.f32 %v782, 1.0
    %v792 = vadd.f32 %v784, 1.0
    %v793 = vrcp.pop %v785
    %v794 = vmul.f32 %v785, %v793
    %v795 = vsub.f32 1.0, %v794
    %v796 = vmul.f32 %v793, %v795
    %v797 = vadd.f32 %v793, %v796
    %vm798 = vweird.f32 %v785
    %vm799 = vweird.f32 %v793
    %vm800 = vmor %vm798, %vm799
    %v801 = vsel %vm800, %v793, %v797
    %v802 = vand.u32 2147483647, %v785
    %vm803 = vcmp.eq.f32.partialorder %v802, 8.507059e+37
    %v804 = vand.u32 %v785, 2147483648
    %v805 = vor.u32 1.1754944e-38, %v804
    %v806 = vsel %vm803, %v805, %v801
    %v807 = vmul.f32 1.0, %v806
    %v808 = vrcp.pop %v786
    %v809 = vmul.f32 %v786, %v808
    %v810 = vsub.f32 1.0, %v809
    %v811 = vmul.f32 %v808, %v810
    %v812 = vadd.f32 %v808, %v811
    %vm813 = vweird.f32 %v786
    %vm814 = vweird.f32 %v808
    %vm815 = vmor %vm813, %vm814
    %v816 = vsel %vm815, %v808, %v812
    %v817 = vand.u32 2147483647, %v786
    %vm818 = vcmp.eq.f32.partialorder %v817, 8.507059e+37
    %v819 = vand.u32 %v786, 2147483648
    %v820 = vor.u32 1.1754944e-38, %v819
    %v821 = vsel %vm818, %v820, %v816
    %v822 = vmul.f32 1.0, %v821
    %v823 = vrcp.pop %v787
    %v824 = vmul.f32 %v787, %v823
    %v825 = vsub.f32 1.0, %v824
    %v826 = vmul.f32 %v823, %v825
    %v827 = vadd.f32 %v823, %v826
    %vm828 = vweird.f32 %v787
    %vm829 = vweird.f32 %v823
    %vm830 = vmor %vm828, %vm829
    %v831 = vsel %vm830, %v823, %v827
    %v832 = vand.u32 2147483647, %v787
    %vm833 = vcmp.eq.f32.partialorder %v832, 8.507059e+37
    %v834 = vand.u32 %v787, 2147483648
    %v835 = vor.u32 1.1754944e-38, %v834
    %v836 = vsel %vm833, %v835, %v831
    %v837 = vmul.f32 1.0, %v836
    %v838 = vrcp.pop %v788
    %v839 = vmul.f32 %v788, %v838
    %v840 = vsub.f32 1.0, %v839
    %v841 = vmul.f32 %v838, %v840
    %v842 = vadd.f32 %v838, %v841
    %vm843 = vweird.f32 %v788
    %vm844 = vweird.f32 %v838
    %vm845 = vmor %vm843, %vm844
    %v846 = vsel %vm845, %v838, %v842
    %v847 = vand.u32 2147483647, %v788
    %vm848 = vcmp.eq.f32.partialorder %v847, 8.507059e+37
    %v849 = vand.u32 %v788, 2147483648
    %v850 = vor.u32 1.1754944e-38, %v849
    %v851 = vsel %vm848, %v850, %v846
    %v852 = vmul.f32 1.0, %v851
    %v853 = vrcp.pop %v789
    %v854 = vmul.f32 %v789, %v853
    %v855 = vsub.f32 1.0, %v854
    %v856 = vmul.f32 %v853, %v855
    %v857 = vadd.f32 %v853, %v856
    %vm858 = vweird.f32 %v789
    %vm859 = vweird.f32 %v853
    %vm860 = vmor %vm858, %vm859
    %v861 = vsel %vm860, %v853, %v857
    %v862 = vand.u32 2147483647, %v789
    %vm863 = vcmp.eq.f32.partialorder %v862, 8.507059e+37
    %v864 = vand.u32 %v789, 2147483648
    %v865 = vor.u32 1.1754944e-38, %v864
    %v866 = vsel %vm863, %v865, %v861
    %v867 = vmul.f32 1.0, %v866
    %v868 = vrcp.pop %v790
    %v869 = vmul.f32 %v790, %v868
    %v870 = vsub.f32 1.0, %v869
    %v871 = vmul.f32 %v868, %v870
    %v872 = vadd.f32 %v868, %v871
    %vm873 = vweird.f32 %v790
    %vm874 = vweird.f32 %v868
    %vm875 = vmor %vm873, %vm874
    %v876 = vsel %vm875, %v868, %v872
    %v877 = vand.u32 2147483647, %v790
    %vm878 = vcmp.eq.f32.partialorder %v877, 8.507059e+37
    %v879 = vand.u32 %v790, 2147483648
    %v880 = vor.u32 1.1754944e-38, %v879
    %v881 = vsel %vm878, %v880, %v876
    %v882 = vmul.f32 1.0, %v881
    %v883 = vrcp.pop %v791
    %v884 = vmul.f32 %v791, %v883
    %v885 = vsub.f32 1.0, %v884
    %v886 = vmul.f32 %v883, %v885
    %v887 = vadd.f32 %v883, %v886
    %vm888 = vweird.f32 %v791
    %vm889 = vweird.f32 %v883
    %vm890 = vmor %vm888, %vm889
    %v891 = vsel %vm890, %v883, %v887
    %v892 = vand.u32 2147483647, %v791
    %vm893 = vcmp.eq.f32.partialorder %v892, 8.507059e+37
    %v894 = vand.u32 %v791, 2147483648
    %v895 = vor.u32 1.1754944e-38, %v894
    %v896 = vsel %vm893, %v895, %v891
    %v897 = vmul.f32 1.0, %v896
    %v898 = vrcp.pop %v792
    %v899 = vmul.f32 %v792, %v898
    %v900 = vsub.f32 1.0, %v899
    %v901 = vmul.f32 %v898, %v900
    %v902 = vadd.f32 %v898, %v901
    %vm903 = vweird.f32 %v792
    %vm904 = vweird.f32 %v898
    %vm905 = vmor %vm903, %vm904
    %v906 = vsel %vm905, %v898, %v902
    %v907 = vand.u32 2147483647, %v792
    %vm908 = vcmp.eq.f32.partialorder %v907, 8.507059e+37
    %v909 = vand.u32 %v792, 2147483648
    %v910 = vor.u32 1.1754944e-38, %v909
    %v911 = vsel %vm908, %v910, %v906
    %v912 = vmul.f32 1.0, %v911
    %v913 = vrot.slane %v577, 2
    %v914 = vrot.slane %v578, 2
    %v915 = vrot.slane %v579, 2
    %v916 = vrot.slane %v580, 2
    %v917 = vrot.slane %v581, 2
    %v918 = vrot.slane %v582, 2
    %v919 = vrot.slane %v583, 2
    %v920 = vrot.slane %v584, 2
    %v929 = vtanh.pop %v913
    %v930 = vtanh.pop %v914
    %v931 = vtanh.pop %v915
    %v932 = vtanh.pop %v916
    %v933 = vtanh.pop %v917
    %v934 = vtanh.pop %v918
    %v935 = vtanh.pop %v919
    %v936 = vtanh.pop %v920
    %v937 = vrot.slane %v577, 3
    %v938 = vrot.slane %v578, 3
    %v939 = vrot.slane %v579, 3
    %v940 = vrot.slane %v580, 3
    %v941 = vrot.slane %v581, 3
    %v942 = vrot.slane %v582, 3
    %v943 = vrot.slane %v583, 3
    %v944 = vrot.slane %v584, 3
    %v953 = vxor.u32 %v937, 2147483648
    %v954 = vxor.u32 %v938, 2147483648
    %v955 = vxor.u32 %v939, 2147483648
    %v956 = vxor.u32 %v940, 2147483648
    %v957 = vxor.u32 %v941, 2147483648
    %v958 = vxor.u32 %v942, 2147483648
    %v959 = vxor.u32 %v943, 2147483648
    %v960 = vxor.u32 %v944, 2147483648
    %v961 = vmul.f32 %v953, 1.442695
    %v962 = vpow.pop %v961
    %v963 = vmul.f32 %v954, 1.442695
    %v964 = vpow.pop %v963
    %v965 = vmul.f32 %v955, 1.442695
    %v966 = vpow.pop %v965
    %v967 = vmul.f32 %v956, 1.442695
    %v968 = vpow.pop %v967
    %v969 = vmul.f32 %v957, 1.442695
    %v970 = vpow.pop %v969
    %v971 = vmul.f32 %v958, 1.442695
    %v972 = vpow.pop %v971
    %v973 = vmul.f32 %v959, 1.442695
    %v974 = vpow.pop %v973
    %v975 = vmul.f32 %v960, 1.442695
    %v976 = vpow.pop %v975
    %v977 = vadd.f32 %v962, 1.0
    %v978 = vadd.f32 %v964, 1.0
    %v979 = vadd.f32 %v966, 1.0
    %v980 = vadd.f32 %v968, 1.0
    %v981 = vadd.f32 %v970, 1.0
    %v982 = vadd.f32 %v972, 1.0
    %v983 = vadd.f32 %v974, 1.0
    %v984 = vadd.f32 %v976, 1.0
    %v985 = vrcp.pop %v977
    %v986 = vmul.f32 %v977, %v985
    %v987 = vsub.f32 1.0, %v986
    %v988 = vmul.f32 %v985, %v987
    %v989 = vadd.f32 %v985, %v988
    %vm990 = vweird.f32 %v977
    %vm991 = vweird.f32 %v985
    %vm992 = vmor %vm990, %vm991
    %v993 = vsel %vm992, %v985, %v989
    %v994 = vand.u32 2147483647, %v977
    %vm995 = vcmp.eq.f32.partialorder %v994, 8.507059e+37
    %v996 = vand.u32 %v977, 2147483648
    %v997 = vor.u32 1.1754944e-38, %v996
    %v998 = vsel %vm995, %v997, %v993
    %v999 = vmul.f32 1.0, %v998
    %v1000 = vrcp.pop %v978
    %v1001 = vmul.f32 %v978, %v1000
    %v1002 = vsub.f32 1.0, %v1001
    %v1003 = vmul.f32 %v1000, %v1002
    %v1004 = vadd.f32 %v1000, %v1003
    %vm1005 = vweird.f32 %v978
    %vm1006 = vweird.f32 %v1000
    %vm1007 = vmor %vm1005, %vm1006
    %v1008 = vsel %vm1007, %v1000, %v1004
    %v1009 = vand.u32 2147483647, %v978
    %vm1010 = vcmp.eq.f32.partialorder %v1009, 8.507059e+37
    %v1011 = vand.u32 %v978, 2147483648
    %v1012 = vor.u32 1.1754944e-38, %v1011
    %v1013 = vsel %vm1010, %v1012, %v1008
    %v1014 = vmul.f32 1.0, %v1013
    %v1015 = vrcp.pop %v979
    %v1016 = vmul.f32 %v979, %v1015
    %v1017 = vsub.f32 1.0, %v1016
    %v1018 = vmul.f32 %v1015, %v1017
    %v1019 = vadd.f32 %v1015, %v1018
    %vm1020 = vweird.f32 %v979
    %vm1021 = vweird.f32 %v1015
    %vm1022 = vmor %vm1020, %vm1021
    %v1023 = vsel %vm1022, %v1015, %v1019
    %v1024 = vand.u32 2147483647, %v979
    %vm1025 = vcmp.eq.f32.partialorder %v1024, 8.507059e+37
    %v1026 = vand.u32 %v979, 2147483648
    %v1027 = vor.u32 1.1754944e-38, %v1026
    %v1028 = vsel %vm1025, %v1027, %v1023
    %v1029 = vmul.f32 1.0, %v1028
    %v1030 = vrcp.pop %v980
    %v1031 = vmul.f32 %v980, %v1030
    %v1032 = vsub.f32 1.0, %v1031
    %v1033 = vmul.f32 %v1030, %v1032
    %v1034 = vadd.f32 %v1030, %v1033
    %vm1035 = vweird.f32 %v980
    %vm1036 = vweird.f32 %v1030
    %vm1037 = vmor %vm1035, %vm1036
    %v1038 = vsel %vm1037, %v1030, %v1034
    %v1039 = vand.u32 2147483647, %v980
    %vm1040 = vcmp.eq.f32.partialorder %v1039, 8.507059e+37
    %v1041 = vand.u32 %v980, 2147483648
    %v1042 = vor.u32 1.1754944e-38, %v1041
    %v1043 = vsel %vm1040, %v1042, %v1038
    %v1044 = vmul.f32 1.0, %v1043
    %v1045 = vrcp.pop %v981
    %v1046 = vmul.f32 %v981, %v1045
    %v1047 = vsub.f32 1.0, %v1046
    %v1048 = vmul.f32 %v1045, %v1047
    %v1049 = vadd.f32 %v1045, %v1048
    %vm1050 = vweird.f32 %v981
    %vm1051 = vweird.f32 %v1045
    %vm1052 = vmor %vm1050, %vm1051
    %v1053 = vsel %vm1052, %v1045, %v1049
    %v1054 = vand.u32 2147483647, %v981
    %vm1055 = vcmp.eq.f32.partialorder %v1054, 8.507059e+37
    %v1056 = vand.u32 %v981, 2147483648
    %v1057 = vor.u32 1.1754944e-38, %v1056
    %v1058 = vsel %vm1055, %v1057, %v1053
    %v1059 = vmul.f32 1.0, %v1058
    %v1060 = vrcp.pop %v982
    %v1061 = vmul.f32 %v982, %v1060
    %v1062 = vsub.f32 1.0, %v1061
    %v1063 = vmul.f32 %v1060, %v1062
    %v1064 = vadd.f32 %v1060, %v1063
    %vm1065 = vweird.f32 %v982
    %vm1066 = vweird.f32 %v1060
    %vm1067 = vmor %vm1065, %vm1066
    %v1068 = vsel %vm1067, %v1060, %v1064
    %v1069 = vand.u32 2147483647, %v982
    %vm1070 = vcmp.eq.f32.partialorder %v1069, 8.507059e+37
    %v1071 = vand.u32 %v982, 2147483648
    %v1072 = vor.u32 1.1754944e-38, %v1071
    %v1073 = vsel %vm1070, %v1072, %v1068
    %v1074 = vmul.f32 1.0, %v1073
    %v1075 = vrcp.pop %v983
    %v1076 = vmul.f32 %v983, %v1075
    %v1077 = vsub.f32 1.0, %v1076
    %v1078 = vmul.f32 %v1075, %v1077
    %v1079 = vadd.f32 %v1075, %v1078
    %vm1080 = vweird.f32 %v983
    %vm1081 = vweird.f32 %v1075
    %vm1082 = vmor %vm1080, %vm1081
    %v1083 = vsel %vm1082, %v1075, %v1079
    %v1084 = vand.u32 2147483647, %v983
    %vm1085 = vcmp.eq.f32.partialorder %v1084, 8.507059e+37
    %v1086 = vand.u32 %v983, 2147483648
    %v1087 = vor.u32 1.1754944e-38, %v1086
    %v1088 = vsel %vm1085, %v1087, %v1083
    %v1089 = vmul.f32 1.0, %v1088
    %v1090 = vrcp.pop %v984
    %v1091 = vmul.f32 %v984, %v1090
    %v1092 = vsub.f32 1.0, %v1091
    %v1093 = vmul.f32 %v1090, %v1092
    %v1094 = vadd.f32 %v1090, %v1093
    %vm1095 = vweird.f32 %v984
    %vm1096 = vweird.f32 %v1090
    %vm1097 = vmor %vm1095, %vm1096
    %v1098 = vsel %vm1097, %v1090, %v1094
    %v1099 = vand.u32 2147483647, %v984
    %vm1100 = vcmp.eq.f32.partialorder %v1099, 8.507059e+37
    %v1101 = vand.u32 %v984, 2147483648
    %v1102 = vor.u32 1.1754944e-38, %v1101
    %v1103 = vsel %vm1100, %v1102, %v1098
    %v1104 = vmul.f32 1.0, %v1103
    %v1106 = vrot.slane %v286, 1
    %v1107 = vrot.slane %v286, 2
    %v1108 = vrot.slane %v286, 3
    %v1109 = vrot.slane %v286, 4
    %v1110 = vrot.slane %v286, 5
    %v1111 = vrot.slane %v286, 6
    %v1112 = vrot.slane %v286, 7
    %v1120 = vmul.f32 %v807, %v286
    %v1121 = vmul.f32 %v822, %v1106
    %v1122 = vmul.f32 %v837, %v1107
    %v1123 = vmul.f32 %v852, %v1108
    %v1124 = vmul.f32 %v867, %v1109
    %v1125 = vmul.f32 %v882, %v1110
    %v1126 = vmul.f32 %v897, %v1111
    %v1127 = vmul.f32 %v912, %v1112
    %v1128 = vmul.f32 %v631, %v929
    %v1129 = vmul.f32 %v646, %v930
    %v1130 = vmul.f32 %v661, %v931
    %v1131 = vmul.f32 %v676, %v932
    %v1132 = vmul.f32 %v691, %v933
    %v1133 = vmul.f32 %v706, %v934
    %v1134 = vmul.f32 %v721, %v935
    %v1135 = vmul.f32 %v736, %v936
    %v1136 = vadd.f32 %v1120, %v1128
    %v1137 = vadd.f32 %v1121, %v1129
    %v1138 = vadd.f32 %v1122, %v1130
    %v1139 = vadd.f32 %v1123, %v1131
    %v1140 = vadd.f32 %v1124, %v1132
    %v1141 = vadd.f32 %v1125, %v1133
    %v1142 = vadd.f32 %v1126, %v1134
    %v1143 = vadd.f32 %v1127, %v1135
    %v1144 = vtanh.pop %v1136
    %v1145 = vtanh.pop %v1137
    %v1146 = vtanh.pop %v1138
    %v1147 = vtanh.pop %v1139
    %v1148 = vtanh.pop %v1140
    %v1149 = vtanh.pop %v1141
    %v1150 = vtanh.pop %v1142
    %v1151 = vtanh.pop %v1143
    %v1152 = vmul.f32 %v999, %v1144
    %v1153 = vmul.f32 %v1014, %v1145
    %v1154 = vmul.f32 %v1029, %v1146
    %v1155 = vmul.f32 %v1044, %v1147
    %v1156 = vmul.f32 %v1059, %v1148
    %v1157 = vmul.f32 %v1074, %v1149
    %v1158 = vmul.f32 %v1089, %v1150
    %v1159 = vmul.f32 %v1104, %v1151
    %1160 = vst [vmem:[#allocation5] sm:$0x1] %v1152
    %1161 = vst [vmem:[#allocation5 + $0x8] sm:$0x1] %v1153
    %1162 = vst [vmem:[#allocation5 + $0x10] sm:$0x1] %v1154
    %1163 = vst [vmem:[#allocation5 + $0x18] sm:$0x1] %v1155
    %1164 = vst [vmem:[#allocation5 + $0x20] sm:$0x1] %v1156
    %1165 = vst [vmem:[#allocation5 + $0x28] sm:$0x1] %v1157
    %1166 = vst [vmem:[#allocation5 + $0x30] sm:$0x1] %v1158
    %1167 = vst [vmem:[#allocation5 + $0x38] sm:$0x1] %v1159
    %s1168 = scalar_lea.vmem [#allocation4], 1
    %v1169 = vld [vmem:[%s1168] ss:$8 sm:$0xf]
    %s1170 = scalar_lea.vmem [#allocation4], 33
    %v1171 = vld [vmem:[%s1170] ss:$8 sm:$0xf]
    %s1172 = scalar_lea.vmem [#allocation4], 65
    %v1173 = vld [vmem:[%s1172] ss:$8 sm:$0xf]
    %s1174 = scalar_lea.vmem [#allocation4], 97
    %v1175 = vld [vmem:[%s1174] ss:$8 sm:$0xf]
    %s1176 = scalar_lea.vmem [#allocation4], 129
    %v1177 = vld [vmem:[%s1176] ss:$8 sm:$0xf]
    %s1178 = scalar_lea.vmem [#allocation4], 161
    %v1179 = vld [vmem:[%s1178] ss:$8 sm:$0xf]
    %s1180 = scalar_lea.vmem [#allocation4], 193
    %v1181 = vld [vmem:[%s1180] ss:$8 sm:$0xf]
    %s1182 = scalar_lea.vmem [#allocation4], 225
    %v1183 = vld [vmem:[%s1182] ss:$8 sm:$0xf]
    %v1184 = vpack.c.bf16 %v1152, %v1152
    %v1185 = vpack.c.bf16 %v1153, %v1153
    %v1186 = vpack.c.bf16 %v1154, %v1154
    %v1187 = vpack.c.bf16 %v1155, %v1155
    %v1188 = vpack.c.bf16 %v1156, %v1156
    %v1189 = vpack.c.bf16 %v1157, %v1157
    %v1190 = vpack.c.bf16 %v1158, %v1158
    %v1191 = vpack.c.bf16 %v1159, %v1159
    %v1200 = vunpack.c.l.b16 %v1184
    %v1201 = vunpack.c.l.b16 %v1185
    %v1202 = vunpack.c.l.b16 %v1186
    %v1203 = vunpack.c.l.b16 %v1187
    %v1204 = vunpack.c.l.b16 %v1188
    %v1205 = vunpack.c.l.b16 %v1189
    %v1206 = vunpack.c.l.b16 %v1190
    %v1207 = vunpack.c.l.b16 %v1191
    %v1208 = vrot.slane %v1201, 7
    %v1209 = vsel %vm528, %v1208, %v1200
    %v1210 = vrot.slane %v1202, 6
    %v1211 = vsel %vm524, %v1210, %v1209
    %v1212 = vrot.slane %v1203, 5
    %v1213 = vsel %vm530, %v1212, %v1211
    %v1214 = vrot.slane %v1204, 4
    %v1215 = vsel %vm536, %v1214, %v1213
    %v1216 = vrot.slane %v1205, 3
    %v1217 = vsel %vm542, %v1216, %v1215
    %v1218 = vrot.slane %v1206, 2
    %v1219 = vsel %vm548, %v1218, %v1217
    %v1220 = vrot.slane %v1207, 1
    %vm1221 = vcmask 1047559
    %v1222 = vsel %vm1221, %v1220, %v1219
    %v1223 = vpack.c.b16 %v1222, %v1222
    %1225 = vmatpush.bf16.msra.mxu0 %v427
    %1226 = vmatpush.bf16.msra.mxu0 %v423
    %1227 = vmatpush.bf16.msra.mxu0 %v419
    %1228 = vmatpush.bf16.msra.mxu0 %v415
    %1229 = vmatpush.bf16.msra.mxu0 %v411
    %1230 = vmatpush.bf16.msra.mxu0 %v407
    %1231 = vmatpush.bf16.msra.mxu0 %v403
    %1232 = vmatpush.bf16.msra.mxu0 %v399
    %1233 = vmatmul.bf16.gmra.mxu0 %v1223
    %v1234 = vpop.f32.mrf.mxu0
    %v1235 = vadd.f32 0.0, %v1234
    %v1236 = vpop.f32.mrf.mxu0
    %1237 = vdwg.mxu0
    %1238 = vmatpush.bf16.msra.mxu0 %v428
    %1239 = vmatpush.bf16.msra.mxu0 %v424
    %1240 = vmatpush.bf16.msra.mxu0 %v420
    %1241 = vmatpush.bf16.msra.mxu0 %v416
    %1242 = vmatpush.bf16.msra.mxu0 %v412
    %1243 = vmatpush.bf16.msra.mxu0 %v408
    %1244 = vmatpush.bf16.msra.mxu0 %v404
    %1245 = vmatpush.bf16.msra.mxu0 %v400
    %1246 = vmatmul.bf16.gmra.mxu0 %v1223
    %v1247 = vpop.f32.mrf.mxu0
    %v1248 = vadd.f32 0.0, %v1247
    %v1249 = vpop.f32.mrf.mxu0
    %1250 = vdwg.mxu0
    %1251 = vmatpush.bf16.msra.mxu0 %v429
    %1252 = vmatpush.bf16.msra.mxu0 %v425
    %1253 = vmatpush.bf16.msra.mxu0 %v421
    %1254 = vmatpush.bf16.msra.mxu0 %v417
    %1255 = vmatpush.bf16.msra.mxu0 %v413
    %1256 = vmatpush.bf16.msra.mxu0 %v409
    %1257 = vmatpush.bf16.msra.mxu0 %v405
    %1258 = vmatpush.bf16.msra.mxu0 %v401
    %1259 = vmatmul.bf16.gmra.mxu0 %v1223
    %v1260 = vpop.f32.mrf.mxu0
    %v1261 = vadd.f32 0.0, %v1260
    %v1262 = vpop.f32.mrf.mxu0
    %1263 = vdwg.mxu0
    %1264 = vmatpush.bf16.msra.mxu0 %v430
    %1265 = vmatpush.bf16.msra.mxu0 %v426
    %1266 = vmatpush.bf16.msra.mxu0 %v422
    %1267 = vmatpush.bf16.msra.mxu0 %v418
    %1268 = vmatpush.bf16.msra.mxu0 %v414
    %1269 = vmatpush.bf16.msra.mxu0 %v410
    %1270 = vmatpush.bf16.msra.mxu0 %v406
    %1271 = vmatpush.bf16.msra.mxu0 %v402
    %1272 = vmatmul.bf16.gmra.mxu0 %v1223
    %v1273 = vpop.f32.mrf.mxu0
    %v1274 = vadd.f32 0.0, %v1273
    %v1275 = vpop.f32.mrf.mxu0
    %1276 = vdwg.mxu0
    %v1281 = vrot.slane %v1248, 7
    %v1282 = vrot.slane %v1261, 6
    %v1283 = vrot.slane %v1274, 5
    %v1284 = vsel %vm522, %v1235, %v1281
    %v1285 = vsel %vm524, %v1282, %v1283
    %v1286 = vsel %vm526, %v1284, %v1285
    %v1287 = vsel %vm528, %v1235, %v1281
    %v1288 = vsel %vm530, %v1282, %v1283
    %v1289 = vsel %vm532, %v1287, %v1288
    %v1290 = vrot.slane %v1289, 1
    %v1291 = vsel %vm524, %v1235, %v1281
    %v1292 = vsel %vm536, %v1282, %v1283
    %v1293 = vsel %vm538, %v1291, %v1292
    %v1294 = vrot.slane %v1293, 2
    %v1295 = vsel %vm530, %v1235, %v1281
    %v1296 = vsel %vm542, %v1282, %v1283
    %v1297 = vsel %vm544, %v1295, %v1296
    %v1298 = vrot.slane %v1297, 3
    %v1299 = vsel %vm536, %v1235, %v1281
    %v1300 = vsel %vm548, %v1282, %v1283
    %v1301 = vsel %vm550, %v1299, %v1300
    %v1302 = vrot.slane %v1301, 4
    %v1303 = vsel %vm542, %v1235, %v1281
    %v1304 = vsel %vm554, %v1283, %v1282
    %v1305 = vsel %vm556, %v1303, %v1304
    %v1306 = vrot.slane %v1305, 5
    %v1307 = vsel %vm548, %v1235, %v1281
    %v1308 = vsel %vm522, %v1282, %v1283
    %v1309 = vsel %vm561, %v1308, %v1307
    %v1310 = vrot.slane %v1309, 6
    %v1311 = vsel %vm554, %v1281, %v1235
    %v1312 = vsel %vm528, %v1282, %v1283
    %v1313 = vsel %vm566, %v1312, %v1311
    %v1314 = vrot.slane %v1313, 7
    %v1323 = vadd.f32 %v1169, %v1286
    %v1324 = vadd.f32 %v1171, %v1290
    %v1325 = vadd.f32 %v1173, %v1294
    %v1326 = vadd.f32 %v1175, %v1298
    %v1327 = vadd.f32 %v1177, %v1302
    %v1328 = vadd.f32 %v1179, %v1306
    %v1329 = vadd.f32 %v1181, %v1310
    %v1330 = vadd.f32 %v1183, %v1314
    %v1331 = vxor.u32 %v1323, 2147483648
    %v1332 = vxor.u32 %v1324, 2147483648
    %v1333 = vxor.u32 %v1325, 2147483648
    %v1334 = vxor.u32 %v1326, 2147483648
    %v1335 = vxor.u32 %v1327, 2147483648
    %v1336 = vxor.u32 %v1328, 2147483648
    %v1337 = vxor.u32 %v1329, 2147483648
    %v1338 = vxor.u32 %v1330, 2147483648
    %v1339 = vmul.f32 %v1331, 1.442695
    %v1340 = vpow.pop %v1339
    %v1341 = vmul.f32 %v1332, 1.442695
    %v1342 = vpow.pop %v1341
    %v1343 = vmul.f32 %v1333, 1.442695
    %v1344 = vpow.pop %v1343
    %v1345 = vmul.f32 %v1334, 1.442695
    %v1346 = vpow.pop %v1345
    %v1347 = vmul.f32 %v1335, 1.442695
    %v1348 = vpow.pop %v1347
    %v1349 = vmul.f32 %v1336, 1.442695
    %v1350 = vpow.pop %v1349
    %v1351 = vmul.f32 %v1337, 1.442695
    %v1352 = vpow.pop %v1351
    %v1353 = vmul.f32 %v1338, 1.442695
    %v1354 = vpow.pop %v1353
    %v1355 = vadd.f32 %v1340, 1.0
    %v1356 = vadd.f32 %v1342, 1.0
    %v1357 = vadd.f32 %v1344, 1.0
    %v1358 = vadd.f32 %v1346, 1.0
    %v1359 = vadd.f32 %v1348, 1.0
    %v1360 = vadd.f32 %v1350, 1.0
    %v1361 = vadd.f32 %v1352, 1.0
    %v1362 = vadd.f32 %v1354, 1.0
    %v1363 = vrcp.pop %v1355
    %v1364 = vmul.f32 %v1355, %v1363
    %v1365 = vsub.f32 1.0, %v1364
    %v1366 = vmul.f32 %v1363, %v1365
    %v1367 = vadd.f32 %v1363, %v1366
    %vm1368 = vweird.f32 %v1355
    %vm1369 = vweird.f32 %v1363
    %vm1370 = vmor %vm1368, %vm1369
    %v1371 = vsel %vm1370, %v1363, %v1367
    %v1372 = vand.u32 2147483647, %v1355
    %vm1373 = vcmp.eq.f32.partialorder %v1372, 8.507059e+37
    %v1374 = vand.u32 %v1355, 2147483648
    %v1375 = vor.u32 1.1754944e-38, %v1374
    %v1376 = vsel %vm1373, %v1375, %v1371
    %v1377 = vmul.f32 1.0, %v1376
    %v1378 = vrcp.pop %v1356
    %v1379 = vmul.f32 %v1356, %v1378
    %v1380 = vsub.f32 1.0, %v1379
    %v1381 = vmul.f32 %v1378, %v1380
    %v1382 = vadd.f32 %v1378, %v1381
    %vm1383 = vweird.f32 %v1356
    %vm1384 = vweird.f32 %v1378
    %vm1385 = vmor %vm1383, %vm1384
    %v1386 = vsel %vm1385, %v1378, %v1382
    %v1387 = vand.u32 2147483647, %v1356
    %vm1388 = vcmp.eq.f32.partialorder %v1387, 8.507059e+37
    %v1389 = vand.u32 %v1356, 2147483648
    %v1390 = vor.u32 1.1754944e-38, %v1389
    %v1391 = vsel %vm1388, %v1390, %v1386
    %v1392 = vmul.f32 1.0, %v1391
    %v1393 = vrcp.pop %v1357
    %v1394 = vmul.f32 %v1357, %v1393
    %v1395 = vsub.f32 1.0, %v1394
    %v1396 = vmul.f32 %v1393, %v1395
    %v1397 = vadd.f32 %v1393, %v1396
    %vm1398 = vweird.f32 %v1357
    %vm1399 = vweird.f32 %v1393
    %vm1400 = vmor %vm1398, %vm1399
    %v1401 = vsel %vm1400, %v1393, %v1397
    %v1402 = vand.u32 2147483647, %v1357
    %vm1403 = vcmp.eq.f32.partialorder %v1402, 8.507059e+37
    %v1404 = vand.u32 %v1357, 2147483648
    %v1405 = vor.u32 1.1754944e-38, %v1404
    %v1406 = vsel %vm1403, %v1405, %v1401
    %v1407 = vmul.f32 1.0, %v1406
    %v1408 = vrcp.pop %v1358
    %v1409 = vmul.f32 %v1358, %v1408
    %v1410 = vsub.f32 1.0, %v1409
    %v1411 = vmul.f32 %v1408, %v1410
    %v1412 = vadd.f32 %v1408, %v1411
    %vm1413 = vweird.f32 %v1358
    %vm1414 = vweird.f32 %v1408
    %vm1415 = vmor %vm1413, %vm1414
    %v1416 = vsel %vm1415, %v1408, %v1412
    %v1417 = vand.u32 2147483647, %v1358
    %vm1418 = vcmp.eq.f32.partialorder %v1417, 8.507059e+37
    %v1419 = vand.u32 %v1358, 2147483648
    %v1420 = vor.u32 1.1754944e-38, %v1419
    %v1421 = vsel %vm1418, %v1420, %v1416
    %v1422 = vmul.f32 1.0, %v1421
    %v1423 = vrcp.pop %v1359
    %v1424 = vmul.f32 %v1359, %v1423
    %v1425 = vsub.f32 1.0, %v1424
    %v1426 = vmul.f32 %v1423, %v1425
    %v1427 = vadd.f32 %v1423, %v1426
    %vm1428 = vweird.f32 %v1359
    %vm1429 = vweird.f32 %v1423
    %vm1430 = vmor %vm1428, %vm1429
    %v1431 = vsel %vm1430, %v1423, %v1427
    %v1432 = vand.u32 2147483647, %v1359
    %vm1433 = vcmp.eq.f32.partialorder %v1432, 8.507059e+37
    %v1434 = vand.u32 %v1359, 2147483648
    %v1435 = vor.u32 1.1754944e-38, %v1434
    %v1436 = vsel %vm1433, %v1435, %v1431
    %v1437 = vmul.f32 1.0, %v1436
    %v1438 = vrcp.pop %v1360
    %v1439 = vmul.f32 %v1360, %v1438
    %v1440 = vsub.f32 1.0, %v1439
    %v1441 = vmul.f32 %v1438, %v1440
    %v1442 = vadd.f32 %v1438, %v1441
    %vm1443 = vweird.f32 %v1360
    %vm1444 = vweird.f32 %v1438
    %vm1445 = vmor %vm1443, %vm1444
    %v1446 = vsel %vm1445, %v1438, %v1442
    %v1447 = vand.u32 2147483647, %v1360
    %vm1448 = vcmp.eq.f32.partialorder %v1447, 8.507059e+37
    %v1449 = vand.u32 %v1360, 2147483648
    %v1450 = vor.u32 1.1754944e-38, %v1449
    %v1451 = vsel %vm1448, %v1450, %v1446
    %v1452 = vmul.f32 1.0, %v1451
    %v1453 = vrcp.pop %v1361
    %v1454 = vmul.f32 %v1361, %v1453
    %v1455 = vsub.f32 1.0, %v1454
    %v1456 = vmul.f32 %v1453, %v1455
    %v1457 = vadd.f32 %v1453, %v1456
    %vm1458 = vweird.f32 %v1361
    %vm1459 = vweird.f32 %v1453
    %vm1460 = vmor %vm1458, %vm1459
    %v1461 = vsel %vm1460, %v1453, %v1457
    %v1462 = vand.u32 2147483647, %v1361
    %vm1463 = vcmp.eq.f32.partialorder %v1462, 8.507059e+37
    %v1464 = vand.u32 %v1361, 2147483648
    %v1465 = vor.u32 1.1754944e-38, %v1464
    %v1466 = vsel %vm1463, %v1465, %v1461
    %v1467 = vmul.f32 1.0, %v1466
    %v1468 = vrcp.pop %v1362
    %v1469 = vmul.f32 %v1362, %v1468
    %v1470 = vsub.f32 1.0, %v1469
    %v1471 = vmul.f32 %v1468, %v1470
    %v1472 = vadd.f32 %v1468, %v1471
    %vm1473 = vweird.f32 %v1362
    %vm1474 = vweird.f32 %v1468
    %vm1475 = vmor %vm1473, %vm1474
    %v1476 = vsel %vm1475, %v1468, %v1472
    %v1477 = vand.u32 2147483647, %v1362
    %vm1478 = vcmp.eq.f32.partialorder %v1477, 8.507059e+37
    %v1479 = vand.u32 %v1362, 2147483648
    %v1480 = vor.u32 1.1754944e-38, %v1479
    %v1481 = vsel %vm1478, %v1480, %v1476
    %v1482 = vmul.f32 1.0, %v1481
    %v1491 = vrot.slane %v1323, 1
    %v1492 = vrot.slane %v1324, 1
    %v1493 = vrot.slane %v1325, 1
    %v1494 = vrot.slane %v1326, 1
    %v1495 = vrot.slane %v1327, 1
    %v1496 = vrot.slane %v1328, 1
    %v1497 = vrot.slane %v1329, 1
    %v1498 = vrot.slane %v1330, 1
    %v1507 = vxor.u32 %v1491, 2147483648
    %v1508 = vxor.u32 %v1492, 2147483648
    %v1509 = vxor.u32 %v1493, 2147483648
    %v1510 = vxor.u32 %v1494, 2147483648
    %v1511 = vxor.u32 %v1495, 2147483648
    %v1512 = vxor.u32 %v1496, 2147483648
    %v1513 = vxor.u32 %v1497, 2147483648
    %v1514 = vxor.u32 %v1498, 2147483648
    %v1515 = vmul.f32 %v1507, 1.442695
    %v1516 = vpow.pop %v1515
    %v1517 = vmul.f32 %v1508, 1.442695
    %v1518 = vpow.pop %v1517
    %v1519 = vmul.f32 %v1509, 1.442695
    %v1520 = vpow.pop %v1519
    %v1521 = vmul.f32 %v1510, 1.442695
    %v1522 = vpow.pop %v1521
    %v1523 = vmul.f32 %v1511, 1.442695
    %v1524 = vpow.pop %v1523
    %v1525 = vmul.f32 %v1512, 1.442695
    %v1526 = vpow.pop %v1525
    %v1527 = vmul.f32 %v1513, 1.442695
    %v1528 = vpow.pop %v1527
    %v1529 = vmul.f32 %v1514, 1.442695
    %v1530 = vpow.pop %v1529
    %v1531 = vadd.f32 %v1516, 1.0
    %v1532 = vadd.f32 %v1518, 1.0
    %v1533 = vadd.f32 %v1520, 1.0
    %v1534 = vadd.f32 %v1522, 1.0
    %v1535 = vadd.f32 %v1524, 1.0
    %v1536 = vadd.f32 %v1526, 1.0
    %v1537 = vadd.f32 %v1528, 1.0
    %v1538 = vadd.f32 %v1530, 1.0
    %v1539 = vrcp.pop %v1531
    %v1540 = vmul.f32 %v1531, %v1539
    %v1541 = vsub.f32 1.0, %v1540
    %v1542 = vmul.f32 %v1539, %v1541
    %v1543 = vadd.f32 %v1539, %v1542
    %vm1544 = vweird.f32 %v1531
    %vm1545 = vweird.f32 %v1539
    %vm1546 = vmor %vm1544, %vm1545
    %v1547 = vsel %vm1546, %v1539, %v1543
    %v1548 = vand.u32 2147483647, %v1531
    %vm1549 = vcmp.eq.f32.partialorder %v1548, 8.507059e+37
    %v1550 = vand.u32 %v1531, 2147483648
    %v1551 = vor.u32 1.1754944e-38, %v1550
    %v1552 = vsel %vm1549, %v1551, %v1547
    %v1553 = vmul.f32 1.0, %v1552
    %v1554 = vrcp.pop %v1532
    %v1555 = vmul.f32 %v1532, %v1554
    %v1556 = vsub.f32 1.0, %v1555
    %v1557 = vmul.f32 %v1554, %v1556
    %v1558 = vadd.f32 %v1554, %v1557
    %vm1559 = vweird.f32 %v1532
    %vm1560 = vweird.f32 %v1554
    %vm1561 = vmor %vm1559, %vm1560
    %v1562 = vsel %vm1561, %v1554, %v1558
    %v1563 = vand.u32 2147483647, %v1532
    %vm1564 = vcmp.eq.f32.partialorder %v1563, 8.507059e+37
    %v1565 = vand.u32 %v1532, 2147483648
    %v1566 = vor.u32 1.1754944e-38, %v1565
    %v1567 = vsel %vm1564, %v1566, %v1562
    %v1568 = vmul.f32 1.0, %v1567
    %v1569 = vrcp.pop %v1533
    %v1570 = vmul.f32 %v1533, %v1569
    %v1571 = vsub.f32 1.0, %v1570
    %v1572 = vmul.f32 %v1569, %v1571
    %v1573 = vadd.f32 %v1569, %v1572
    %vm1574 = vweird.f32 %v1533
    %vm1575 = vweird.f32 %v1569
    %vm1576 = vmor %vm1574, %vm1575
    %v1577 = vsel %vm1576, %v1569, %v1573
    %v1578 = vand.u32 2147483647, %v1533
    %vm1579 = vcmp.eq.f32.partialorder %v1578, 8.507059e+37
    %v1580 = vand.u32 %v1533, 2147483648
    %v1581 = vor.u32 1.1754944e-38, %v1580
    %v1582 = vsel %vm1579, %v1581, %v1577
    %v1583 = vmul.f32 1.0, %v1582
    %v1584 = vrcp.pop %v1534
    %v1585 = vmul.f32 %v1534, %v1584
    %v1586 = vsub.f32 1.0, %v1585
    %v1587 = vmul.f32 %v1584, %v1586
    %v1588 = vadd.f32 %v1584, %v1587
    %vm1589 = vweird.f32 %v1534
    %vm1590 = vweird.f32 %v1584
    %vm1591 = vmor %vm1589, %vm1590
    %v1592 = vsel %vm1591, %v1584, %v1588
    %v1593 = vand.u32 2147483647, %v1534
    %vm1594 = vcmp.eq.f32.partialorder %v1593, 8.507059e+37
    %v1595 = vand.u32 %v1534, 2147483648
    %v1596 = vor.u32 1.1754944e-38, %v1595
    %v1597 = vsel %vm1594, %v1596, %v1592
    %v1598 = vmul.f32 1.0, %v1597
    %v1599 = vrcp.pop %v1535
    %v1600 = vmul.f32 %v1535, %v1599
    %v1601 = vsub.f32 1.0, %v1600
    %v1602 = vmul.f32 %v1599, %v1601
    %v1603 = vadd.f32 %v1599, %v1602
    %vm1604 = vweird.f32 %v1535
    %vm1605 = vweird.f32 %v1599
    %vm1606 = vmor %vm1604, %vm1605
    %v1607 = vsel %vm1606, %v1599, %v1603
    %v1608 = vand.u32 2147483647, %v1535
    %vm1609 = vcmp.eq.f32.partialorder %v1608, 8.507059e+37
    %v1610 = vand.u32 %v1535, 2147483648
    %v1611 = vor.u32 1.1754944e-38, %v1610
    %v1612 = vsel %vm1609, %v1611, %v1607
    %v1613 = vmul.f32 1.0, %v1612
    %v1614 = vrcp.pop %v1536
    %v1615 = vmul.f32 %v1536, %v1614
    %v1616 = vsub.f32 1.0, %v1615
    %v1617 = vmul.f32 %v1614, %v1616
    %v1618 = vadd.f32 %v1614, %v1617
    %vm1619 = vweird.f32 %v1536
    %vm1620 = vweird.f32 %v1614
    %vm1621 = vmor %vm1619, %vm1620
    %v1622 = vsel %vm1621, %v1614, %v1618
    %v1623 = vand.u32 2147483647, %v1536
    %vm1624 = vcmp.eq.f32.partialorder %v1623, 8.507059e+37
    %v1625 = vand.u32 %v1536, 2147483648
    %v1626 = vor.u32 1.1754944e-38, %v1625
    %v1627 = vsel %vm1624, %v1626, %v1622
    %v1628 = vmul.f32 1.0, %v1627
    %v1629 = vrcp.pop %v1537
    %v1630 = vmul.f32 %v1537, %v1629
    %v1631 = vsub.f32 1.0, %v1630
    %v1632 = vmul.f32 %v1629, %v1631
    %v1633 = vadd.f32 %v1629, %v1632
    %vm1634 = vweird.f32 %v1537
    %vm1635 = vweird.f32 %v1629
    %vm1636 = vmor %vm1634, %vm1635
    %v1637 = vsel %vm1636, %v1629, %v1633
    %v1638 = vand.u32 2147483647, %v1537
    %vm1639 = vcmp.eq.f32.partialorder %v1638, 8.507059e+37
    %v1640 = vand.u32 %v1537, 2147483648
    %v1641 = vor.u32 1.1754944e-38, %v1640
    %v1642 = vsel %vm1639, %v1641, %v1637
    %v1643 = vmul.f32 1.0, %v1642
    %v1644 = vrcp.pop %v1538
    %v1645 = vmul.f32 %v1538, %v1644
    %v1646 = vsub.f32 1.0, %v1645
    %v1647 = vmul.f32 %v1644, %v1646
    %v1648 = vadd.f32 %v1644, %v1647
    %vm1649 = vweird.f32 %v1538
    %vm1650 = vweird.f32 %v1644
    %vm1651 = vmor %vm1649, %vm1650
    %v1652 = vsel %vm1651, %v1644, %v1648
    %v1653 = vand.u32 2147483647, %v1538
    %vm1654 = vcmp.eq.f32.partialorder %v1653, 8.507059e+37
    %v1655 = vand.u32 %v1538, 2147483648
    %v1656 = vor.u32 1.1754944e-38, %v1655
    %v1657 = vsel %vm1654, %v1656, %v1652
    %v1658 = vmul.f32 1.0, %v1657
    %v1659 = vrot.slane %v1323, 2
    %v1660 = vrot.slane %v1324, 2
    %v1661 = vrot.slane %v1325, 2
    %v1662 = vrot.slane %v1326, 2
    %v1663 = vrot.slane %v1327, 2
    %v1664 = vrot.slane %v1328, 2
    %v1665 = vrot.slane %v1329, 2
    %v1666 = vrot.slane %v1330, 2
    %v1675 = vtanh.pop %v1659
    %v1676 = vtanh.pop %v1660
    %v1677 = vtanh.pop %v1661
    %v1678 = vtanh.pop %v1662
    %v1679 = vtanh.pop %v1663
    %v1680 = vtanh.pop %v1664
    %v1681 = vtanh.pop %v1665
    %v1682 = vtanh.pop %v1666
    %v1683 = vrot.slane %v1323, 3
    %v1684 = vrot.slane %v1324, 3
    %v1685 = vrot.slane %v1325, 3
    %v1686 = vrot.slane %v1326, 3
    %v1687 = vrot.slane %v1327, 3
    %v1688 = vrot.slane %v1328, 3
    %v1689 = vrot.slane %v1329, 3
    %v1690 = vrot.slane %v1330, 3
    %v1699 = vxor.u32 %v1683, 2147483648
    %v1700 = vxor.u32 %v1684, 2147483648
    %v1701 = vxor.u32 %v1685, 2147483648
    %v1702 = vxor.u32 %v1686, 2147483648
    %v1703 = vxor.u32 %v1687, 2147483648
    %v1704 = vxor.u32 %v1688, 2147483648
    %v1705 = vxor.u32 %v1689, 2147483648
    %v1706 = vxor.u32 %v1690, 2147483648
    %v1707 = vmul.f32 %v1699, 1.442695
    %v1708 = vpow.pop %v1707
    %v1709 = vmul.f32 %v1700, 1.442695
    %v1710 = vpow.pop %v1709
    %v1711 = vmul.f32 %v1701, 1.442695
    %v1712 = vpow.pop %v1711
    %v1713 = vmul.f32 %v1702, 1.442695
    %v1714 = vpow.pop %v1713
    %v1715 = vmul.f32 %v1703, 1.442695
    %v1716 = vpow.pop %v1715
    %v1717 = vmul.f32 %v1704, 1.442695
    %v1718 = vpow.pop %v1717
    %v1719 = vmul.f32 %v1705, 1.442695
    %v1720 = vpow.pop %v1719
    %v1721 = vmul.f32 %v1706, 1.442695
    %v1722 = vpow.pop %v1721
    %v1723 = vadd.f32 %v1708, 1.0
    %v1724 = vadd.f32 %v1710, 1.0
    %v1725 = vadd.f32 %v1712, 1.0
    %v1726 = vadd.f32 %v1714, 1.0
    %v1727 = vadd.f32 %v1716, 1.0
    %v1728 = vadd.f32 %v1718, 1.0
    %v1729 = vadd.f32 %v1720, 1.0
    %v1730 = vadd.f32 %v1722, 1.0
    %v1731 = vrcp.pop %v1723
    %v1732 = vmul.f32 %v1723, %v1731
    %v1733 = vsub.f32 1.0, %v1732
    %v1734 = vmul.f32 %v1731, %v1733
    %v1735 = vadd.f32 %v1731, %v1734
    %vm1736 = vweird.f32 %v1723
    %vm1737 = vweird.f32 %v1731
    %vm1738 = vmor %vm1736, %vm1737
    %v1739 = vsel %vm1738, %v1731, %v1735
    %v1740 = vand.u32 2147483647, %v1723
    %vm1741 = vcmp.eq.f32.partialorder %v1740, 8.507059e+37
    %v1742 = vand.u32 %v1723, 2147483648
    %v1743 = vor.u32 1.1754944e-38, %v1742
    %v1744 = vsel %vm1741, %v1743, %v1739
    %v1745 = vmul.f32 1.0, %v1744
    %v1746 = vrcp.pop %v1724
    %v1747 = vmul.f32 %v1724, %v1746
    %v1748 = vsub.f32 1.0, %v1747
    %v1749 = vmul.f32 %v1746, %v1748
    %v1750 = vadd.f32 %v1746, %v1749
    %vm1751 = vweird.f32 %v1724
    %vm1752 = vweird.f32 %v1746
    %vm1753 = vmor %vm1751, %vm1752
    %v1754 = vsel %vm1753, %v1746, %v1750
    %v1755 = vand.u32 2147483647, %v1724
    %vm1756 = vcmp.eq.f32.partialorder %v1755, 8.507059e+37
    %v1757 = vand.u32 %v1724, 2147483648
    %v1758 = vor.u32 1.1754944e-38, %v1757
    %v1759 = vsel %vm1756, %v1758, %v1754
    %v1760 = vmul.f32 1.0, %v1759
    %v1761 = vrcp.pop %v1725
    %v1762 = vmul.f32 %v1725, %v1761
    %v1763 = vsub.f32 1.0, %v1762
    %v1764 = vmul.f32 %v1761, %v1763
    %v1765 = vadd.f32 %v1761, %v1764
    %vm1766 = vweird.f32 %v1725
    %vm1767 = vweird.f32 %v1761
    %vm1768 = vmor %vm1766, %vm1767
    %v1769 = vsel %vm1768, %v1761, %v1765
    %v1770 = vand.u32 2147483647, %v1725
    %vm1771 = vcmp.eq.f32.partialorder %v1770, 8.507059e+37
    %v1772 = vand.u32 %v1725, 2147483648
    %v1773 = vor.u32 1.1754944e-38, %v1772
    %v1774 = vsel %vm1771, %v1773, %v1769
    %v1775 = vmul.f32 1.0, %v1774
    %v1776 = vrcp.pop %v1726
    %v1777 = vmul.f32 %v1726, %v1776
    %v1778 = vsub.f32 1.0, %v1777
    %v1779 = vmul.f32 %v1776, %v1778
    %v1780 = vadd.f32 %v1776, %v1779
    %vm1781 = vweird.f32 %v1726
    %vm1782 = vweird.f32 %v1776
    %vm1783 = vmor %vm1781, %vm1782
    %v1784 = vsel %vm1783, %v1776, %v1780
    %v1785 = vand.u32 2147483647, %v1726
    %vm1786 = vcmp.eq.f32.partialorder %v1785, 8.507059e+37
    %v1787 = vand.u32 %v1726, 2147483648
    %v1788 = vor.u32 1.1754944e-38, %v1787
    %v1789 = vsel %vm1786, %v1788, %v1784
    %v1790 = vmul.f32 1.0, %v1789
    %v1791 = vrcp.pop %v1727
    %v1792 = vmul.f32 %v1727, %v1791
    %v1793 = vsub.f32 1.0, %v1792
    %v1794 = vmul.f32 %v1791, %v1793
    %v1795 = vadd.f32 %v1791, %v1794
    %vm1796 = vweird.f32 %v1727
    %vm1797 = vweird.f32 %v1791
    %vm1798 = vmor %vm1796, %vm1797
    %v1799 = vsel %vm1798, %v1791, %v1795
    %v1800 = vand.u32 2147483647, %v1727
    %vm1801 = vcmp.eq.f32.partialorder %v1800, 8.507059e+37
    %v1802 = vand.u32 %v1727, 2147483648
    %v1803 = vor.u32 1.1754944e-38, %v1802
    %v1804 = vsel %vm1801, %v1803, %v1799
    %v1805 = vmul.f32 1.0, %v1804
    %v1806 = vrcp.pop %v1728
    %v1807 = vmul.f32 %v1728, %v1806
    %v1808 = vsub.f32 1.0, %v1807
    %v1809 = vmul.f32 %v1806, %v1808
    %v1810 = vadd.f32 %v1806, %v1809
    %vm1811 = vweird.f32 %v1728
    %vm1812 = vweird.f32 %v1806
    %vm1813 = vmor %vm1811, %vm1812
    %v1814 = vsel %vm1813, %v1806, %v1810
    %v1815 = vand.u32 2147483647, %v1728
    %vm1816 = vcmp.eq.f32.partialorder %v1815, 8.507059e+37
    %v1817 = vand.u32 %v1728, 2147483648
    %v1818 = vor.u32 1.1754944e-38, %v1817
    %v1819 = vsel %vm1816, %v1818, %v1814
    %v1820 = vmul.f32 1.0, %v1819
    %v1821 = vrcp.pop %v1729
    %v1822 = vmul.f32 %v1729, %v1821
    %v1823 = vsub.f32 1.0, %v1822
    %v1824 = vmul.f32 %v1821, %v1823
    %v1825 = vadd.f32 %v1821, %v1824
    %vm1826 = vweird.f32 %v1729
    %vm1827 = vweird.f32 %v1821
    %vm1828 = vmor %vm1826, %vm1827
    %v1829 = vsel %vm1828, %v1821, %v1825
    %v1830 = vand.u32 2147483647, %v1729
    %vm1831 = vcmp.eq.f32.partialorder %v1830, 8.507059e+37
    %v1832 = vand.u32 %v1729, 2147483648
    %v1833 = vor.u32 1.1754944e-38, %v1832
    %v1834 = vsel %vm1831, %v1833, %v1829
    %v1835 = vmul.f32 1.0, %v1834
    %v1836 = vrcp.pop %v1730
    %v1837 = vmul.f32 %v1730, %v1836
    %v1838 = vsub.f32 1.0, %v1837
    %v1839 = vmul.f32 %v1836, %v1838
    %v1840 = vadd.f32 %v1836, %v1839
    %vm1841 = vweird.f32 %v1730
    %vm1842 = vweird.f32 %v1836
    %vm1843 = vmor %vm1841, %vm1842
    %v1844 = vsel %vm1843, %v1836, %v1840
    %v1845 = vand.u32 2147483647, %v1730
    %vm1846 = vcmp.eq.f32.partialorder %v1845, 8.507059e+37
    %v1847 = vand.u32 %v1730, 2147483648
    %v1848 = vor.u32 1.1754944e-38, %v1847
    %v1849 = vsel %vm1846, %v1848, %v1844
    %v1850 = vmul.f32 1.0, %v1849
    %v1851 = vmul.f32 %v1553, %v1136
    %v1852 = vmul.f32 %v1568, %v1137
    %v1853 = vmul.f32 %v1583, %v1138
    %v1854 = vmul.f32 %v1598, %v1139
    %v1855 = vmul.f32 %v1613, %v1140
    %v1856 = vmul.f32 %v1628, %v1141
    %v1857 = vmul.f32 %v1643, %v1142
    %v1858 = vmul.f32 %v1658, %v1143
    %v1859 = vmul.f32 %v1377, %v1675
    %v1860 = vmul.f32 %v1392, %v1676
    %v1861 = vmul.f32 %v1407, %v1677
    %v1862 = vmul.f32 %v1422, %v1678
    %v1863 = vmul.f32 %v1437, %v1679
    %v1864 = vmul.f32 %v1452, %v1680
    %v1865 = vmul.f32 %v1467, %v1681
    %v1866 = vmul.f32 %v1482, %v1682
    %v1867 = vadd.f32 %v1851, %v1859
    %v1868 = vadd.f32 %v1852, %v1860
    %v1869 = vadd.f32 %v1853, %v1861
    %v1870 = vadd.f32 %v1854, %v1862
    %v1871 = vadd.f32 %v1855, %v1863
    %v1872 = vadd.f32 %v1856, %v1864
    %v1873 = vadd.f32 %v1857, %v1865
    %v1874 = vadd.f32 %v1858, %v1866
    %v1875 = vtanh.pop %v1867
    %v1876 = vtanh.pop %v1868
    %v1877 = vtanh.pop %v1869
    %v1878 = vtanh.pop %v1870
    %v1879 = vtanh.pop %v1871
    %v1880 = vtanh.pop %v1872
    %v1881 = vtanh.pop %v1873
    %v1882 = vtanh.pop %v1874
    %v1883 = vmul.f32 %v1745, %v1875
    %v1884 = vmul.f32 %v1760, %v1876
    %v1885 = vmul.f32 %v1775, %v1877
    %v1886 = vmul.f32 %v1790, %v1878
    %v1887 = vmul.f32 %v1805, %v1879
    %v1888 = vmul.f32 %v1820, %v1880
    %v1889 = vmul.f32 %v1835, %v1881
    %v1890 = vmul.f32 %v1850, %v1882
    %1891 = vst [vmem:[#allocation5 + $0x1] sm:$0x1] %v1883
    %1892 = vst [vmem:[#allocation5 + $0x9] sm:$0x1] %v1884
    %1893 = vst [vmem:[#allocation5 + $0x11] sm:$0x1] %v1885
    %1894 = vst [vmem:[#allocation5 + $0x19] sm:$0x1] %v1886
    %1895 = vst [vmem:[#allocation5 + $0x21] sm:$0x1] %v1887
    %1896 = vst [vmem:[#allocation5 + $0x29] sm:$0x1] %v1888
    %1897 = vst [vmem:[#allocation5 + $0x31] sm:$0x1] %v1889
    %1898 = vst [vmem:[#allocation5 + $0x39] sm:$0x1] %v1890
    %s1899 = scalar_lea.vmem [#allocation4], 2
    %v1900 = vld [vmem:[%s1899] ss:$8 sm:$0xf]
    %s1901 = scalar_lea.vmem [#allocation4], 34
    %v1902 = vld [vmem:[%s1901] ss:$8 sm:$0xf]
    %s1903 = scalar_lea.vmem [#allocation4], 66
    %v1904 = vld [vmem:[%s1903] ss:$8 sm:$0xf]
    %s1905 = scalar_lea.vmem [#allocation4], 98
    %v1906 = vld [vmem:[%s1905] ss:$8 sm:$0xf]
    %s1907 = scalar_lea.vmem [#allocation4], 130
    %v1908 = vld [vmem:[%s1907] ss:$8 sm:$0xf]
    %s1909 = scalar_lea.vmem [#allocation4], 162
    %v1910 = vld [vmem:[%s1909] ss:$8 sm:$0xf]
    %s1911 = scalar_lea.vmem [#allocation4], 194
    %v1912 = vld [vmem:[%s1911] ss:$8 sm:$0xf]
    %s1913 = scalar_lea.vmem [#allocation4], 226
    %v1914 = vld [vmem:[%s1913] ss:$8 sm:$0xf]
    %v1915 = vpack.c.bf16 %v1883, %v1883
    %v1916 = vpack.c.bf16 %v1884, %v1884
    %v1917 = vpack.c.bf16 %v1885, %v1885
    %v1918 = vpack.c.bf16 %v1886, %v1886
    %v1919 = vpack.c.bf16 %v1887, %v1887
    %v1920 = vpack.c.bf16 %v1888, %v1888
    %v1921 = vpack.c.bf16 %v1889, %v1889
    %v1922 = vpack.c.bf16 %v1890, %v1890
    %v1931 = vunpack.c.l.b16 %v1915
    %v1932 = vunpack.c.l.b16 %v1916
    %v1933 = vunpack.c.l.b16 %v1917
    %v1934 = vunpack.c.l.b16 %v1918
    %v1935 = vunpack.c.l.b16 %v1919
    %v1936 = vunpack.c.l.b16 %v1920
    %v1937 = vunpack.c.l.b16 %v1921
    %v1938 = vunpack.c.l.b16 %v1922
    %v1939 = vrot.slane %v1932, 7
    %v1940 = vsel %vm528, %v1939, %v1931
    %v1941 = vrot.slane %v1933, 6
    %v1942 = vsel %vm524, %v1941, %v1940
    %v1943 = vrot.slane %v1934, 5
    %v1944 = vsel %vm530, %v1943, %v1942
    %v1945 = vrot.slane %v1935, 4
    %v1946 = vsel %vm536, %v1945, %v1944
    %v1947 = vrot.slane %v1936, 3
    %v1948 = vsel %vm542, %v1947, %v1946
    %v1949 = vrot.slane %v1937, 2
    %v1950 = vsel %vm548, %v1949, %v1948
    %v1951 = vrot.slane %v1938, 1
    %v1952 = vsel %vm1221, %v1951, %v1950
    %v1953 = vpack.c.b16 %v1952, %v1952
    %1955 = vmatpush.bf16.msra.mxu0 %v427
    %1956 = vmatpush.bf16.msra.mxu0 %v423
    %1957 = vmatpush.bf16.msra.mxu0 %v419
    %1958 = vmatpush.bf16.msra.mxu0 %v415
    %1959 = vmatpush.bf16.msra.mxu0 %v411
    %1960 = vmatpush.bf16.msra.mxu0 %v407
    %1961 = vmatpush.bf16.msra.mxu0 %v403
    %1962 = vmatpush.bf16.msra.mxu0 %v399
    %1963 = vmatmul.bf16.gmra.mxu0 %v1953
    %v1964 = vpop.f32.mrf.mxu0
    %v1965 = vadd.f32 0.0, %v1964
    %v1966 = vpop.f32.mrf.mxu0
    %1967 = vdwg.mxu0
    %1968 = vmatpush.bf16.msra.mxu0 %v428
    %1969 = vmatpush.bf16.msra.mxu0 %v424
    %1970 = vmatpush.bf16.msra.mxu0 %v420
    %1971 = vmatpush.bf16.msra.mxu0 %v416
    %1972 = vmatpush.bf16.msra.mxu0 %v412
    %1973 = vmatpush.bf16.msra.mxu0 %v408
    %1974 = vmatpush.bf16.msra.mxu0 %v404
    %1975 = vmatpush.bf16.msra.mxu0 %v400
    %1976 = vmatmul.bf16.gmra.mxu0 %v1953
    %v1977 = vpop.f32.mrf.mxu0
    %v1978 = vadd.f32 0.0, %v1977
    %v1979 = vpop.f32.mrf.mxu0
    %1980 = vdwg.mxu0
    %1981 = vmatpush.bf16.msra.mxu0 %v429
    %1982 = vmatpush.bf16.msra.mxu0 %v425
    %1983 = vmatpush.bf16.msra.mxu0 %v421
    %1984 = vmatpush.bf16.msra.mxu0 %v417
    %1985 = vmatpush.bf16.msra.mxu0 %v413
    %1986 = vmatpush.bf16.msra.mxu0 %v409
    %1987 = vmatpush.bf16.msra.mxu0 %v405
    %1988 = vmatpush.bf16.msra.mxu0 %v401
    %1989 = vmatmul.bf16.gmra.mxu0 %v1953
    %v1990 = vpop.f32.mrf.mxu0
    %v1991 = vadd.f32 0.0, %v1990
    %v1992 = vpop.f32.mrf.mxu0
    %1993 = vdwg.mxu0
    %1994 = vmatpush.bf16.msra.mxu0 %v430
    %1995 = vmatpush.bf16.msra.mxu0 %v426
    %1996 = vmatpush.bf16.msra.mxu0 %v422
    %1997 = vmatpush.bf16.msra.mxu0 %v418
    %1998 = vmatpush.bf16.msra.mxu0 %v414
    %1999 = vmatpush.bf16.msra.mxu0 %v410
    %2000 = vmatpush.bf16.msra.mxu0 %v406
    %2001 = vmatpush.bf16.msra.mxu0 %v402
    %2002 = vmatmul.bf16.gmra.mxu0 %v1953
    %v2003 = vpop.f32.mrf.mxu0
    %v2004 = vadd.f32 0.0, %v2003
    %v2005 = vpop.f32.mrf.mxu0
    %2006 = vdwg.mxu0
    %v2011 = vrot.slane %v1978, 7
    %v2012 = vrot.slane %v1991, 6
    %v2013 = vrot.slane %v2004, 5
    %v2014 = vsel %vm522, %v1965, %v2011
    %v2015 = vsel %vm524, %v2012, %v2013
    %v2016 = vsel %vm526, %v2014, %v2015
    %v2017 = vsel %vm528, %v1965, %v2011
    %v2018 = vsel %vm530, %v2012, %v2013
    %v2019 = vsel %vm532, %v2017, %v2018
    %v2020 = vrot.slane %v2019, 1
    %v2021 = vsel %vm524, %v1965, %v2011
    %v2022 = vsel %vm536, %v2012, %v2013
    %v2023 = vsel %vm538, %v2021, %v2022
    %v2024 = vrot.slane %v2023, 2
    %v2025 = vsel %vm530, %v1965, %v2011
    %v2026 = vsel %vm542, %v2012, %v2013
    %v2027 = vsel %vm544, %v2025, %v2026
    %v2028 = vrot.slane %v2027, 3
    %v2029 = vsel %vm536, %v1965, %v2011
    %v2030 = vsel %vm548, %v2012, %v2013
    %v2031 = vsel %vm550, %v2029, %v2030
    %v2032 = vrot.slane %v2031, 4
    %v2033 = vsel %vm542, %v1965, %v2011
    %v2034 = vsel %vm554, %v2013, %v2012
    %v2035 = vsel %vm556, %v2033, %v2034
    %v2036 = vrot.slane %v2035, 5
    %v2037 = vsel %vm548, %v1965, %v2011
    %v2038 = vsel %vm522, %v2012, %v2013
    %v2039 = vsel %vm561, %v2038, %v2037
    %v2040 = vrot.slane %v2039, 6
    %v2041 = vsel %vm554, %v2011, %v1965
    %v2042 = vsel %vm528, %v2012, %v2013
    %v2043 = vsel %vm566, %v2042, %v2041
    %v2044 = vrot.slane %v2043, 7
    %v2053 = vadd.f32 %v1900, %v2016
    %v2054 = vadd.f32 %v1902, %v2020
    %v2055 = vadd.f32 %v1904, %v2024
    %v2056 = vadd.f32 %v1906, %v2028
    %v2057 = vadd.f32 %v1908, %v2032
    %v2058 = vadd.f32 %v1910, %v2036
    %v2059 = vadd.f32 %v1912, %v2040
    %v2060 = vadd.f32 %v1914, %v2044
    %v2061 = vxor.u32 %v2053, 2147483648
    %v2062 = vxor.u32 %v2054, 2147483648
    %v2063 = vxor.u32 %v2055, 2147483648
    %v2064 = vxor.u32 %v2056, 2147483648
    %v2065 = vxor.u32 %v2057, 2147483648
    %v2066 = vxor.u32 %v2058, 2147483648
    %v2067 = vxor.u32 %v2059, 2147483648
    %v2068 = vxor.u32 %v2060, 2147483648
    %v2069 = vmul.f32 %v2061, 1.442695
    %v2070 = vpow.pop %v2069
    %v2071 = vmul.f32 %v2062, 1.442695
    %v2072 = vpow.pop %v2071
    %v2073 = vmul.f32 %v2063, 1.442695
    %v2074 = vpow.pop %v2073
    %v2075 = vmul.f32 %v2064, 1.442695
    %v2076 = vpow.pop %v2075
    %v2077 = vmul.f32 %v2065, 1.442695
    %v2078 = vpow.pop %v2077
    %v2079 = vmul.f32 %v2066, 1.442695
    %v2080 = vpow.pop %v2079
    %v2081 = vmul.f32 %v2067, 1.442695
    %v2082 = vpow.pop %v2081
    %v2083 = vmul.f32 %v2068, 1.442695
    %v2084 = vpow.pop %v2083
    %v2085 = vadd.f32 %v2070, 1.0
    %v2086 = vadd.f32 %v2072, 1.0
    %v2087 = vadd.f32 %v2074, 1.0
    %v2088 = vadd.f32 %v2076, 1.0
    %v2089 = vadd.f32 %v2078, 1.0
    %v2090 = vadd.f32 %v2080, 1.0
    %v2091 = vadd.f32 %v2082, 1.0
    %v2092 = vadd.f32 %v2084, 1.0
    %v2093 = vrcp.pop %v2085
    %v2094 = vmul.f32 %v2085, %v2093
    %v2095 = vsub.f32 1.0, %v2094
    %v2096 = vmul.f32 %v2093, %v2095
    %v2097 = vadd.f32 %v2093, %v2096
    %vm2098 = vweird.f32 %v2085
    %vm2099 = vweird.f32 %v2093
    %vm2100 = vmor %vm2098, %vm2099
    %v2101 = vsel %vm2100, %v2093, %v2097
    %v2102 = vand.u32 2147483647, %v2085
    %vm2103 = vcmp.eq.f32.partialorder %v2102, 8.507059e+37
    %v2104 = vand.u32 %v2085, 2147483648
    %v2105 = vor.u32 1.1754944e-38, %v2104
    %v2106 = vsel %vm2103, %v2105, %v2101
    %v2107 = vmul.f32 1.0, %v2106
    %v2108 = vrcp.pop %v2086
    %v2109 = vmul.f32 %v2086, %v2108
    %v2110 = vsub.f32 1.0, %v2109
    %v2111 = vmul.f32 %v2108, %v2110
    %v2112 = vadd.f32 %v2108, %v2111
    %vm2113 = vweird.f32 %v2086
    %vm2114 = vweird.f32 %v2108
    %vm2115 = vmor %vm2113, %vm2114
    %v2116 = vsel %vm2115, %v2108, %v2112
    %v2117 = vand.u32 2147483647, %v2086
    %vm2118 = vcmp.eq.f32.partialorder %v2117, 8.507059e+37
    %v2119 = vand.u32 %v2086, 2147483648
    %v2120 = vor.u32 1.1754944e-38, %v2119
    %v2121 = vsel %vm2118, %v2120, %v2116
    %v2122 = vmul.f32 1.0, %v2121
    %v2123 = vrcp.pop %v2087
    %v2124 = vmul.f32 %v2087, %v2123
    %v2125 = vsub.f32 1.0, %v2124
    %v2126 = vmul.f32 %v2123, %v2125
    %v2127 = vadd.f32 %v2123, %v2126
    %vm2128 = vweird.f32 %v2087
    %vm2129 = vweird.f32 %v2123
    %vm2130 = vmor %vm2128, %vm2129
    %v2131 = vsel %vm2130, %v2123, %v2127
    %v2132 = vand.u32 2147483647, %v2087
    %vm2133 = vcmp.eq.f32.partialorder %v2132, 8.507059e+37
    %v2134 = vand.u32 %v2087, 2147483648
    %v2135 = vor.u32 1.1754944e-38, %v2134
    %v2136 = vsel %vm2133, %v2135, %v2131
    %v2137 = vmul.f32 1.0, %v2136
    %v2138 = vrcp.pop %v2088
    %v2139 = vmul.f32 %v2088, %v2138
    %v2140 = vsub.f32 1.0, %v2139
    %v2141 = vmul.f32 %v2138, %v2140
    %v2142 = vadd.f32 %v2138, %v2141
    %vm2143 = vweird.f32 %v2088
    %vm2144 = vweird.f32 %v2138
    %vm2145 = vmor %vm2143, %vm2144
    %v2146 = vsel %vm2145, %v2138, %v2142
    %v2147 = vand.u32 2147483647, %v2088
    %vm2148 = vcmp.eq.f32.partialorder %v2147, 8.507059e+37
    %v2149 = vand.u32 %v2088, 2147483648
    %v2150 = vor.u32 1.1754944e-38, %v2149
    %v2151 = vsel %vm2148, %v2150, %v2146
    %v2152 = vmul.f32 1.0, %v2151
    %v2153 = vrcp.pop %v2089
    %v2154 = vmul.f32 %v2089, %v2153
    %v2155 = vsub.f32 1.0, %v2154
    %v2156 = vmul.f32 %v2153, %v2155
    %v2157 = vadd.f32 %v2153, %v2156
    %vm2158 = vweird.f32 %v2089
    %vm2159 = vweird.f32 %v2153
    %vm2160 = vmor %vm2158, %vm2159
    %v2161 = vsel %vm2160, %v2153, %v2157
    %v2162 = vand.u32 2147483647, %v2089
    %vm2163 = vcmp.eq.f32.partialorder %v2162, 8.507059e+37
    %v2164 = vand.u32 %v2089, 2147483648
    %v2165 = vor.u32 1.1754944e-38, %v2164
    %v2166 = vsel %vm2163, %v2165, %v2161
    %v2167 = vmul.f32 1.0, %v2166
    %v2168 = vrcp.pop %v2090
    %v2169 = vmul.f32 %v2090, %v2168
    %v2170 = vsub.f32 1.0, %v2169
    %v2171 = vmul.f32 %v2168, %v2170
    %v2172 = vadd.f32 %v2168, %v2171
    %vm2173 = vweird.f32 %v2090
    %vm2174 = vweird.f32 %v2168
    %vm2175 = vmor %vm2173, %vm2174
    %v2176 = vsel %vm2175, %v2168, %v2172
    %v2177 = vand.u32 2147483647, %v2090
    %vm2178 = vcmp.eq.f32.partialorder %v2177, 8.507059e+37
    %v2179 = vand.u32 %v2090, 2147483648
    %v2180 = vor.u32 1.1754944e-38, %v2179
    %v2181 = vsel %vm2178, %v2180, %v2176
    %v2182 = vmul.f32 1.0, %v2181
    %v2183 = vrcp.pop %v2091
    %v2184 = vmul.f32 %v2091, %v2183
    %v2185 = vsub.f32 1.0, %v2184
    %v2186 = vmul.f32 %v2183, %v2185
    %v2187 = vadd.f32 %v2183, %v2186
    %vm2188 = vweird.f32 %v2091
    %vm2189 = vweird.f32 %v2183
    %vm2190 = vmor %vm2188, %vm2189
    %v2191 = vsel %vm2190, %v2183, %v2187
    %v2192 = vand.u32 2147483647, %v2091
    %vm2193 = vcmp.eq.f32.partialorder %v2192, 8.507059e+37
    %v2194 = vand.u32 %v2091, 2147483648
    %v2195 = vor.u32 1.1754944e-38, %v2194
    %v2196 = vsel %vm2193, %v2195, %v2191
    %v2197 = vmul.f32 1.0, %v2196
    %v2198 = vrcp.pop %v2092
    %v2199 = vmul.f32 %v2092, %v2198
    %v2200 = vsub.f32 1.0, %v2199
    %v2201 = vmul.f32 %v2198, %v2200
    %v2202 = vadd.f32 %v2198, %v2201
    %vm2203 = vweird.f32 %v2092
    %vm2204 = vweird.f32 %v2198
    %vm2205 = vmor %vm2203, %vm2204
    %v2206 = vsel %vm2205, %v2198, %v2202
    %v2207 = vand.u32 2147483647, %v2092
    %vm2208 = vcmp.eq.f32.partialorder %v2207, 8.507059e+37
    %v2209 = vand.u32 %v2092, 2147483648
    %v2210 = vor.u32 1.1754944e-38, %v2209
    %v2211 = vsel %vm2208, %v2210, %v2206
    %v2212 = vmul.f32 1.0, %v2211
    %v2221 = vrot.slane %v2053, 1
    %v2222 = vrot.slane %v2054, 1
    %v2223 = vrot.slane %v2055, 1
    %v2224 = vrot.slane %v2056, 1
    %v2225 = vrot.slane %v2057, 1
    %v2226 = vrot.slane %v2058, 1
    %v2227 = vrot.slane %v2059, 1
    %v2228 = vrot.slane %v2060, 1
    %v2237 = vxor.u32 %v2221, 2147483648
    %v2238 = vxor.u32 %v2222, 2147483648
    %v2239 = vxor.u32 %v2223, 2147483648
    %v2240 = vxor.u32 %v2224, 2147483648
    %v2241 = vxor.u32 %v2225, 2147483648
    %v2242 = vxor.u32 %v2226, 2147483648
    %v2243 = vxor.u32 %v2227, 2147483648
    %v2244 = vxor.u32 %v2228, 2147483648
    %v2245 = vmul.f32 %v2237, 1.442695
    %v2246 = vpow.pop %v2245
    %v2247 = vmul.f32 %v2238, 1.442695
    %v2248 = vpow.pop %v2247
    %v2249 = vmul.f32 %v2239, 1.442695
    %v2250 = vpow.pop %v2249
    %v2251 = vmul.f32 %v2240, 1.442695
    %v2252 = vpow.pop %v2251
    %v2253 = vmul.f32 %v2241, 1.442695
    %v2254 = vpow.pop %v2253
    %v2255 = vmul.f32 %v2242, 1.442695
    %v2256 = vpow.pop %v2255
    %v2257 = vmul.f32 %v2243, 1.442695
    %v2258 = vpow.pop %v2257
    %v2259 = vmul.f32 %v2244, 1.442695
    %v2260 = vpow.pop %v2259
    %v2261 = vadd.f32 %v2246, 1.0
    %v2262 = vadd.f32 %v2248, 1.0
    %v2263 = vadd.f32 %v2250, 1.0
    %v2264 = vadd.f32 %v2252, 1.0
    %v2265 = vadd.f32 %v2254, 1.0
    %v2266 = vadd.f32 %v2256, 1.0
    %v2267 = vadd.f32 %v2258, 1.0
    %v2268 = vadd.f32 %v2260, 1.0
    %v2269 = vrcp.pop %v2261
    %v2270 = vmul.f32 %v2261, %v2269
    %v2271 = vsub.f32 1.0, %v2270
    %v2272 = vmul.f32 %v2269, %v2271
    %v2273 = vadd.f32 %v2269, %v2272
    %vm2274 = vweird.f32 %v2261
    %vm2275 = vweird.f32 %v2269
    %vm2276 = vmor %vm2274, %vm2275
    %v2277 = vsel %vm2276, %v2269, %v2273
    %v2278 = vand.u32 2147483647, %v2261
    %vm2279 = vcmp.eq.f32.partialorder %v2278, 8.507059e+37
    %v2280 = vand.u32 %v2261, 2147483648
    %v2281 = vor.u32 1.1754944e-38, %v2280
    %v2282 = vsel %vm2279, %v2281, %v2277
    %v2283 = vmul.f32 1.0, %v2282
    %v2284 = vrcp.pop %v2262
    %v2285 = vmul.f32 %v2262, %v2284
    %v2286 = vsub.f32 1.0, %v2285
    %v2287 = vmul.f32 %v2284, %v2286
    %v2288 = vadd.f32 %v2284, %v2287
    %vm2289 = vweird.f32 %v2262
    %vm2290 = vweird.f32 %v2284
    %vm2291 = vmor %vm2289, %vm2290
    %v2292 = vsel %vm2291, %v2284, %v2288
    %v2293 = vand.u32 2147483647, %v2262
    %vm2294 = vcmp.eq.f32.partialorder %v2293, 8.507059e+37
    %v2295 = vand.u32 %v2262, 2147483648
    %v2296 = vor.u32 1.1754944e-38, %v2295
    %v2297 = vsel %vm2294, %v2296, %v2292
    %v2298 = vmul.f32 1.0, %v2297
    %v2299 = vrcp.pop %v2263
    %v2300 = vmul.f32 %v2263, %v2299
    %v2301 = vsub.f32 1.0, %v2300
    %v2302 = vmul.f32 %v2299, %v2301
    %v2303 = vadd.f32 %v2299, %v2302
    %vm2304 = vweird.f32 %v2263
    %vm2305 = vweird.f32 %v2299
    %vm2306 = vmor %vm2304, %vm2305
    %v2307 = vsel %vm2306, %v2299, %v2303
    %v2308 = vand.u32 2147483647, %v2263
    %vm2309 = vcmp.eq.f32.partialorder %v2308, 8.507059e+37
    %v2310 = vand.u32 %v2263, 2147483648
    %v2311 = vor.u32 1.1754944e-38, %v2310
    %v2312 = vsel %vm2309, %v2311, %v2307
    %v2313 = vmul.f32 1.0, %v2312
    %v2314 = vrcp.pop %v2264
    %v2315 = vmul.f32 %v2264, %v2314
    %v2316 = vsub.f32 1.0, %v2315
    %v2317 = vmul.f32 %v2314, %v2316
    %v2318 = vadd.f32 %v2314, %v2317
    %vm2319 = vweird.f32 %v2264
    %vm2320 = vweird.f32 %v2314
    %vm2321 = vmor %vm2319, %vm2320
    %v2322 = vsel %vm2321, %v2314, %v2318
    %v2323 = vand.u32 2147483647, %v2264
    %vm2324 = vcmp.eq.f32.partialorder %v2323, 8.507059e+37
    %v2325 = vand.u32 %v2264, 2147483648
    %v2326 = vor.u32 1.1754944e-38, %v2325
    %v2327 = vsel %vm2324, %v2326, %v2322
    %v2328 = vmul.f32 1.0, %v2327
    %v2329 = vrcp.pop %v2265
    %v2330 = vmul.f32 %v2265, %v2329
    %v2331 = vsub.f32 1.0, %v2330
    %v2332 = vmul.f32 %v2329, %v2331
    %v2333 = vadd.f32 %v2329, %v2332
    %vm2334 = vweird.f32 %v2265
    %vm2335 = vweird.f32 %v2329
    %vm2336 = vmor %vm2334, %vm2335
    %v2337 = vsel %vm2336, %v2329, %v2333
    %v2338 = vand.u32 2147483647, %v2265
    %vm2339 = vcmp.eq.f32.partialorder %v2338, 8.507059e+37
    %v2340 = vand.u32 %v2265, 2147483648
    %v2341 = vor.u32 1.1754944e-38, %v2340
    %v2342 = vsel %vm2339, %v2341, %v2337
    %v2343 = vmul.f32 1.0, %v2342
    %v2344 = vrcp.pop %v2266
    %v2345 = vmul.f32 %v2266, %v2344
    %v2346 = vsub.f32 1.0, %v2345
    %v2347 = vmul.f32 %v2344, %v2346
    %v2348 = vadd.f32 %v2344, %v2347
    %vm2349 = vweird.f32 %v2266
    %vm2350 = vweird.f32 %v2344
    %vm2351 = vmor %vm2349, %vm2350
    %v2352 = vsel %vm2351, %v2344, %v2348
    %v2353 = vand.u32 2147483647, %v2266
    %vm2354 = vcmp.eq.f32.partialorder %v2353, 8.507059e+37
    %v2355 = vand.u32 %v2266, 2147483648
    %v2356 = vor.u32 1.1754944e-38, %v2355
    %v2357 = vsel %vm2354, %v2356, %v2352
    %v2358 = vmul.f32 1.0, %v2357
    %v2359 = vrcp.pop %v2267
    %v2360 = vmul.f32 %v2267, %v2359
    %v2361 = vsub.f32 1.0, %v2360
    %v2362 = vmul.f32 %v2359, %v2361
    %v2363 = vadd.f32 %v2359, %v2362
    %vm2364 = vweird.f32 %v2267
    %vm2365 = vweird.f32 %v2359
    %vm2366 = vmor %vm2364, %vm2365
    %v2367 = vsel %vm2366, %v2359, %v2363
    %v2368 = vand.u32 2147483647, %v2267
    %vm2369 = vcmp.eq.f32.partialorder %v2368, 8.507059e+37
    %v2370 = vand.u32 %v2267, 2147483648
    %v2371 = vor.u32 1.1754944e-38, %v2370
    %v2372 = vsel %vm2369, %v2371, %v2367
    %v2373 = vmul.f32 1.0, %v2372
    %v2374 = vrcp.pop %v2268
    %v2375 = vmul.f32 %v2268, %v2374
    %v2376 = vsub.f32 1.0, %v2375
    %v2377 = vmul.f32 %v2374, %v2376
    %v2378 = vadd.f32 %v2374, %v2377
    %vm2379 = vweird.f32 %v2268
    %vm2380 = vweird.f32 %v2374
    %vm2381 = vmor %vm2379, %vm2380
    %v2382 = vsel %vm2381, %v2374, %v2378
    %v2383 = vand.u32 2147483647, %v2268
    %vm2384 = vcmp.eq.f32.partialorder %v2383, 8.507059e+37
    %v2385 = vand.u32 %v2268, 2147483648
    %v2386 = vor.u32 1.1754944e-38, %v2385
    %v2387 = vsel %vm2384, %v2386, %v2382
    %v2388 = vmul.f32 1.0, %v2387
    %v2389 = vrot.slane %v2053, 2
    %v2390 = vrot.slane %v2054, 2
    %v2391 = vrot.slane %v2055, 2
    %v2392 = vrot.slane %v2056, 2
    %v2393 = vrot.slane %v2057, 2
    %v2394 = vrot.slane %v2058, 2
    %v2395 = vrot.slane %v2059, 2
    %v2396 = vrot.slane %v2060, 2
    %v2405 = vtanh.pop %v2389
    %v2406 = vtanh.pop %v2390
    %v2407 = vtanh.pop %v2391
    %v2408 = vtanh.pop %v2392
    %v2409 = vtanh.pop %v2393
    %v2410 = vtanh.pop %v2394
    %v2411 = vtanh.pop %v2395
    %v2412 = vtanh.pop %v2396
    %v2413 = vrot.slane %v2053, 3
    %v2414 = vrot.slane %v2054, 3
    %v2415 = vrot.slane %v2055, 3
    %v2416 = vrot.slane %v2056, 3
    %v2417 = vrot.slane %v2057, 3
    %v2418 = vrot.slane %v2058, 3
    %v2419 = vrot.slane %v2059, 3
    %v2420 = vrot.slane %v2060, 3
    %v2429 = vxor.u32 %v2413, 2147483648
    %v2430 = vxor.u32 %v2414, 2147483648
    %v2431 = vxor.u32 %v2415, 2147483648
    %v2432 = vxor.u32 %v2416, 2147483648
    %v2433 = vxor.u32 %v2417, 2147483648
    %v2434 = vxor.u32 %v2418, 2147483648
    %v2435 = vxor.u32 %v2419, 2147483648
    %v2436 = vxor.u32 %v2420, 2147483648
    %v2437 = vmul.f32 %v2429, 1.442695
    %v2438 = vpow.pop %v2437
    %v2439 = vmul.f32 %v2430, 1.442695
    %v2440 = vpow.pop %v2439
    %v2441 = vmul.f32 %v2431, 1.442695
    %v2442 = vpow.pop %v2441
    %v2443 = vmul.f32 %v2432, 1.442695
    %v2444 = vpow.pop %v2443
    %v2445 = vmul.f32 %v2433, 1.442695
    %v2446 = vpow.pop %v2445
    %v2447 = vmul.f32 %v2434, 1.442695
    %v2448 = vpow.pop %v2447
    %v2449 = vmul.f32 %v2435, 1.442695
    %v2450 = vpow.pop %v2449
    %v2451 = vmul.f32 %v2436, 1.442695
    %v2452 = vpow.pop %v2451
    %v2453 = vadd.f32 %v2438, 1.0
    %v2454 = vadd.f32 %v2440, 1.0
    %v2455 = vadd.f32 %v2442, 1.0
    %v2456 = vadd.f32 %v2444, 1.0
    %v2457 = vadd.f32 %v2446, 1.0
    %v2458 = vadd.f32 %v2448, 1.0
    %v2459 = vadd.f32 %v2450, 1.0
    %v2460 = vadd.f32 %v2452, 1.0
    %v2461 = vrcp.pop %v2453
    %v2462 = vmul.f32 %v2453, %v2461
    %v2463 = vsub.f32 1.0, %v2462
    %v2464 = vmul.f32 %v2461, %v2463
    %v2465 = vadd.f32 %v2461, %v2464
    %vm2466 = vweird.f32 %v2453
    %vm2467 = vweird.f32 %v2461
    %vm2468 = vmor %vm2466, %vm2467
    %v2469 = vsel %vm2468, %v2461, %v2465
    %v2470 = vand.u32 2147483647, %v2453
    %vm2471 = vcmp.eq.f32.partialorder %v2470, 8.507059e+37
    %v2472 = vand.u32 %v2453, 2147483648
    %v2473 = vor.u32 1.1754944e-38, %v2472
    %v2474 = vsel %vm2471, %v2473, %v2469
    %v2475 = vmul.f32 1.0, %v2474
    %v2476 = vrcp.pop %v2454
    %v2477 = vmul.f32 %v2454, %v2476
    %v2478 = vsub.f32 1.0, %v2477
    %v2479 = vmul.f32 %v2476, %v2478
    %v2480 = vadd.f32 %v2476, %v2479
    %vm2481 = vweird.f32 %v2454
    %vm2482 = vweird.f32 %v2476
    %vm2483 = vmor %vm2481, %vm2482
    %v2484 = vsel %vm2483, %v2476, %v2480
    %v2485 = vand.u32 2147483647, %v2454
    %vm2486 = vcmp.eq.f32.partialorder %v2485, 8.507059e+37
    %v2487 = vand.u32 %v2454, 2147483648
    %v2488 = vor.u32 1.1754944e-38, %v2487
    %v2489 = vsel %vm2486, %v2488, %v2484
    %v2490 = vmul.f32 1.0, %v2489
    %v2491 = vrcp.pop %v2455
    %v2492 = vmul.f32 %v2455, %v2491
    %v2493 = vsub.f32 1.0, %v2492
    %v2494 = vmul.f32 %v2491, %v2493
    %v2495 = vadd.f32 %v2491, %v2494
    %vm2496 = vweird.f32 %v2455
    %vm2497 = vweird.f32 %v2491
    %vm2498 = vmor %vm2496, %vm2497
    %v2499 = vsel %vm2498, %v2491, %v2495
    %v2500 = vand.u32 2147483647, %v2455
    %vm2501 = vcmp.eq.f32.partialorder %v2500, 8.507059e+37
    %v2502 = vand.u32 %v2455, 2147483648
    %v2503 = vor.u32 1.1754944e-38, %v2502
    %v2504 = vsel %vm2501, %v2503, %v2499
    %v2505 = vmul.f32 1.0, %v2504
    %v2506 = vrcp.pop %v2456
    %v2507 = vmul.f32 %v2456, %v2506
    %v2508 = vsub.f32 1.0, %v2507
    %v2509 = vmul.f32 %v2506, %v2508
    %v2510 = vadd.f32 %v2506, %v2509
    %vm2511 = vweird.f32 %v2456
    %vm2512 = vweird.f32 %v2506
    %vm2513 = vmor %vm2511, %vm2512
    %v2514 = vsel %vm2513, %v2506, %v2510
    %v2515 = vand.u32 2147483647, %v2456
    %vm2516 = vcmp.eq.f32.partialorder %v2515, 8.507059e+37
    %v2517 = vand.u32 %v2456, 2147483648
    %v2518 = vor.u32 1.1754944e-38, %v2517
    %v2519 = vsel %vm2516, %v2518, %v2514
    %v2520 = vmul.f32 1.0, %v2519
    %v2521 = vrcp.pop %v2457
    %v2522 = vmul.f32 %v2457, %v2521
    %v2523 = vsub.f32 1.0, %v2522
    %v2524 = vmul.f32 %v2521, %v2523
    %v2525 = vadd.f32 %v2521, %v2524
    %vm2526 = vweird.f32 %v2457
    %vm2527 = vweird.f32 %v2521
    %vm2528 = vmor %vm2526, %vm2527
    %v2529 = vsel %vm2528, %v2521, %v2525
    %v2530 = vand.u32 2147483647, %v2457
    %vm2531 = vcmp.eq.f32.partialorder %v2530, 8.507059e+37
    %v2532 = vand.u32 %v2457, 2147483648
    %v2533 = vor.u32 1.1754944e-38, %v2532
    %v2534 = vsel %vm2531, %v2533, %v2529
    %v2535 = vmul.f32 1.0, %v2534
    %v2536 = vrcp.pop %v2458
    %v2537 = vmul.f32 %v2458, %v2536
    %v2538 = vsub.f32 1.0, %v2537
    %v2539 = vmul.f32 %v2536, %v2538
    %v2540 = vadd.f32 %v2536, %v2539
    %vm2541 = vweird.f32 %v2458
    %vm2542 = vweird.f32 %v2536
    %vm2543 = vmor %vm2541, %vm2542
    %v2544 = vsel %vm2543, %v2536, %v2540
    %v2545 = vand.u32 2147483647, %v2458
    %vm2546 = vcmp.eq.f32.partialorder %v2545, 8.507059e+37
    %v2547 = vand.u32 %v2458, 2147483648
    %v2548 = vor.u32 1.1754944e-38, %v2547
    %v2549 = vsel %vm2546, %v2548, %v2544
    %v2550 = vmul.f32 1.0, %v2549
    %v2551 = vrcp.pop %v2459
    %v2552 = vmul.f32 %v2459, %v2551
    %v2553 = vsub.f32 1.0, %v2552
    %v2554 = vmul.f32 %v2551, %v2553
    %v2555 = vadd.f32 %v2551, %v2554
    %vm2556 = vweird.f32 %v2459
    %vm2557 = vweird.f32 %v2551
    %vm2558 = vmor %vm2556, %vm2557
    %v2559 = vsel %vm2558, %v2551, %v2555
    %v2560 = vand.u32 2147483647, %v2459
    %vm2561 = vcmp.eq.f32.partialorder %v2560, 8.507059e+37
    %v2562 = vand.u32 %v2459, 2147483648
    %v2563 = vor.u32 1.1754944e-38, %v2562
    %v2564 = vsel %vm2561, %v2563, %v2559
    %v2565 = vmul.f32 1.0, %v2564
    %v2566 = vrcp.pop %v2460
    %v2567 = vmul.f32 %v2460, %v2566
    %v2568 = vsub.f32 1.0, %v2567
    %v2569 = vmul.f32 %v2566, %v2568
    %v2570 = vadd.f32 %v2566, %v2569
    %vm2571 = vweird.f32 %v2460
    %vm2572 = vweird.f32 %v2566
    %vm2573 = vmor %vm2571, %vm2572
    %v2574 = vsel %vm2573, %v2566, %v2570
    %v2575 = vand.u32 2147483647, %v2460
    %vm2576 = vcmp.eq.f32.partialorder %v2575, 8.507059e+37
    %v2577 = vand.u32 %v2460, 2147483648
    %v2578 = vor.u32 1.1754944e-38, %v2577
    %v2579 = vsel %vm2576, %v2578, %v2574
    %v2580 = vmul.f32 1.0, %v2579
    %v2581 = vmul.f32 %v2283, %v1867
    %v2582 = vmul.f32 %v2298, %v1868
    %v2583 = vmul.f32 %v2313, %v1869
    %v2584 = vmul.f32 %v2328, %v1870
    %v2585 = vmul.f32 %v2343, %v1871
    %v2586 = vmul.f32 %v2358, %v1872
    %v2587 = vmul.f32 %v2373, %v1873
    %v2588 = vmul.f32 %v2388, %v1874
    %v2589 = vmul.f32 %v2107, %v2405
    %v2590 = vmul.f32 %v2122, %v2406
    %v2591 = vmul.f32 %v2137, %v2407
    %v2592 = vmul.f32 %v2152, %v2408
    %v2593 = vmul.f32 %v2167, %v2409
    %v2594 = vmul.f32 %v2182, %v2410
    %v2595 = vmul.f32 %v2197, %v2411
    %v2596 = vmul.f32 %v2212, %v2412
    %v2597 = vadd.f32 %v2581, %v2589
    %v2598 = vadd.f32 %v2582, %v2590
    %v2599 = vadd.f32 %v2583, %v2591
    %v2600 = vadd.f32 %v2584, %v2592
    %v2601 = vadd.f32 %v2585, %v2593
    %v2602 = vadd.f32 %v2586, %v2594
    %v2603 = vadd.f32 %v2587, %v2595
    %v2604 = vadd.f32 %v2588, %v2596
    %v2605 = vtanh.pop %v2597
    %v2606 = vtanh.pop %v2598
    %v2607 = vtanh.pop %v2599
    %v2608 = vtanh.pop %v2600
    %v2609 = vtanh.pop %v2601
    %v2610 = vtanh.pop %v2602
    %v2611 = vtanh.pop %v2603
    %v2612 = vtanh.pop %v2604
    %v2613 = vmul.f32 %v2475, %v2605
    %v2614 = vmul.f32 %v2490, %v2606
    %v2615 = vmul.f32 %v2505, %v2607
    %v2616 = vmul.f32 %v2520, %v2608
    %v2617 = vmul.f32 %v2535, %v2609
    %v2618 = vmul.f32 %v2550, %v2610
    %v2619 = vmul.f32 %v2565, %v2611
    %v2620 = vmul.f32 %v2580, %v2612
    %2621 = vst [vmem:[#allocation5 + $0x2] sm:$0x1] %v2613
    %2622 = vst [vmem:[#allocation5 + $0xa] sm:$0x1] %v2614
    %2623 = vst [vmem:[#allocation5 + $0x12] sm:$0x1] %v2615
    %2624 = vst [vmem:[#allocation5 + $0x1a] sm:$0x1] %v2616
    %2625 = vst [vmem:[#allocation5 + $0x22] sm:$0x1] %v2617
    %2626 = vst [vmem:[#allocation5 + $0x2a] sm:$0x1] %v2618
    %2627 = vst [vmem:[#allocation5 + $0x32] sm:$0x1] %v2619
    %2628 = vst [vmem:[#allocation5 + $0x3a] sm:$0x1] %v2620
    %s2629 = scalar_lea.vmem [#allocation4], 3
    %v2630 = vld [vmem:[%s2629] ss:$8 sm:$0xf]
    %s2631 = scalar_lea.vmem [#allocation4], 35
    %v2632 = vld [vmem:[%s2631] ss:$8 sm:$0xf]
    %s2633 = scalar_lea.vmem [#allocation4], 67
    %v2634 = vld [vmem:[%s2633] ss:$8 sm:$0xf]
    %s2635 = scalar_lea.vmem [#allocation4], 99
    %v2636 = vld [vmem:[%s2635] ss:$8 sm:$0xf]
    %s2637 = scalar_lea.vmem [#allocation4], 131
    %v2638 = vld [vmem:[%s2637] ss:$8 sm:$0xf]
    %s2639 = scalar_lea.vmem [#allocation4], 163
    %v2640 = vld [vmem:[%s2639] ss:$8 sm:$0xf]
    %s2641 = scalar_lea.vmem [#allocation4], 195
    %v2642 = vld [vmem:[%s2641] ss:$8 sm:$0xf]
    %s2643 = scalar_lea.vmem [#allocation4], 227
    %v2644 = vld [vmem:[%s2643] ss:$8 sm:$0xf]
    %v2645 = vpack.c.bf16 %v2613, %v2613
    %v2646 = vpack.c.bf16 %v2614, %v2614
    %v2647 = vpack.c.bf16 %v2615, %v2615
    %v2648 = vpack.c.bf16 %v2616, %v2616
    %v2649 = vpack.c.bf16 %v2617, %v2617
    %v2650 = vpack.c.bf16 %v2618, %v2618
    %v2651 = vpack.c.bf16 %v2619, %v2619
    %v2652 = vpack.c.bf16 %v2620, %v2620
    %v2661 = vunpack.c.l.b16 %v2645
    %v2662 = vunpack.c.l.b16 %v2646
    %v2663 = vunpack.c.l.b16 %v2647
    %v2664 = vunpack.c.l.b16 %v2648
    %v2665 = vunpack.c.l.b16 %v2649
    %v2666 = vunpack.c.l.b16 %v2650
    %v2667 = vunpack.c.l.b16 %v2651
    %v2668 = vunpack.c.l.b16 %v2652
    %v2669 = vrot.slane %v2662, 7
    %v2670 = vsel %vm528, %v2669, %v2661
    %v2671 = vrot.slane %v2663, 6
    %v2672 = vsel %vm524, %v2671, %v2670
    %v2673 = vrot.slane %v2664, 5
    %v2674 = vsel %vm530, %v2673, %v2672
    %v2675 = vrot.slane %v2665, 4
    %v2676 = vsel %vm536, %v2675, %v2674
    %v2677 = vrot.slane %v2666, 3
    %v2678 = vsel %vm542, %v2677, %v2676
    %v2679 = vrot.slane %v2667, 2
    %v2680 = vsel %vm548, %v2679, %v2678
    %v2681 = vrot.slane %v2668, 1
    %v2682 = vsel %vm1221, %v2681, %v2680
    %v2683 = vpack.c.b16 %v2682, %v2682
    %2685 = vmatpush.bf16.msra.mxu0 %v427
    %2686 = vmatpush.bf16.msra.mxu0 %v423
    %2687 = vmatpush.bf16.msra.mxu0 %v419
    %2688 = vmatpush.bf16.msra.mxu0 %v415
    %2689 = vmatpush.bf16.msra.mxu0 %v411
    %2690 = vmatpush.bf16.msra.mxu0 %v407
    %2691 = vmatpush.bf16.msra.mxu0 %v403
    %2692 = vmatpush.bf16.msra.mxu0 %v399
    %2693 = vmatmul.bf16.gmra.mxu0 %v2683
    %v2694 = vpop.f32.mrf.mxu0
    %v2695 = vadd.f32 0.0, %v2694
    %v2696 = vpop.f32.mrf.mxu0
    %2697 = vdwg.mxu0
    %2698 = vmatpush.bf16.msra.mxu0 %v428
    %2699 = vmatpush.bf16.msra.mxu0 %v424
    %2700 = vmatpush.bf16.msra.mxu0 %v420
    %2701 = vmatpush.bf16.msra.mxu0 %v416
    %2702 = vmatpush.bf16.msra.mxu0 %v412
    %2703 = vmatpush.bf16.msra.mxu0 %v408
    %2704 = vmatpush.bf16.msra.mxu0 %v404
    %2705 = vmatpush.bf16.msra.mxu0 %v400
    %2706 = vmatmul.bf16.gmra.mxu0 %v2683
    %v2707 = vpop.f32.mrf.mxu0
    %v2708 = vadd.f32 0.0, %v2707
    %v2709 = vpop.f32.mrf.mxu0
    %2710 = vdwg.mxu0
    %2711 = vmatpush.bf16.msra.mxu0 %v429
    %2712 = vmatpush.bf16.msra.mxu0 %v425
    %2713 = vmatpush.bf16.msra.mxu0 %v421
    %2714 = vmatpush.bf16.msra.mxu0 %v417
    %2715 = vmatpush.bf16.msra.mxu0 %v413
    %2716 = vmatpush.bf16.msra.mxu0 %v409
    %2717 = vmatpush.bf16.msra.mxu0 %v405
    %2718 = vmatpush.bf16.msra.mxu0 %v401
    %2719 = vmatmul.bf16.gmra.mxu0 %v2683
    %v2720 = vpop.f32.mrf.mxu0
    %v2721 = vadd.f32 0.0, %v2720
    %v2722 = vpop.f32.mrf.mxu0
    %2723 = vdwg.mxu0
    %2724 = vmatpush.bf16.msra.mxu0 %v430
    %2725 = vmatpush.bf16.msra.mxu0 %v426
    %2726 = vmatpush.bf16.msra.mxu0 %v422
    %2727 = vmatpush.bf16.msra.mxu0 %v418
    %2728 = vmatpush.bf16.msra.mxu0 %v414
    %2729 = vmatpush.bf16.msra.mxu0 %v410
    %2730 = vmatpush.bf16.msra.mxu0 %v406
    %2731 = vmatpush.bf16.msra.mxu0 %v402
    %2732 = vmatmul.bf16.gmra.mxu0 %v2683
    %v2733 = vpop.f32.mrf.mxu0
    %v2734 = vadd.f32 0.0, %v2733
    %v2735 = vpop.f32.mrf.mxu0
    %2736 = vdwg.mxu0
    %v2741 = vrot.slane %v2708, 7
    %v2742 = vrot.slane %v2721, 6
    %v2743 = vrot.slane %v2734, 5
    %v2744 = vsel %vm522, %v2695, %v2741
    %v2745 = vsel %vm524, %v2742, %v2743
    %v2746 = vsel %vm526, %v2744, %v2745
    %v2747 = vsel %vm528, %v2695, %v2741
    %v2748 = vsel %vm530, %v2742, %v2743
    %v2749 = vsel %vm532, %v2747, %v2748
    %v2750 = vrot.slane %v2749, 1
    %v2751 = vsel %vm524, %v2695, %v2741
    %v2752 = vsel %vm536, %v2742, %v2743
    %v2753 = vsel %vm538, %v2751, %v2752
    %v2754 = vrot.slane %v2753, 2
    %v2755 = vsel %vm530, %v2695, %v2741
    %v2756 = vsel %vm542, %v2742, %v2743
    %v2757 = vsel %vm544, %v2755, %v2756
    %v2758 = vrot.slane %v2757, 3
    %v2759 = vsel %vm536, %v2695, %v2741
    %v2760 = vsel %vm548, %v2742, %v2743
    %v2761 = vsel %vm550, %v2759, %v2760
    %v2762 = vrot.slane %v2761, 4
    %v2763 = vsel %vm542, %v2695, %v2741
    %v2764 = vsel %vm554, %v2743, %v2742
    %v2765 = vsel %vm556, %v2763, %v2764
    %v2766 = vrot.slane %v2765, 5
    %v2767 = vsel %vm548, %v2695, %v2741
    %v2768 = vsel %vm522, %v2742, %v2743
    %v2769 = vsel %vm561, %v2768, %v2767
    %v2770 = vrot.slane %v2769, 6
    %v2771 = vsel %vm554, %v2741, %v2695
    %v2772 = vsel %vm528, %v2742, %v2743
    %v2773 = vsel %vm566, %v2772, %v2771
    %v2774 = vrot.slane %v2773, 7
    %v2783 = vadd.f32 %v2630, %v2746
    %v2784 = vadd.f32 %v2632, %v2750
    %v2785 = vadd.f32 %v2634, %v2754
    %v2786 = vadd.f32 %v2636, %v2758
    %v2787 = vadd.f32 %v2638, %v2762
    %v2788 = vadd.f32 %v2640, %v2766
    %v2789 = vadd.f32 %v2642, %v2770
    %v2790 = vadd.f32 %v2644, %v2774
    %v2791 = vxor.u32 %v2783, 2147483648
    %v2792 = vxor.u32 %v2784, 2147483648
    %v2793 = vxor.u32 %v2785, 2147483648
    %v2794 = vxor.u32 %v2786, 2147483648
    %v2795 = vxor.u32 %v2787, 2147483648
    %v2796 = vxor.u32 %v2788, 2147483648
    %v2797 = vxor.u32 %v2789, 2147483648
    %v2798 = vxor.u32 %v2790, 2147483648
    %v2799 = vmul.f32 %v2791, 1.442695
    %v2800 = vpow.pop %v2799
    %v2801 = vmul.f32 %v2792, 1.442695
    %v2802 = vpow.pop %v2801
    %v2803 = vmul.f32 %v2793, 1.442695
    %v2804 = vpow.pop %v2803
    %v2805 = vmul.f32 %v2794, 1.442695
    %v2806 = vpow.pop %v2805
    %v2807 = vmul.f32 %v2795, 1.442695
    %v2808 = vpow.pop %v2807
    %v2809 = vmul.f32 %v2796, 1.442695
    %v2810 = vpow.pop %v2809
    %v2811 = vmul.f32 %v2797, 1.442695
    %v2812 = vpow.pop %v2811
    %v2813 = vmul.f32 %v2798, 1.442695
    %v2814 = vpow.pop %v2813
    %v2815 = vadd.f32 %v2800, 1.0
    %v2816 = vadd.f32 %v2802, 1.0
    %v2817 = vadd.f32 %v2804, 1.0
    %v2818 = vadd.f32 %v2806, 1.0
    %v2819 = vadd.f32 %v2808, 1.0
    %v2820 = vadd.f32 %v2810, 1.0
    %v2821 = vadd.f32 %v2812, 1.0
    %v2822 = vadd.f32 %v2814, 1.0
    %v2823 = vrcp.pop %v2815
    %v2824 = vmul.f32 %v2815, %v2823
    %v2825 = vsub.f32 1.0, %v2824
    %v2826 = vmul.f32 %v2823, %v2825
    %v2827 = vadd.f32 %v2823, %v2826
    %vm2828 = vweird.f32 %v2815
    %vm2829 = vweird.f32 %v2823
    %vm2830 = vmor %vm2828, %vm2829
    %v2831 = vsel %vm2830, %v2823, %v2827
    %v2832 = vand.u32 2147483647, %v2815
    %vm2833 = vcmp.eq.f32.partialorder %v2832, 8.507059e+37
    %v2834 = vand.u32 %v2815, 2147483648
    %v2835 = vor.u32 1.1754944e-38, %v2834
    %v2836 = vsel %vm2833, %v2835, %v2831
    %v2837 = vmul.f32 1.0, %v2836
    %v2838 = vrcp.pop %v2816
    %v2839 = vmul.f32 %v2816, %v2838
    %v2840 = vsub.f32 1.0, %v2839
    %v2841 = vmul.f32 %v2838, %v2840
    %v2842 = vadd.f32 %v2838, %v2841
    %vm2843 = vweird.f32 %v2816
    %vm2844 = vweird.f32 %v2838
    %vm2845 = vmor %vm2843, %vm2844
    %v2846 = vsel %vm2845, %v2838, %v2842
    %v2847 = vand.u32 2147483647, %v2816
    %vm2848 = vcmp.eq.f32.partialorder %v2847, 8.507059e+37
    %v2849 = vand.u32 %v2816, 2147483648
    %v2850 = vor.u32 1.1754944e-38, %v2849
    %v2851 = vsel %vm2848, %v2850, %v2846
    %v2852 = vmul.f32 1.0, %v2851
    %v2853 = vrcp.pop %v2817
    %v2854 = vmul.f32 %v2817, %v2853
    %v2855 = vsub.f32 1.0, %v2854
    %v2856 = vmul.f32 %v2853, %v2855
    %v2857 = vadd.f32 %v2853, %v2856
    %vm2858 = vweird.f32 %v2817
    %vm2859 = vweird.f32 %v2853
    %vm2860 = vmor %vm2858, %vm2859
    %v2861 = vsel %vm2860, %v2853, %v2857
    %v2862 = vand.u32 2147483647, %v2817
    %vm2863 = vcmp.eq.f32.partialorder %v2862, 8.507059e+37
    %v2864 = vand.u32 %v2817, 2147483648
    %v2865 = vor.u32 1.1754944e-38, %v2864
    %v2866 = vsel %vm2863, %v2865, %v2861
    %v2867 = vmul.f32 1.0, %v2866
    %v2868 = vrcp.pop %v2818
    %v2869 = vmul.f32 %v2818, %v2868
    %v2870 = vsub.f32 1.0, %v2869
    %v2871 = vmul.f32 %v2868, %v2870
    %v2872 = vadd.f32 %v2868, %v2871
    %vm2873 = vweird.f32 %v2818
    %vm2874 = vweird.f32 %v2868
    %vm2875 = vmor %vm2873, %vm2874
    %v2876 = vsel %vm2875, %v2868, %v2872
    %v2877 = vand.u32 2147483647, %v2818
    %vm2878 = vcmp.eq.f32.partialorder %v2877, 8.507059e+37
    %v2879 = vand.u32 %v2818, 2147483648
    %v2880 = vor.u32 1.1754944e-38, %v2879
    %v2881 = vsel %vm2878, %v2880, %v2876
    %v2882 = vmul.f32 1.0, %v2881
    %v2883 = vrcp.pop %v2819
    %v2884 = vmul.f32 %v2819, %v2883
    %v2885 = vsub.f32 1.0, %v2884
    %v2886 = vmul.f32 %v2883, %v2885
    %v2887 = vadd.f32 %v2883, %v2886
    %vm2888 = vweird.f32 %v2819
    %vm2889 = vweird.f32 %v2883
    %vm2890 = vmor %vm2888, %vm2889
    %v2891 = vsel %vm2890, %v2883, %v2887
    %v2892 = vand.u32 2147483647, %v2819
    %vm2893 = vcmp.eq.f32.partialorder %v2892, 8.507059e+37
    %v2894 = vand.u32 %v2819, 2147483648
    %v2895 = vor.u32 1.1754944e-38, %v2894
    %v2896 = vsel %vm2893, %v2895, %v2891
    %v2897 = vmul.f32 1.0, %v2896
    %v2898 = vrcp.pop %v2820
    %v2899 = vmul.f32 %v2820, %v2898
    %v2900 = vsub.f32 1.0, %v2899
    %v2901 = vmul.f32 %v2898, %v2900
    %v2902 = vadd.f32 %v2898, %v2901
    %vm2903 = vweird.f32 %v2820
    %vm2904 = vweird.f32 %v2898
    %vm2905 = vmor %vm2903, %vm2904
    %v2906 = vsel %vm2905, %v2898, %v2902
    %v2907 = vand.u32 2147483647, %v2820
    %vm2908 = vcmp.eq.f32.partialorder %v2907, 8.507059e+37
    %v2909 = vand.u32 %v2820, 2147483648
    %v2910 = vor.u32 1.1754944e-38, %v2909
    %v2911 = vsel %vm2908, %v2910, %v2906
    %v2912 = vmul.f32 1.0, %v2911
    %v2913 = vrcp.pop %v2821
    %v2914 = vmul.f32 %v2821, %v2913
    %v2915 = vsub.f32 1.0, %v2914
    %v2916 = vmul.f32 %v2913, %v2915
    %v2917 = vadd.f32 %v2913, %v2916
    %vm2918 = vweird.f32 %v2821
    %vm2919 = vweird.f32 %v2913
    %vm2920 = vmor %vm2918, %vm2919
    %v2921 = vsel %vm2920, %v2913, %v2917
    %v2922 = vand.u32 2147483647, %v2821
    %vm2923 = vcmp.eq.f32.partialorder %v2922, 8.507059e+37
    %v2924 = vand.u32 %v2821, 2147483648
    %v2925 = vor.u32 1.1754944e-38, %v2924
    %v2926 = vsel %vm2923, %v2925, %v2921
    %v2927 = vmul.f32 1.0, %v2926
    %v2928 = vrcp.pop %v2822
    %v2929 = vmul.f32 %v2822, %v2928
    %v2930 = vsub.f32 1.0, %v2929
    %v2931 = vmul.f32 %v2928, %v2930
    %v2932 = vadd.f32 %v2928, %v2931
    %vm2933 = vweird.f32 %v2822
    %vm2934 = vweird.f32 %v2928
    %vm2935 = vmor %vm2933, %vm2934
    %v2936 = vsel %vm2935, %v2928, %v2932
    %v2937 = vand.u32 2147483647, %v2822
    %vm2938 = vcmp.eq.f32.partialorder %v2937, 8.507059e+37
    %v2939 = vand.u32 %v2822, 2147483648
    %v2940 = vor.u32 1.1754944e-38, %v2939
    %v2941 = vsel %vm2938, %v2940, %v2936
    %v2942 = vmul.f32 1.0, %v2941
    %v2951 = vrot.slane %v2783, 1
    %v2952 = vrot.slane %v2784, 1
    %v2953 = vrot.slane %v2785, 1
    %v2954 = vrot.slane %v2786, 1
    %v2955 = vrot.slane %v2787, 1
    %v2956 = vrot.slane %v2788, 1
    %v2957 = vrot.slane %v2789, 1
    %v2958 = vrot.slane %v2790, 1
    %v2967 = vxor.u32 %v2951, 2147483648
    %v2968 = vxor.u32 %v2952, 2147483648
    %v2969 = vxor.u32 %v2953, 2147483648
    %v2970 = vxor.u32 %v2954, 2147483648
    %v2971 = vxor.u32 %v2955, 2147483648
    %v2972 = vxor.u32 %v2956, 2147483648
    %v2973 = vxor.u32 %v2957, 2147483648
    %v2974 = vxor.u32 %v2958, 2147483648
    %v2975 = vmul.f32 %v2967, 1.442695
    %v2976 = vpow.pop %v2975
    %v2977 = vmul.f32 %v2968, 1.442695
    %v2978 = vpow.pop %v2977
    %v2979 = vmul.f32 %v2969, 1.442695
    %v2980 = vpow.pop %v2979
    %v2981 = vmul.f32 %v2970, 1.442695
    %v2982 = vpow.pop %v2981
    %v2983 = vmul.f32 %v2971, 1.442695
    %v2984 = vpow.pop %v2983
    %v2985 = vmul.f32 %v2972, 1.442695
    %v2986 = vpow.pop %v2985
    %v2987 = vmul.f32 %v2973, 1.442695
    %v2988 = vpow.pop %v2987
    %v2989 = vmul.f32 %v2974, 1.442695
    %v2990 = vpow.pop %v2989
    %v2991 = vadd.f32 %v2976, 1.0
    %v2992 = vadd.f32 %v2978, 1.0
    %v2993 = vadd.f32 %v2980, 1.0
    %v2994 = vadd.f32 %v2982, 1.0
    %v2995 = vadd.f32 %v2984, 1.0
    %v2996 = vadd.f32 %v2986, 1.0
    %v2997 = vadd.f32 %v2988, 1.0
    %v2998 = vadd.f32 %v2990, 1.0
    %v2999 = vrcp.pop %v2991
    %v3000 = vmul.f32 %v2991, %v2999
    %v3001 = vsub.f32 1.0, %v3000
    %v3002 = vmul.f32 %v2999, %v3001
    %v3003 = vadd.f32 %v2999, %v3002
    %vm3004 = vweird.f32 %v2991
    %vm3005 = vweird.f32 %v2999
    %vm3006 = vmor %vm3004, %vm3005
    %v3007 = vsel %vm3006, %v2999, %v3003
    %v3008 = vand.u32 2147483647, %v2991
    %vm3009 = vcmp.eq.f32.partialorder %v3008, 8.507059e+37
    %v3010 = vand.u32 %v2991, 2147483648
    %v3011 = vor.u32 1.1754944e-38, %v3010
    %v3012 = vsel %vm3009, %v3011, %v3007
    %v3013 = vmul.f32 1.0, %v3012
    %v3014 = vrcp.pop %v2992
    %v3015 = vmul.f32 %v2992, %v3014
    %v3016 = vsub.f32 1.0, %v3015
    %v3017 = vmul.f32 %v3014, %v3016
    %v3018 = vadd.f32 %v3014, %v3017
    %vm3019 = vweird.f32 %v2992
    %vm3020 = vweird.f32 %v3014
    %vm3021 = vmor %vm3019, %vm3020
    %v3022 = vsel %vm3021, %v3014, %v3018
    %v3023 = vand.u32 2147483647, %v2992
    %vm3024 = vcmp.eq.f32.partialorder %v3023, 8.507059e+37
    %v3025 = vand.u32 %v2992, 2147483648
    %v3026 = vor.u32 1.1754944e-38, %v3025
    %v3027 = vsel %vm3024, %v3026, %v3022
    %v3028 = vmul.f32 1.0, %v3027
    %v3029 = vrcp.pop %v2993
    %v3030 = vmul.f32 %v2993, %v3029
    %v3031 = vsub.f32 1.0, %v3030
    %v3032 = vmul.f32 %v3029, %v3031
    %v3033 = vadd.f32 %v3029, %v3032
    %vm3034 = vweird.f32 %v2993
    %vm3035 = vweird.f32 %v3029
    %vm3036 = vmor %vm3034, %vm3035
    %v3037 = vsel %vm3036, %v3029, %v3033
    %v3038 = vand.u32 2147483647, %v2993
    %vm3039 = vcmp.eq.f32.partialorder %v3038, 8.507059e+37
    %v3040 = vand.u32 %v2993, 2147483648
    %v3041 = vor.u32 1.1754944e-38, %v3040
    %v3042 = vsel %vm3039, %v3041, %v3037
    %v3043 = vmul.f32 1.0, %v3042
    %v3044 = vrcp.pop %v2994
    %v3045 = vmul.f32 %v2994, %v3044
    %v3046 = vsub.f32 1.0, %v3045
    %v3047 = vmul.f32 %v3044, %v3046
    %v3048 = vadd.f32 %v3044, %v3047
    %vm3049 = vweird.f32 %v2994
    %vm3050 = vweird.f32 %v3044
    %vm3051 = vmor %vm3049, %vm3050
    %v3052 = vsel %vm3051, %v3044, %v3048
    %v3053 = vand.u32 2147483647, %v2994
    %vm3054 = vcmp.eq.f32.partialorder %v3053, 8.507059e+37
    %v3055 = vand.u32 %v2994, 2147483648
    %v3056 = vor.u32 1.1754944e-38, %v3055
    %v3057 = vsel %vm3054, %v3056, %v3052
    %v3058 = vmul.f32 1.0, %v3057
    %v3059 = vrcp.pop %v2995
    %v3060 = vmul.f32 %v2995, %v3059
    %v3061 = vsub.f32 1.0, %v3060
    %v3062 = vmul.f32 %v3059, %v3061
    %v3063 = vadd.f32 %v3059, %v3062
    %vm3064 = vweird.f32 %v2995
    %vm3065 = vweird.f32 %v3059
    %vm3066 = vmor %vm3064, %vm3065
    %v3067 = vsel %vm3066, %v3059, %v3063
    %v3068 = vand.u32 2147483647, %v2995
    %vm3069 = vcmp.eq.f32.partialorder %v3068, 8.507059e+37
    %v3070 = vand.u32 %v2995, 2147483648
    %v3071 = vor.u32 1.1754944e-38, %v3070
    %v3072 = vsel %vm3069, %v3071, %v3067
    %v3073 = vmul.f32 1.0, %v3072
    %v3074 = vrcp.pop %v2996
    %v3075 = vmul.f32 %v2996, %v3074
    %v3076 = vsub.f32 1.0, %v3075
    %v3077 = vmul.f32 %v3074, %v3076
    %v3078 = vadd.f32 %v3074, %v3077
    %vm3079 = vweird.f32 %v2996
    %vm3080 = vweird.f32 %v3074
    %vm3081 = vmor %vm3079, %vm3080
    %v3082 = vsel %vm3081, %v3074, %v3078
    %v3083 = vand.u32 2147483647, %v2996
    %vm3084 = vcmp.eq.f32.partialorder %v3083, 8.507059e+37
    %v3085 = vand.u32 %v2996, 2147483648
    %v3086 = vor.u32 1.1754944e-38, %v3085
    %v3087 = vsel %vm3084, %v3086, %v3082
    %v3088 = vmul.f32 1.0, %v3087
    %v3089 = vrcp.pop %v2997
    %v3090 = vmul.f32 %v2997, %v3089
    %v3091 = vsub.f32 1.0, %v3090
    %v3092 = vmul.f32 %v3089, %v3091
    %v3093 = vadd.f32 %v3089, %v3092
    %vm3094 = vweird.f32 %v2997
    %vm3095 = vweird.f32 %v3089
    %vm3096 = vmor %vm3094, %vm3095
    %v3097 = vsel %vm3096, %v3089, %v3093
    %v3098 = vand.u32 2147483647, %v2997
    %vm3099 = vcmp.eq.f32.partialorder %v3098, 8.507059e+37
    %v3100 = vand.u32 %v2997, 2147483648
    %v3101 = vor.u32 1.1754944e-38, %v3100
    %v3102 = vsel %vm3099, %v3101, %v3097
    %v3103 = vmul.f32 1.0, %v3102
    %v3104 = vrcp.pop %v2998
    %v3105 = vmul.f32 %v2998, %v3104
    %v3106 = vsub.f32 1.0, %v3105
    %v3107 = vmul.f32 %v3104, %v3106
    %v3108 = vadd.f32 %v3104, %v3107
    %vm3109 = vweird.f32 %v2998
    %vm3110 = vweird.f32 %v3104
    %vm3111 = vmor %vm3109, %vm3110
    %v3112 = vsel %vm3111, %v3104, %v3108
    %v3113 = vand.u32 2147483647, %v2998
    %vm3114 = vcmp.eq.f32.partialorder %v3113, 8.507059e+37
    %v3115 = vand.u32 %v2998, 2147483648
    %v3116 = vor.u32 1.1754944e-38, %v3115
    %v3117 = vsel %vm3114, %v3116, %v3112
    %v3118 = vmul.f32 1.0, %v3117
    %v3119 = vrot.slane %v2783, 2
    %v3120 = vrot.slane %v2784, 2
    %v3121 = vrot.slane %v2785, 2
    %v3122 = vrot.slane %v2786, 2
    %v3123 = vrot.slane %v2787, 2
    %v3124 = vrot.slane %v2788, 2
    %v3125 = vrot.slane %v2789, 2
    %v3126 = vrot.slane %v2790, 2
    %v3135 = vtanh.pop %v3119
    %v3136 = vtanh.pop %v3120
    %v3137 = vtanh.pop %v3121
    %v3138 = vtanh.pop %v3122
    %v3139 = vtanh.pop %v3123
    %v3140 = vtanh.pop %v3124
    %v3141 = vtanh.pop %v3125
    %v3142 = vtanh.pop %v3126
    %v3143 = vrot.slane %v2783, 3
    %v3144 = vrot.slane %v2784, 3
    %v3145 = vrot.slane %v2785, 3
    %v3146 = vrot.slane %v2786, 3
    %v3147 = vrot.slane %v2787, 3
    %v3148 = vrot.slane %v2788, 3
    %v3149 = vrot.slane %v2789, 3
    %v3150 = vrot.slane %v2790, 3
    %v3159 = vxor.u32 %v3143, 2147483648
    %v3160 = vxor.u32 %v3144, 2147483648
    %v3161 = vxor.u32 %v3145, 2147483648
    %v3162 = vxor.u32 %v3146, 2147483648
    %v3163 = vxor.u32 %v3147, 2147483648
    %v3164 = vxor.u32 %v3148, 2147483648
    %v3165 = vxor.u32 %v3149, 2147483648
    %v3166 = vxor.u32 %v3150, 2147483648
    %v3167 = vmul.f32 %v3159, 1.442695
    %v3168 = vpow.pop %v3167
    %v3169 = vmul.f32 %v3160, 1.442695
    %v3170 = vpow.pop %v3169
    %v3171 = vmul.f32 %v3161, 1.442695
    %v3172 = vpow.pop %v3171
    %v3173 = vmul.f32 %v3162, 1.442695
    %v3174 = vpow.pop %v3173
    %v3175 = vmul.f32 %v3163, 1.442695
    %v3176 = vpow.pop %v3175
    %v3177 = vmul.f32 %v3164, 1.442695
    %v3178 = vpow.pop %v3177
    %v3179 = vmul.f32 %v3165, 1.442695
    %v3180 = vpow.pop %v3179
    %v3181 = vmul.f32 %v3166, 1.442695
    %v3182 = vpow.pop %v3181
    %v3183 = vadd.f32 %v3168, 1.0
    %v3184 = vadd.f32 %v3170, 1.0
    %v3185 = vadd.f32 %v3172, 1.0
    %v3186 = vadd.f32 %v3174, 1.0
    %v3187 = vadd.f32 %v3176, 1.0
    %v3188 = vadd.f32 %v3178, 1.0
    %v3189 = vadd.f32 %v3180, 1.0
    %v3190 = vadd.f32 %v3182, 1.0
    %v3191 = vrcp.pop %v3183
    %v3192 = vmul.f32 %v3183, %v3191
    %v3193 = vsub.f32 1.0, %v3192
    %v3194 = vmul.f32 %v3191, %v3193
    %v3195 = vadd.f32 %v3191, %v3194
    %vm3196 = vweird.f32 %v3183
    %vm3197 = vweird.f32 %v3191
    %vm3198 = vmor %vm3196, %vm3197
    %v3199 = vsel %vm3198, %v3191, %v3195
    %v3200 = vand.u32 2147483647, %v3183
    %vm3201 = vcmp.eq.f32.partialorder %v3200, 8.507059e+37
    %v3202 = vand.u32 %v3183, 2147483648
    %v3203 = vor.u32 1.1754944e-38, %v3202
    %v3204 = vsel %vm3201, %v3203, %v3199
    %v3205 = vmul.f32 1.0, %v3204
    %v3206 = vrcp.pop %v3184
    %v3207 = vmul.f32 %v3184, %v3206
    %v3208 = vsub.f32 1.0, %v3207
    %v3209 = vmul.f32 %v3206, %v3208
    %v3210 = vadd.f32 %v3206, %v3209
    %vm3211 = vweird.f32 %v3184
    %vm3212 = vweird.f32 %v3206
    %vm3213 = vmor %vm3211, %vm3212
    %v3214 = vsel %vm3213, %v3206, %v3210
    %v3215 = vand.u32 2147483647, %v3184
    %vm3216 = vcmp.eq.f32.partialorder %v3215, 8.507059e+37
    %v3217 = vand.u32 %v3184, 2147483648
    %v3218 = vor.u32 1.1754944e-38, %v3217
    %v3219 = vsel %vm3216, %v3218, %v3214
    %v3220 = vmul.f32 1.0, %v3219
    %v3221 = vrcp.pop %v3185
    %v3222 = vmul.f32 %v3185, %v3221
    %v3223 = vsub.f32 1.0, %v3222
    %v3224 = vmul.f32 %v3221, %v3223
    %v3225 = vadd.f32 %v3221, %v3224
    %vm3226 = vweird.f32 %v3185
    %vm3227 = vweird.f32 %v3221
    %vm3228 = vmor %vm3226, %vm3227
    %v3229 = vsel %vm3228, %v3221, %v3225
    %v3230 = vand.u32 2147483647, %v3185
    %vm3231 = vcmp.eq.f32.partialorder %v3230, 8.507059e+37
    %v3232 = vand.u32 %v3185, 2147483648
    %v3233 = vor.u32 1.1754944e-38, %v3232
    %v3234 = vsel %vm3231, %v3233, %v3229
    %v3235 = vmul.f32 1.0, %v3234
    %v3236 = vrcp.pop %v3186
    %v3237 = vmul.f32 %v3186, %v3236
    %v3238 = vsub.f32 1.0, %v3237
    %v3239 = vmul.f32 %v3236, %v3238
    %v3240 = vadd.f32 %v3236, %v3239
    %vm3241 = vweird.f32 %v3186
    %vm3242 = vweird.f32 %v3236
    %vm3243 = vmor %vm3241, %vm3242
    %v3244 = vsel %vm3243, %v3236, %v3240
    %v3245 = vand.u32 2147483647, %v3186
    %vm3246 = vcmp.eq.f32.partialorder %v3245, 8.507059e+37
    %v3247 = vand.u32 %v3186, 2147483648
    %v3248 = vor.u32 1.1754944e-38, %v3247
    %v3249 = vsel %vm3246, %v3248, %v3244
    %v3250 = vmul.f32 1.0, %v3249
    %v3251 = vrcp.pop %v3187
    %v3252 = vmul.f32 %v3187, %v3251
    %v3253 = vsub.f32 1.0, %v3252
    %v3254 = vmul.f32 %v3251, %v3253
    %v3255 = vadd.f32 %v3251, %v3254
    %vm3256 = vweird.f32 %v3187
    %vm3257 = vweird.f32 %v3251
    %vm3258 = vmor %vm3256, %vm3257
    %v3259 = vsel %vm3258, %v3251, %v3255
    %v3260 = vand.u32 2147483647, %v3187
    %vm3261 = vcmp.eq.f32.partialorder %v3260, 8.507059e+37
    %v3262 = vand.u32 %v3187, 2147483648
    %v3263 = vor.u32 1.1754944e-38, %v3262
    %v3264 = vsel %vm3261, %v3263, %v3259
    %v3265 = vmul.f32 1.0, %v3264
    %v3266 = vrcp.pop %v3188
    %v3267 = vmul.f32 %v3188, %v3266
    %v3268 = vsub.f32 1.0, %v3267
    %v3269 = vmul.f32 %v3266, %v3268
    %v3270 = vadd.f32 %v3266, %v3269
    %vm3271 = vweird.f32 %v3188
    %vm3272 = vweird.f32 %v3266
    %vm3273 = vmor %vm3271, %vm3272
    %v3274 = vsel %vm3273, %v3266, %v3270
    %v3275 = vand.u32 2147483647, %v3188
    %vm3276 = vcmp.eq.f32.partialorder %v3275, 8.507059e+37
    %v3277 = vand.u32 %v3188, 2147483648
    %v3278 = vor.u32 1.1754944e-38, %v3277
    %v3279 = vsel %vm3276, %v3278, %v3274
    %v3280 = vmul.f32 1.0, %v3279
    %v3281 = vrcp.pop %v3189
    %v3282 = vmul.f32 %v3189, %v3281
    %v3283 = vsub.f32 1.0, %v3282
    %v3284 = vmul.f32 %v3281, %v3283
    %v3285 = vadd.f32 %v3281, %v3284
    %vm3286 = vweird.f32 %v3189
    %vm3287 = vweird.f32 %v3281
    %vm3288 = vmor %vm3286, %vm3287
    %v3289 = vsel %vm3288, %v3281, %v3285
    %v3290 = vand.u32 2147483647, %v3189
    %vm3291 = vcmp.eq.f32.partialorder %v3290, 8.507059e+37
    %v3292 = vand.u32 %v3189, 2147483648
    %v3293 = vor.u32 1.1754944e-38, %v3292
    %v3294 = vsel %vm3291, %v3293, %v3289
    %v3295 = vmul.f32 1.0, %v3294
    %v3296 = vrcp.pop %v3190
    %v3297 = vmul.f32 %v3190, %v3296
    %v3298 = vsub.f32 1.0, %v3297
    %v3299 = vmul.f32 %v3296, %v3298
    %v3300 = vadd.f32 %v3296, %v3299
    %vm3301 = vweird.f32 %v3190
    %vm3302 = vweird.f32 %v3296
    %vm3303 = vmor %vm3301, %vm3302
    %v3304 = vsel %vm3303, %v3296, %v3300
    %v3305 = vand.u32 2147483647, %v3190
    %vm3306 = vcmp.eq.f32.partialorder %v3305, 8.507059e+37
    %v3307 = vand.u32 %v3190, 2147483648
    %v3308 = vor.u32 1.1754944e-38, %v3307
    %v3309 = vsel %vm3306, %v3308, %v3304
    %v3310 = vmul.f32 1.0, %v3309
    %v3311 = vmul.f32 %v3013, %v2597
    %v3312 = vmul.f32 %v3028, %v2598
    %v3313 = vmul.f32 %v3043, %v2599
    %v3314 = vmul.f32 %v3058, %v2600
    %v3315 = vmul.f32 %v3073, %v2601
    %v3316 = vmul.f32 %v3088, %v2602
    %v3317 = vmul.f32 %v3103, %v2603
    %v3318 = vmul.f32 %v3118, %v2604
    %v3319 = vmul.f32 %v2837, %v3135
    %v3320 = vmul.f32 %v2852, %v3136
    %v3321 = vmul.f32 %v2867, %v3137
    %v3322 = vmul.f32 %v2882, %v3138
    %v3323 = vmul.f32 %v2897, %v3139
    %v3324 = vmul.f32 %v2912, %v3140
    %v3325 = vmul.f32 %v2927, %v3141
    %v3326 = vmul.f32 %v2942, %v3142
    %v3327 = vadd.f32 %v3311, %v3319
    %v3328 = vadd.f32 %v3312, %v3320
    %v3329 = vadd.f32 %v3313, %v3321
    %v3330 = vadd.f32 %v3314, %v3322
    %v3331 = vadd.f32 %v3315, %v3323
    %v3332 = vadd.f32 %v3316, %v3324
    %v3333 = vadd.f32 %v3317, %v3325
    %v3334 = vadd.f32 %v3318, %v3326
    %v3335 = vtanh.pop %v3327
    %v3336 = vtanh.pop %v3328
    %v3337 = vtanh.pop %v3329
    %v3338 = vtanh.pop %v3330
    %v3339 = vtanh.pop %v3331
    %v3340 = vtanh.pop %v3332
    %v3341 = vtanh.pop %v3333
    %v3342 = vtanh.pop %v3334
    %v3343 = vmul.f32 %v3205, %v3335
    %v3344 = vmul.f32 %v3220, %v3336
    %v3345 = vmul.f32 %v3235, %v3337
    %v3346 = vmul.f32 %v3250, %v3338
    %v3347 = vmul.f32 %v3265, %v3339
    %v3348 = vmul.f32 %v3280, %v3340
    %v3349 = vmul.f32 %v3295, %v3341
    %v3350 = vmul.f32 %v3310, %v3342
    %3351 = vst [vmem:[#allocation5 + $0x3] sm:$0x1] %v3343
    %3352 = vst [vmem:[#allocation5 + $0xb] sm:$0x1] %v3344
    %3353 = vst [vmem:[#allocation5 + $0x13] sm:$0x1] %v3345
    %3354 = vst [vmem:[#allocation5 + $0x1b] sm:$0x1] %v3346
    %3355 = vst [vmem:[#allocation5 + $0x23] sm:$0x1] %v3347
    %3356 = vst [vmem:[#allocation5 + $0x2b] sm:$0x1] %v3348
    %3357 = vst [vmem:[#allocation5 + $0x33] sm:$0x1] %v3349
    %3358 = vst [vmem:[#allocation5 + $0x3b] sm:$0x1] %v3350
    %s3359 = scalar_lea.vmem [#allocation4], 4
    %v3360 = vld [vmem:[%s3359] ss:$8 sm:$0xf]
    %s3361 = scalar_lea.vmem [#allocation4], 36
    %v3362 = vld [vmem:[%s3361] ss:$8 sm:$0xf]
    %s3363 = scalar_lea.vmem [#allocation4], 68
    %v3364 = vld [vmem:[%s3363] ss:$8 sm:$0xf]
    %s3365 = scalar_lea.vmem [#allocation4], 100
    %v3366 = vld [vmem:[%s3365] ss:$8 sm:$0xf]
    %s3367 = scalar_lea.vmem [#allocation4], 132
    %v3368 = vld [vmem:[%s3367] ss:$8 sm:$0xf]
    %s3369 = scalar_lea.vmem [#allocation4], 164
    %v3370 = vld [vmem:[%s3369] ss:$8 sm:$0xf]
    %s3371 = scalar_lea.vmem [#allocation4], 196
    %v3372 = vld [vmem:[%s3371] ss:$8 sm:$0xf]
    %s3373 = scalar_lea.vmem [#allocation4], 228
    %v3374 = vld [vmem:[%s3373] ss:$8 sm:$0xf]
    %v3375 = vpack.c.bf16 %v3343, %v3343
    %v3376 = vpack.c.bf16 %v3344, %v3344
    %v3377 = vpack.c.bf16 %v3345, %v3345
    %v3378 = vpack.c.bf16 %v3346, %v3346
    %v3379 = vpack.c.bf16 %v3347, %v3347
    %v3380 = vpack.c.bf16 %v3348, %v3348
    %v3381 = vpack.c.bf16 %v3349, %v3349
    %v3382 = vpack.c.bf16 %v3350, %v3350
    %v3391 = vunpack.c.l.b16 %v3375
    %v3392 = vunpack.c.l.b16 %v3376
    %v3393 = vunpack.c.l.b16 %v3377
    %v3394 = vunpack.c.l.b16 %v3378
    %v3395 = vunpack.c.l.b16 %v3379
    %v3396 = vunpack.c.l.b16 %v3380
    %v3397 = vunpack.c.l.b16 %v3381
    %v3398 = vunpack.c.l.b16 %v3382
    %v3399 = vrot.slane %v3392, 7
    %v3400 = vsel %vm528, %v3399, %v3391
    %v3401 = vrot.slane %v3393, 6
    %v3402 = vsel %vm524, %v3401, %v3400
    %v3403 = vrot.slane %v3394, 5
    %v3404 = vsel %vm530, %v3403, %v3402
    %v3405 = vrot.slane %v3395, 4
    %v3406 = vsel %vm536, %v3405, %v3404
    %v3407 = vrot.slane %v3396, 3
    %v3408 = vsel %vm542, %v3407, %v3406
    %v3409 = vrot.slane %v3397, 2
    %v3410 = vsel %vm548, %v3409, %v3408
    %v3411 = vrot.slane %v3398, 1
    %v3412 = vsel %vm1221, %v3411, %v3410
    %v3413 = vpack.c.b16 %v3412, %v3412
    %3415 = vmatpush.bf16.msra.mxu0 %v427
    %3416 = vmatpush.bf16.msra.mxu0 %v423
    %3417 = vmatpush.bf16.msra.mxu0 %v419
    %3418 = vmatpush.bf16.msra.mxu0 %v415
    %3419 = vmatpush.bf16.msra.mxu0 %v411
    %3420 = vmatpush.bf16.msra.mxu0 %v407
    %3421 = vmatpush.bf16.msra.mxu0 %v403
    %3422 = vmatpush.bf16.msra.mxu0 %v399
    %3423 = vmatmul.bf16.gmra.mxu0 %v3413
    %v3424 = vpop.f32.mrf.mxu0
    %v3425 = vadd.f32 0.0, %v3424
    %v3426 = vpop.f32.mrf.mxu0
    %3427 = vdwg.mxu0
    %3428 = vmatpush.bf16.msra.mxu0 %v428
    %3429 = vmatpush.bf16.msra.mxu0 %v424
    %3430 = vmatpush.bf16.msra.mxu0 %v420
    %3431 = vmatpush.bf16.msra.mxu0 %v416
    %3432 = vmatpush.bf16.msra.mxu0 %v412
    %3433 = vmatpush.bf16.msra.mxu0 %v408
    %3434 = vmatpush.bf16.msra.mxu0 %v404
    %3435 = vmatpush.bf16.msra.mxu0 %v400
    %3436 = vmatmul.bf16.gmra.mxu0 %v3413
    %v3437 = vpop.f32.mrf.mxu0
    %v3438 = vadd.f32 0.0, %v3437
    %v3439 = vpop.f32.mrf.mxu0
    %3440 = vdwg.mxu0
    %3441 = vmatpush.bf16.msra.mxu0 %v429
    %3442 = vmatpush.bf16.msra.mxu0 %v425
    %3443 = vmatpush.bf16.msra.mxu0 %v421
    %3444 = vmatpush.bf16.msra.mxu0 %v417
    %3445 = vmatpush.bf16.msra.mxu0 %v413
    %3446 = vmatpush.bf16.msra.mxu0 %v409
    %3447 = vmatpush.bf16.msra.mxu0 %v405
    %3448 = vmatpush.bf16.msra.mxu0 %v401
    %3449 = vmatmul.bf16.gmra.mxu0 %v3413
    %v3450 = vpop.f32.mrf.mxu0
    %v3451 = vadd.f32 0.0, %v3450
    %v3452 = vpop.f32.mrf.mxu0
    %3453 = vdwg.mxu0
    %3454 = vmatpush.bf16.msra.mxu0 %v430
    %3455 = vmatpush.bf16.msra.mxu0 %v426
    %3456 = vmatpush.bf16.msra.mxu0 %v422
    %3457 = vmatpush.bf16.msra.mxu0 %v418
    %3458 = vmatpush.bf16.msra.mxu0 %v414
    %3459 = vmatpush.bf16.msra.mxu0 %v410
    %3460 = vmatpush.bf16.msra.mxu0 %v406
    %3461 = vmatpush.bf16.msra.mxu0 %v402
    %3462 = vmatmul.bf16.gmra.mxu0 %v3413
    %v3463 = vpop.f32.mrf.mxu0
    %v3464 = vadd.f32 0.0, %v3463
    %v3465 = vpop.f32.mrf.mxu0
    %3466 = vdwg.mxu0
    %v3471 = vrot.slane %v3438, 7
    %v3472 = vrot.slane %v3451, 6
    %v3473 = vrot.slane %v3464, 5
    %v3474 = vsel %vm522, %v3425, %v3471
    %v3475 = vsel %vm524, %v3472, %v3473
    %v3476 = vsel %vm526, %v3474, %v3475
    %v3477 = vsel %vm528, %v3425, %v3471
    %v3478 = vsel %vm530, %v3472, %v3473
    %v3479 = vsel %vm532, %v3477, %v3478
    %v3480 = vrot.slane %v3479, 1
    %v3481 = vsel %vm524, %v3425, %v3471
    %v3482 = vsel %vm536, %v3472, %v3473
    %v3483 = vsel %vm538, %v3481, %v3482
    %v3484 = vrot.slane %v3483, 2
    %v3485 = vsel %vm530, %v3425, %v3471
    %v3486 = vsel %vm542, %v3472, %v3473
    %v3487 = vsel %vm544, %v3485, %v3486
    %v3488 = vrot.slane %v3487, 3
    %v3489 = vsel %vm536, %v3425, %v3471
    %v3490 = vsel %vm548, %v3472, %v3473
    %v3491 = vsel %vm550, %v3489, %v3490
    %v3492 = vrot.slane %v3491, 4
    %v3493 = vsel %vm542, %v3425, %v3471
    %v3494 = vsel %vm554, %v3473, %v3472
    %v3495 = vsel %vm556, %v3493, %v3494
    %v3496 = vrot.slane %v3495, 5
    %v3497 = vsel %vm548, %v3425, %v3471
    %v3498 = vsel %vm522, %v3472, %v3473
    %v3499 = vsel %vm561, %v3498, %v3497
    %v3500 = vrot.slane %v3499, 6
    %v3501 = vsel %vm554, %v3471, %v3425
    %v3502 = vsel %vm528, %v3472, %v3473
    %v3503 = vsel %vm566, %v3502, %v3501
    %v3504 = vrot.slane %v3503, 7
    %v3513 = vadd.f32 %v3360, %v3476
    %v3514 = vadd.f32 %v3362, %v3480
    %v3515 = vadd.f32 %v3364, %v3484
    %v3516 = vadd.f32 %v3366, %v3488
    %v3517 = vadd.f32 %v3368, %v3492
    %v3518 = vadd.f32 %v3370, %v3496
    %v3519 = vadd.f32 %v3372, %v3500
    %v3520 = vadd.f32 %v3374, %v3504
    %v3521 = vxor.u32 %v3513, 2147483648
    %v3522 = vxor.u32 %v3514, 2147483648
    %v3523 = vxor.u32 %v3515, 2147483648
    %v3524 = vxor.u32 %v3516, 2147483648
    %v3525 = vxor.u32 %v3517, 2147483648
    %v3526 = vxor.u32 %v3518, 2147483648
    %v3527 = vxor.u32 %v3519, 2147483648
    %v3528 = vxor.u32 %v3520, 2147483648
    %v3529 = vmul.f32 %v3521, 1.442695
    %v3530 = vpow.pop %v3529
    %v3531 = vmul.f32 %v3522, 1.442695
    %v3532 = vpow.pop %v3531
    %v3533 = vmul.f32 %v3523, 1.442695
    %v3534 = vpow.pop %v3533
    %v3535 = vmul.f32 %v3524, 1.442695
    %v3536 = vpow.pop %v3535
    %v3537 = vmul.f32 %v3525, 1.442695
    %v3538 = vpow.pop %v3537
    %v3539 = vmul.f32 %v3526, 1.442695
    %v3540 = vpow.pop %v3539
    %v3541 = vmul.f32 %v3527, 1.442695
    %v3542 = vpow.pop %v3541
    %v3543 = vmul.f32 %v3528, 1.442695
    %v3544 = vpow.pop %v3543
    %v3545 = vadd.f32 %v3530, 1.0
    %v3546 = vadd.f32 %v3532, 1.0
    %v3547 = vadd.f32 %v3534, 1.0
    %v3548 = vadd.f32 %v3536, 1.0
    %v3549 = vadd.f32 %v3538, 1.0
    %v3550 = vadd.f32 %v3540, 1.0
    %v3551 = vadd.f32 %v3542, 1.0
    %v3552 = vadd.f32 %v3544, 1.0
    %v3553 = vrcp.pop %v3545
    %v3554 = vmul.f32 %v3545, %v3553
    %v3555 = vsub.f32 1.0, %v3554
    %v3556 = vmul.f32 %v3553, %v3555
    %v3557 = vadd.f32 %v3553, %v3556
    %vm3558 = vweird.f32 %v3545
    %vm3559 = vweird.f32 %v3553
    %vm3560 = vmor %vm3558, %vm3559
    %v3561 = vsel %vm3560, %v3553, %v3557
    %v3562 = vand.u32 2147483647, %v3545
    %vm3563 = vcmp.eq.f32.partialorder %v3562, 8.507059e+37
    %v3564 = vand.u32 %v3545, 2147483648
    %v3565 = vor.u32 1.1754944e-38, %v3564
    %v3566 = vsel %vm3563, %v3565, %v3561
    %v3567 = vmul.f32 1.0, %v3566
    %v3568 = vrcp.pop %v3546
    %v3569 = vmul.f32 %v3546, %v3568
    %v3570 = vsub.f32 1.0, %v3569
    %v3571 = vmul.f32 %v3568, %v3570
    %v3572 = vadd.f32 %v3568, %v3571
    %vm3573 = vweird.f32 %v3546
    %vm3574 = vweird.f32 %v3568
    %vm3575 = vmor %vm3573, %vm3574
    %v3576 = vsel %vm3575, %v3568, %v3572
    %v3577 = vand.u32 2147483647, %v3546
    %vm3578 = vcmp.eq.f32.partialorder %v3577, 8.507059e+37
    %v3579 = vand.u32 %v3546, 2147483648
    %v3580 = vor.u32 1.1754944e-38, %v3579
    %v3581 = vsel %vm3578, %v3580, %v3576
    %v3582 = vmul.f32 1.0, %v3581
    %v3583 = vrcp.pop %v3547
    %v3584 = vmul.f32 %v3547, %v3583
    %v3585 = vsub.f32 1.0, %v3584
    %v3586 = vmul.f32 %v3583, %v3585
    %v3587 = vadd.f32 %v3583, %v3586
    %vm3588 = vweird.f32 %v3547
    %vm3589 = vweird.f32 %v3583
    %vm3590 = vmor %vm3588, %vm3589
    %v3591 = vsel %vm3590, %v3583, %v3587
    %v3592 = vand.u32 2147483647, %v3547
    %vm3593 = vcmp.eq.f32.partialorder %v3592, 8.507059e+37
    %v3594 = vand.u32 %v3547, 2147483648
    %v3595 = vor.u32 1.1754944e-38, %v3594
    %v3596 = vsel %vm3593, %v3595, %v3591
    %v3597 = vmul.f32 1.0, %v3596
    %v3598 = vrcp.pop %v3548
    %v3599 = vmul.f32 %v3548, %v3598
    %v3600 = vsub.f32 1.0, %v3599
    %v3601 = vmul.f32 %v3598, %v3600
    %v3602 = vadd.f32 %v3598, %v3601
    %vm3603 = vweird.f32 %v3548
    %vm3604 = vweird.f32 %v3598
    %vm3605 = vmor %vm3603, %vm3604
    %v3606 = vsel %vm3605, %v3598, %v3602
    %v3607 = vand.u32 2147483647, %v3548
    %vm3608 = vcmp.eq.f32.partialorder %v3607, 8.507059e+37
    %v3609 = vand.u32 %v3548, 2147483648
    %v3610 = vor.u32 1.1754944e-38, %v3609
    %v3611 = vsel %vm3608, %v3610, %v3606
    %v3612 = vmul.f32 1.0, %v3611
    %v3613 = vrcp.pop %v3549
    %v3614 = vmul.f32 %v3549, %v3613
    %v3615 = vsub.f32 1.0, %v3614
    %v3616 = vmul.f32 %v3613, %v3615
    %v3617 = vadd.f32 %v3613, %v3616
    %vm3618 = vweird.f32 %v3549
    %vm3619 = vweird.f32 %v3613
    %vm3620 = vmor %vm3618, %vm3619
    %v3621 = vsel %vm3620, %v3613, %v3617
    %v3622 = vand.u32 2147483647, %v3549
    %vm3623 = vcmp.eq.f32.partialorder %v3622, 8.507059e+37
    %v3624 = vand.u32 %v3549, 2147483648
    %v3625 = vor.u32 1.1754944e-38, %v3624
    %v3626 = vsel %vm3623, %v3625, %v3621
    %v3627 = vmul.f32 1.0, %v3626
    %v3628 = vrcp.pop %v3550
    %v3629 = vmul.f32 %v3550, %v3628
    %v3630 = vsub.f32 1.0, %v3629
    %v3631 = vmul.f32 %v3628, %v3630
    %v3632 = vadd.f32 %v3628, %v3631
    %vm3633 = vweird.f32 %v3550
    %vm3634 = vweird.f32 %v3628
    %vm3635 = vmor %vm3633, %vm3634
    %v3636 = vsel %vm3635, %v3628, %v3632
    %v3637 = vand.u32 2147483647, %v3550
    %vm3638 = vcmp.eq.f32.partialorder %v3637, 8.507059e+37
    %v3639 = vand.u32 %v3550, 2147483648
    %v3640 = vor.u32 1.1754944e-38, %v3639
    %v3641 = vsel %vm3638, %v3640, %v3636
    %v3642 = vmul.f32 1.0, %v3641
    %v3643 = vrcp.pop %v3551
    %v3644 = vmul.f32 %v3551, %v3643
    %v3645 = vsub.f32 1.0, %v3644
    %v3646 = vmul.f32 %v3643, %v3645
    %v3647 = vadd.f32 %v3643, %v3646
    %vm3648 = vweird.f32 %v3551
    %vm3649 = vweird.f32 %v3643
    %vm3650 = vmor %vm3648, %vm3649
    %v3651 = vsel %vm3650, %v3643, %v3647
    %v3652 = vand.u32 2147483647, %v3551
    %vm3653 = vcmp.eq.f32.partialorder %v3652, 8.507059e+37
    %v3654 = vand.u32 %v3551, 2147483648
    %v3655 = vor.u32 1.1754944e-38, %v3654
    %v3656 = vsel %vm3653, %v3655, %v3651
    %v3657 = vmul.f32 1.0, %v3656
    %v3658 = vrcp.pop %v3552
    %v3659 = vmul.f32 %v3552, %v3658
    %v3660 = vsub.f32 1.0, %v3659
    %v3661 = vmul.f32 %v3658, %v3660
    %v3662 = vadd.f32 %v3658, %v3661
    %vm3663 = vweird.f32 %v3552
    %vm3664 = vweird.f32 %v3658
    %vm3665 = vmor %vm3663, %vm3664
    %v3666 = vsel %vm3665, %v3658, %v3662
    %v3667 = vand.u32 2147483647, %v3552
    %vm3668 = vcmp.eq.f32.partialorder %v3667, 8.507059e+37
    %v3669 = vand.u32 %v3552, 2147483648
    %v3670 = vor.u32 1.1754944e-38, %v3669
    %v3671 = vsel %vm3668, %v3670, %v3666
    %v3672 = vmul.f32 1.0, %v3671
    %v3681 = vrot.slane %v3513, 1
    %v3682 = vrot.slane %v3514, 1
    %v3683 = vrot.slane %v3515, 1
    %v3684 = vrot.slane %v3516, 1
    %v3685 = vrot.slane %v3517, 1
    %v3686 = vrot.slane %v3518, 1
    %v3687 = vrot.slane %v3519, 1
    %v3688 = vrot.slane %v3520, 1
    %v3697 = vxor.u32 %v3681, 2147483648
    %v3698 = vxor.u32 %v3682, 2147483648
    %v3699 = vxor.u32 %v3683, 2147483648
    %v3700 = vxor.u32 %v3684, 2147483648
    %v3701 = vxor.u32 %v3685, 2147483648
    %v3702 = vxor.u32 %v3686, 2147483648
    %v3703 = vxor.u32 %v3687, 2147483648
    %v3704 = vxor.u32 %v3688, 2147483648
    %v3705 = vmul.f32 %v3697, 1.442695
    %v3706 = vpow.pop %v3705
    %v3707 = vmul.f32 %v3698, 1.442695
    %v3708 = vpow.pop %v3707
    %v3709 = vmul.f32 %v3699, 1.442695
    %v3710 = vpow.pop %v3709
    %v3711 = vmul.f32 %v3700, 1.442695
    %v3712 = vpow.pop %v3711
    %v3713 = vmul.f32 %v3701, 1.442695
    %v3714 = vpow.pop %v3713
    %v3715 = vmul.f32 %v3702, 1.442695
    %v3716 = vpow.pop %v3715
    %v3717 = vmul.f32 %v3703, 1.442695
    %v3718 = vpow.pop %v3717
    %v3719 = vmul.f32 %v3704, 1.442695
    %v3720 = vpow.pop %v3719
    %v3721 = vadd.f32 %v3706, 1.0
    %v3722 = vadd.f32 %v3708, 1.0
    %v3723 = vadd.f32 %v3710, 1.0
    %v3724 = vadd.f32 %v3712, 1.0
    %v3725 = vadd.f32 %v3714, 1.0
    %v3726 = vadd.f32 %v3716, 1.0
    %v3727 = vadd.f32 %v3718, 1.0
    %v3728 = vadd.f32 %v3720, 1.0
    %v3729 = vrcp.pop %v3721
    %v3730 = vmul.f32 %v3721, %v3729
    %v3731 = vsub.f32 1.0, %v3730
    %v3732 = vmul.f32 %v3729, %v3731
    %v3733 = vadd.f32 %v3729, %v3732
    %vm3734 = vweird.f32 %v3721
    %vm3735 = vweird.f32 %v3729
    %vm3736 = vmor %vm3734, %vm3735
    %v3737 = vsel %vm3736, %v3729, %v3733
    %v3738 = vand.u32 2147483647, %v3721
    %vm3739 = vcmp.eq.f32.partialorder %v3738, 8.507059e+37
    %v3740 = vand.u32 %v3721, 2147483648
    %v3741 = vor.u32 1.1754944e-38, %v3740
    %v3742 = vsel %vm3739, %v3741, %v3737
    %v3743 = vmul.f32 1.0, %v3742
    %v3744 = vrcp.pop %v3722
    %v3745 = vmul.f32 %v3722, %v3744
    %v3746 = vsub.f32 1.0, %v3745
    %v3747 = vmul.f32 %v3744, %v3746
    %v3748 = vadd.f32 %v3744, %v3747
    %vm3749 = vweird.f32 %v3722
    %vm3750 = vweird.f32 %v3744
    %vm3751 = vmor %vm3749, %vm3750
    %v3752 = vsel %vm3751, %v3744, %v3748
    %v3753 = vand.u32 2147483647, %v3722
    %vm3754 = vcmp.eq.f32.partialorder %v3753, 8.507059e+37
    %v3755 = vand.u32 %v3722, 2147483648
    %v3756 = vor.u32 1.1754944e-38, %v3755
    %v3757 = vsel %vm3754, %v3756, %v3752
    %v3758 = vmul.f32 1.0, %v3757
    %v3759 = vrcp.pop %v3723
    %v3760 = vmul.f32 %v3723, %v3759
    %v3761 = vsub.f32 1.0, %v3760
    %v3762 = vmul.f32 %v3759, %v3761
    %v3763 = vadd.f32 %v3759, %v3762
    %vm3764 = vweird.f32 %v3723
    %vm3765 = vweird.f32 %v3759
    %vm3766 = vmor %vm3764, %vm3765
    %v3767 = vsel %vm3766, %v3759, %v3763
    %v3768 = vand.u32 2147483647, %v3723
    %vm3769 = vcmp.eq.f32.partialorder %v3768, 8.507059e+37
    %v3770 = vand.u32 %v3723, 2147483648
    %v3771 = vor.u32 1.1754944e-38, %v3770
    %v3772 = vsel %vm3769, %v3771, %v3767
    %v3773 = vmul.f32 1.0, %v3772
    %v3774 = vrcp.pop %v3724
    %v3775 = vmul.f32 %v3724, %v3774
    %v3776 = vsub.f32 1.0, %v3775
    %v3777 = vmul.f32 %v3774, %v3776
    %v3778 = vadd.f32 %v3774, %v3777
    %vm3779 = vweird.f32 %v3724
    %vm3780 = vweird.f32 %v3774
    %vm3781 = vmor %vm3779, %vm3780
    %v3782 = vsel %vm3781, %v3774, %v3778
    %v3783 = vand.u32 2147483647, %v3724
    %vm3784 = vcmp.eq.f32.partialorder %v3783, 8.507059e+37
    %v3785 = vand.u32 %v3724, 2147483648
    %v3786 = vor.u32 1.1754944e-38, %v3785
    %v3787 = vsel %vm3784, %v3786, %v3782
    %v3788 = vmul.f32 1.0, %v3787
    %v3789 = vrcp.pop %v3725
    %v3790 = vmul.f32 %v3725, %v3789
    %v3791 = vsub.f32 1.0, %v3790
    %v3792 = vmul.f32 %v3789, %v3791
    %v3793 = vadd.f32 %v3789, %v3792
    %vm3794 = vweird.f32 %v3725
    %vm3795 = vweird.f32 %v3789
    %vm3796 = vmor %vm3794, %vm3795
    %v3797 = vsel %vm3796, %v3789, %v3793
    %v3798 = vand.u32 2147483647, %v3725
    %vm3799 = vcmp.eq.f32.partialorder %v3798, 8.507059e+37
    %v3800 = vand.u32 %v3725, 2147483648
    %v3801 = vor.u32 1.1754944e-38, %v3800
    %v3802 = vsel %vm3799, %v3801, %v3797
    %v3803 = vmul.f32 1.0, %v3802
    %v3804 = vrcp.pop %v3726
    %v3805 = vmul.f32 %v3726, %v3804
    %v3806 = vsub.f32 1.0, %v3805
    %v3807 = vmul.f32 %v3804, %v3806
    %v3808 = vadd.f32 %v3804, %v3807
    %vm3809 = vweird.f32 %v3726
    %vm3810 = vweird.f32 %v3804
    %vm3811 = vmor %vm3809, %vm3810
    %v3812 = vsel %vm3811, %v3804, %v3808
    %v3813 = vand.u32 2147483647, %v3726
    %vm3814 = vcmp.eq.f32.partialorder %v3813, 8.507059e+37
    %v3815 = vand.u32 %v3726, 2147483648
    %v3816 = vor.u32 1.1754944e-38, %v3815
    %v3817 = vsel %vm3814, %v3816, %v3812
    %v3818 = vmul.f32 1.0, %v3817
    %v3819 = vrcp.pop %v3727
    %v3820 = vmul.f32 %v3727, %v3819
    %v3821 = vsub.f32 1.0, %v3820
    %v3822 = vmul.f32 %v3819, %v3821
    %v3823 = vadd.f32 %v3819, %v3822
    %vm3824 = vweird.f32 %v3727
    %vm3825 = vweird.f32 %v3819
    %vm3826 = vmor %vm3824, %vm3825
    %v3827 = vsel %vm3826, %v3819, %v3823
    %v3828 = vand.u32 2147483647, %v3727
    %vm3829 = vcmp.eq.f32.partialorder %v3828, 8.507059e+37
    %v3830 = vand.u32 %v3727, 2147483648
    %v3831 = vor.u32 1.1754944e-38, %v3830
    %v3832 = vsel %vm3829, %v3831, %v3827
    %v3833 = vmul.f32 1.0, %v3832
    %v3834 = vrcp.pop %v3728
    %v3835 = vmul.f32 %v3728, %v3834
    %v3836 = vsub.f32 1.0, %v3835
    %v3837 = vmul.f32 %v3834, %v3836
    %v3838 = vadd.f32 %v3834, %v3837
    %vm3839 = vweird.f32 %v3728
    %vm3840 = vweird.f32 %v3834
    %vm3841 = vmor %vm3839, %vm3840
    %v3842 = vsel %vm3841, %v3834, %v3838
    %v3843 = vand.u32 2147483647, %v3728
    %vm3844 = vcmp.eq.f32.partialorder %v3843, 8.507059e+37
    %v3845 = vand.u32 %v3728, 2147483648
    %v3846 = vor.u32 1.1754944e-38, %v3845
    %v3847 = vsel %vm3844, %v3846, %v3842
    %v3848 = vmul.f32 1.0, %v3847
    %v3849 = vrot.slane %v3513, 2
    %v3850 = vrot.slane %v3514, 2
    %v3851 = vrot.slane %v3515, 2
    %v3852 = vrot.slane %v3516, 2
    %v3853 = vrot.slane %v3517, 2
    %v3854 = vrot.slane %v3518, 2
    %v3855 = vrot.slane %v3519, 2
    %v3856 = vrot.slane %v3520, 2
    %v3865 = vtanh.pop %v3849
    %v3866 = vtanh.pop %v3850
    %v3867 = vtanh.pop %v3851
    %v3868 = vtanh.pop %v3852
    %v3869 = vtanh.pop %v3853
    %v3870 = vtanh.pop %v3854
    %v3871 = vtanh.pop %v3855
    %v3872 = vtanh.pop %v3856
    %v3873 = vrot.slane %v3513, 3
    %v3874 = vrot.slane %v3514, 3
    %v3875 = vrot.slane %v3515, 3
    %v3876 = vrot.slane %v3516, 3
    %v3877 = vrot.slane %v3517, 3
    %v3878 = vrot.slane %v3518, 3
    %v3879 = vrot.slane %v3519, 3
    %v3880 = vrot.slane %v3520, 3
    %v3889 = vxor.u32 %v3873, 2147483648
    %v3890 = vxor.u32 %v3874, 2147483648
    %v3891 = vxor.u32 %v3875, 2147483648
    %v3892 = vxor.u32 %v3876, 2147483648
    %v3893 = vxor.u32 %v3877, 2147483648
    %v3894 = vxor.u32 %v3878, 2147483648
    %v3895 = vxor.u32 %v3879, 2147483648
    %v3896 = vxor.u32 %v3880, 2147483648
    %v3897 = vmul.f32 %v3889, 1.442695
    %v3898 = vpow.pop %v3897
    %v3899 = vmul.f32 %v3890, 1.442695
    %v3900 = vpow.pop %v3899
    %v3901 = vmul.f32 %v3891, 1.442695
    %v3902 = vpow.pop %v3901
    %v3903 = vmul.f32 %v3892, 1.442695
    %v3904 = vpow.pop %v3903
    %v3905 = vmul.f32 %v3893, 1.442695
    %v3906 = vpow.pop %v3905
    %v3907 = vmul.f32 %v3894, 1.442695
    %v3908 = vpow.pop %v3907
    %v3909 = vmul.f32 %v3895, 1.442695
    %v3910 = vpow.pop %v3909
    %v3911 = vmul.f32 %v3896, 1.442695
    %v3912 = vpow.pop %v3911
    %v3913 = vadd.f32 %v3898, 1.0
    %v3914 = vadd.f32 %v3900, 1.0
    %v3915 = vadd.f32 %v3902, 1.0
    %v3916 = vadd.f32 %v3904, 1.0
    %v3917 = vadd.f32 %v3906, 1.0
    %v3918 = vadd.f32 %v3908, 1.0
    %v3919 = vadd.f32 %v3910, 1.0
    %v3920 = vadd.f32 %v3912, 1.0
    %v3921 = vrcp.pop %v3913
    %v3922 = vmul.f32 %v3913, %v3921
    %v3923 = vsub.f32 1.0, %v3922
    %v3924 = vmul.f32 %v3921, %v3923
    %v3925 = vadd.f32 %v3921, %v3924
    %vm3926 = vweird.f32 %v3913
    %vm3927 = vweird.f32 %v3921
    %vm3928 = vmor %vm3926, %vm3927
    %v3929 = vsel %vm3928, %v3921, %v3925
    %v3930 = vand.u32 2147483647, %v3913
    %vm3931 = vcmp.eq.f32.partialorder %v3930, 8.507059e+37
    %v3932 = vand.u32 %v3913, 2147483648
    %v3933 = vor.u32 1.1754944e-38, %v3932
    %v3934 = vsel %vm3931, %v3933, %v3929
    %v3935 = vmul.f32 1.0, %v3934
    %v3936 = vrcp.pop %v3914
    %v3937 = vmul.f32 %v3914, %v3936
    %v3938 = vsub.f32 1.0, %v3937
    %v3939 = vmul.f32 %v3936, %v3938
    %v3940 = vadd.f32 %v3936, %v3939
    %vm3941 = vweird.f32 %v3914
    %vm3942 = vweird.f32 %v3936
    %vm3943 = vmor %vm3941, %vm3942
    %v3944 = vsel %vm3943, %v3936, %v3940
    %v3945 = vand.u32 2147483647, %v3914
    %vm3946 = vcmp.eq.f32.partialorder %v3945, 8.507059e+37
    %v3947 = vand.u32 %v3914, 2147483648
    %v3948 = vor.u32 1.1754944e-38, %v3947
    %v3949 = vsel %vm3946, %v3948, %v3944
    %v3950 = vmul.f32 1.0, %v3949
    %v3951 = vrcp.pop %v3915
    %v3952 = vmul.f32 %v3915, %v3951
    %v3953 = vsub.f32 1.0, %v3952
    %v3954 = vmul.f32 %v3951, %v3953
    %v3955 = vadd.f32 %v3951, %v3954
    %vm3956 = vweird.f32 %v3915
    %vm3957 = vweird.f32 %v3951
    %vm3958 = vmor %vm3956, %vm3957
    %v3959 = vsel %vm3958, %v3951, %v3955
    %v3960 = vand.u32 2147483647, %v3915
    %vm3961 = vcmp.eq.f32.partialorder %v3960, 8.507059e+37
    %v3962 = vand.u32 %v3915, 2147483648
    %v3963 = vor.u32 1.1754944e-38, %v3962
    %v3964 = vsel %vm3961, %v3963, %v3959
    %v3965 = vmul.f32 1.0, %v3964
    %v3966 = vrcp.pop %v3916
    %v3967 = vmul.f32 %v3916, %v3966
    %v3968 = vsub.f32 1.0, %v3967
    %v3969 = vmul.f32 %v3966, %v3968
    %v3970 = vadd.f32 %v3966, %v3969
    %vm3971 = vweird.f32 %v3916
    %vm3972 = vweird.f32 %v3966
    %vm3973 = vmor %vm3971, %vm3972
    %v3974 = vsel %vm3973, %v3966, %v3970
    %v3975 = vand.u32 2147483647, %v3916
    %vm3976 = vcmp.eq.f32.partialorder %v3975, 8.507059e+37
    %v3977 = vand.u32 %v3916, 2147483648
    %v3978 = vor.u32 1.1754944e-38, %v3977
    %v3979 = vsel %vm3976, %v3978, %v3974
    %v3980 = vmul.f32 1.0, %v3979
    %v3981 = vrcp.pop %v3917
    %v3982 = vmul.f32 %v3917, %v3981
    %v3983 = vsub.f32 1.0, %v3982
    %v3984 = vmul.f32 %v3981, %v3983
    %v3985 = vadd.f32 %v3981, %v3984
    %vm3986 = vweird.f32 %v3917
    %vm3987 = vweird.f32 %v3981
    %vm3988 = vmor %vm3986, %vm3987
    %v3989 = vsel %vm3988, %v3981, %v3985
    %v3990 = vand.u32 2147483647, %v3917
    %vm3991 = vcmp.eq.f32.partialorder %v3990, 8.507059e+37
    %v3992 = vand.u32 %v3917, 2147483648
    %v3993 = vor.u32 1.1754944e-38, %v3992
    %v3994 = vsel %vm3991, %v3993, %v3989
    %v3995 = vmul.f32 1.0, %v3994
    %v3996 = vrcp.pop %v3918
    %v3997 = vmul.f32 %v3918, %v3996
    %v3998 = vsub.f32 1.0, %v3997
    %v3999 = vmul.f32 %v3996, %v3998
    %v4000 = vadd.f32 %v3996, %v3999
    %vm4001 = vweird.f32 %v3918
    %vm4002 = vweird.f32 %v3996
    %vm4003 = vmor %vm4001, %vm4002
    %v4004 = vsel %vm4003, %v3996, %v4000
    %v4005 = vand.u32 2147483647, %v3918
    %vm4006 = vcmp.eq.f32.partialorder %v4005, 8.507059e+37
    %v4007 = vand.u32 %v3918, 2147483648
    %v4008 = vor.u32 1.1754944e-38, %v4007
    %v4009 = vsel %vm4006, %v4008, %v4004
    %v4010 = vmul.f32 1.0, %v4009
    %v4011 = vrcp.pop %v3919
    %v4012 = vmul.f32 %v3919, %v4011
    %v4013 = vsub.f32 1.0, %v4012
    %v4014 = vmul.f32 %v4011, %v4013
    %v4015 = vadd.f32 %v4011, %v4014
    %vm4016 = vweird.f32 %v3919
    %vm4017 = vweird.f32 %v4011
    %vm4018 = vmor %vm4016, %vm4017
    %v4019 = vsel %vm4018, %v4011, %v4015
    %v4020 = vand.u32 2147483647, %v3919
    %vm4021 = vcmp.eq.f32.partialorder %v4020, 8.507059e+37
    %v4022 = vand.u32 %v3919, 2147483648
    %v4023 = vor.u32 1.1754944e-38, %v4022
    %v4024 = vsel %vm4021, %v4023, %v4019
    %v4025 = vmul.f32 1.0, %v4024
    %v4026 = vrcp.pop %v3920
    %v4027 = vmul.f32 %v3920, %v4026
    %v4028 = vsub.f32 1.0, %v4027
    %v4029 = vmul.f32 %v4026, %v4028
    %v4030 = vadd.f32 %v4026, %v4029
    %vm4031 = vweird.f32 %v3920
    %vm4032 = vweird.f32 %v4026
    %vm4033 = vmor %vm4031, %vm4032
    %v4034 = vsel %vm4033, %v4026, %v4030
    %v4035 = vand.u32 2147483647, %v3920
    %vm4036 = vcmp.eq.f32.partialorder %v4035, 8.507059e+37
    %v4037 = vand.u32 %v3920, 2147483648
    %v4038 = vor.u32 1.1754944e-38, %v4037
    %v4039 = vsel %vm4036, %v4038, %v4034
    %v4040 = vmul.f32 1.0, %v4039
    %v4041 = vmul.f32 %v3743, %v3327
    %v4042 = vmul.f32 %v3758, %v3328
    %v4043 = vmul.f32 %v3773, %v3329
    %v4044 = vmul.f32 %v3788, %v3330
    %v4045 = vmul.f32 %v3803, %v3331
    %v4046 = vmul.f32 %v3818, %v3332
    %v4047 = vmul.f32 %v3833, %v3333
    %v4048 = vmul.f32 %v3848, %v3334
    %v4049 = vmul.f32 %v3567, %v3865
    %v4050 = vmul.f32 %v3582, %v3866
    %v4051 = vmul.f32 %v3597, %v3867
    %v4052 = vmul.f32 %v3612, %v3868
    %v4053 = vmul.f32 %v3627, %v3869
    %v4054 = vmul.f32 %v3642, %v3870
    %v4055 = vmul.f32 %v3657, %v3871
    %v4056 = vmul.f32 %v3672, %v3872
    %v4057 = vadd.f32 %v4041, %v4049
    %v4058 = vadd.f32 %v4042, %v4050
    %v4059 = vadd.f32 %v4043, %v4051
    %v4060 = vadd.f32 %v4044, %v4052
    %v4061 = vadd.f32 %v4045, %v4053
    %v4062 = vadd.f32 %v4046, %v4054
    %v4063 = vadd.f32 %v4047, %v4055
    %v4064 = vadd.f32 %v4048, %v4056
    %v4065 = vtanh.pop %v4057
    %v4066 = vtanh.pop %v4058
    %v4067 = vtanh.pop %v4059
    %v4068 = vtanh.pop %v4060
    %v4069 = vtanh.pop %v4061
    %v4070 = vtanh.pop %v4062
    %v4071 = vtanh.pop %v4063
    %v4072 = vtanh.pop %v4064
    %v4073 = vmul.f32 %v3935, %v4065
    %v4074 = vmul.f32 %v3950, %v4066
    %v4075 = vmul.f32 %v3965, %v4067
    %v4076 = vmul.f32 %v3980, %v4068
    %v4077 = vmul.f32 %v3995, %v4069
    %v4078 = vmul.f32 %v4010, %v4070
    %v4079 = vmul.f32 %v4025, %v4071
    %v4080 = vmul.f32 %v4040, %v4072
    %4081 = vst [vmem:[#allocation5 + $0x4] sm:$0x1] %v4073
    %4082 = vst [vmem:[#allocation5 + $0xc] sm:$0x1] %v4074
    %4083 = vst [vmem:[#allocation5 + $0x14] sm:$0x1] %v4075
    %4084 = vst [vmem:[#allocation5 + $0x1c] sm:$0x1] %v4076
    %4085 = vst [vmem:[#allocation5 + $0x24] sm:$0x1] %v4077
    %4086 = vst [vmem:[#allocation5 + $0x2c] sm:$0x1] %v4078
    %4087 = vst [vmem:[#allocation5 + $0x34] sm:$0x1] %v4079
    %4088 = vst [vmem:[#allocation5 + $0x3c] sm:$0x1] %v4080
    %s4089 = scalar_lea.vmem [#allocation4], 5
    %v4090 = vld [vmem:[%s4089] ss:$8 sm:$0xf]
    %s4091 = scalar_lea.vmem [#allocation4], 37
    %v4092 = vld [vmem:[%s4091] ss:$8 sm:$0xf]
    %s4093 = scalar_lea.vmem [#allocation4], 69
    %v4094 = vld [vmem:[%s4093] ss:$8 sm:$0xf]
    %s4095 = scalar_lea.vmem [#allocation4], 101
    %v4096 = vld [vmem:[%s4095] ss:$8 sm:$0xf]
    %s4097 = scalar_lea.vmem [#allocation4], 133
    %v4098 = vld [vmem:[%s4097] ss:$8 sm:$0xf]
    %s4099 = scalar_lea.vmem [#allocation4], 165
    %v4100 = vld [vmem:[%s4099] ss:$8 sm:$0xf]
    %s4101 = scalar_lea.vmem [#allocation4], 197
    %v4102 = vld [vmem:[%s4101] ss:$8 sm:$0xf]
    %s4103 = scalar_lea.vmem [#allocation4], 229
    %v4104 = vld [vmem:[%s4103] ss:$8 sm:$0xf]
    %v4105 = vpack.c.bf16 %v4073, %v4073
    %v4106 = vpack.c.bf16 %v4074, %v4074
    %v4107 = vpack.c.bf16 %v4075, %v4075
    %v4108 = vpack.c.bf16 %v4076, %v4076
    %v4109 = vpack.c.bf16 %v4077, %v4077
    %v4110 = vpack.c.bf16 %v4078, %v4078
    %v4111 = vpack.c.bf16 %v4079, %v4079
    %v4112 = vpack.c.bf16 %v4080, %v4080
    %v4121 = vunpack.c.l.b16 %v4105
    %v4122 = vunpack.c.l.b16 %v4106
    %v4123 = vunpack.c.l.b16 %v4107
    %v4124 = vunpack.c.l.b16 %v4108
    %v4125 = vunpack.c.l.b16 %v4109
    %v4126 = vunpack.c.l.b16 %v4110
    %v4127 = vunpack.c.l.b16 %v4111
    %v4128 = vunpack.c.l.b16 %v4112
    %v4129 = vrot.slane %v4122, 7
    %v4130 = vsel %vm528, %v4129, %v4121
    %v4131 = vrot.slane %v4123, 6
    %v4132 = vsel %vm524, %v4131, %v4130
    %v4133 = vrot.slane %v4124, 5
    %v4134 = vsel %vm530, %v4133, %v4132
    %v4135 = vrot.slane %v4125, 4
    %v4136 = vsel %vm536, %v4135, %v4134
    %v4137 = vrot.slane %v4126, 3
    %v4138 = vsel %vm542, %v4137, %v4136
    %v4139 = vrot.slane %v4127, 2
    %v4140 = vsel %vm548, %v4139, %v4138
    %v4141 = vrot.slane %v4128, 1
    %v4142 = vsel %vm1221, %v4141, %v4140
    %v4143 = vpack.c.b16 %v4142, %v4142
    %4145 = vmatpush.bf16.msra.mxu0 %v427
    %4146 = vmatpush.bf16.msra.mxu0 %v423
    %4147 = vmatpush.bf16.msra.mxu0 %v419
    %4148 = vmatpush.bf16.msra.mxu0 %v415
    %4149 = vmatpush.bf16.msra.mxu0 %v411
    %4150 = vmatpush.bf16.msra.mxu0 %v407
    %4151 = vmatpush.bf16.msra.mxu0 %v403
    %4152 = vmatpush.bf16.msra.mxu0 %v399
    %4153 = vmatmul.bf16.gmra.mxu0 %v4143
    %v4154 = vpop.f32.mrf.mxu0
    %v4155 = vadd.f32 0.0, %v4154
    %v4156 = vpop.f32.mrf.mxu0
    %4157 = vdwg.mxu0
    %4158 = vmatpush.bf16.msra.mxu0 %v428
    %4159 = vmatpush.bf16.msra.mxu0 %v424
    %4160 = vmatpush.bf16.msra.mxu0 %v420
    %4161 = vmatpush.bf16.msra.mxu0 %v416
    %4162 = vmatpush.bf16.msra.mxu0 %v412
    %4163 = vmatpush.bf16.msra.mxu0 %v408
    %4164 = vmatpush.bf16.msra.mxu0 %v404
    %4165 = vmatpush.bf16.msra.mxu0 %v400
    %4166 = vmatmul.bf16.gmra.mxu0 %v4143
    %v4167 = vpop.f32.mrf.mxu0
    %v4168 = vadd.f32 0.0, %v4167
    %v4169 = vpop.f32.mrf.mxu0
    %4170 = vdwg.mxu0
    %4171 = vmatpush.bf16.msra.mxu0 %v429
    %4172 = vmatpush.bf16.msra.mxu0 %v425
    %4173 = vmatpush.bf16.msra.mxu0 %v421
    %4174 = vmatpush.bf16.msra.mxu0 %v417
    %4175 = vmatpush.bf16.msra.mxu0 %v413
    %4176 = vmatpush.bf16.msra.mxu0 %v409
    %4177 = vmatpush.bf16.msra.mxu0 %v405
    %4178 = vmatpush.bf16.msra.mxu0 %v401
    %4179 = vmatmul.bf16.gmra.mxu0 %v4143
    %v4180 = vpop.f32.mrf.mxu0
    %v4181 = vadd.f32 0.0, %v4180
    %v4182 = vpop.f32.mrf.mxu0
    %4183 = vdwg.mxu0
    %4184 = vmatpush.bf16.msra.mxu0 %v430
    %4185 = vmatpush.bf16.msra.mxu0 %v426
    %4186 = vmatpush.bf16.msra.mxu0 %v422
    %4187 = vmatpush.bf16.msra.mxu0 %v418
    %4188 = vmatpush.bf16.msra.mxu0 %v414
    %4189 = vmatpush.bf16.msra.mxu0 %v410
    %4190 = vmatpush.bf16.msra.mxu0 %v406
    %4191 = vmatpush.bf16.msra.mxu0 %v402
    %4192 = vmatmul.bf16.gmra.mxu0 %v4143
    %v4193 = vpop.f32.mrf.mxu0
    %v4194 = vadd.f32 0.0, %v4193
    %v4195 = vpop.f32.mrf.mxu0
    %4196 = vdwg.mxu0
    %v4201 = vrot.slane %v4168, 7
    %v4202 = vrot.slane %v4181, 6
    %v4203 = vrot.slane %v4194, 5
    %v4204 = vsel %vm522, %v4155, %v4201
    %v4205 = vsel %vm524, %v4202, %v4203
    %v4206 = vsel %vm526, %v4204, %v4205
    %v4207 = vsel %vm528, %v4155, %v4201
    %v4208 = vsel %vm530, %v4202, %v4203
    %v4209 = vsel %vm532, %v4207, %v4208
    %v4210 = vrot.slane %v4209, 1
    %v4211 = vsel %vm524, %v4155, %v4201
    %v4212 = vsel %vm536, %v4202, %v4203
    %v4213 = vsel %vm538, %v4211, %v4212
    %v4214 = vrot.slane %v4213, 2
    %v4215 = vsel %vm530, %v4155, %v4201
    %v4216 = vsel %vm542, %v4202, %v4203
    %v4217 = vsel %vm544, %v4215, %v4216
    %v4218 = vrot.slane %v4217, 3
    %v4219 = vsel %vm536, %v4155, %v4201
    %v4220 = vsel %vm548, %v4202, %v4203
    %v4221 = vsel %vm550, %v4219, %v4220
    %v4222 = vrot.slane %v4221, 4
    %v4223 = vsel %vm542, %v4155, %v4201
    %v4224 = vsel %vm554, %v4203, %v4202
    %v4225 = vsel %vm556, %v4223, %v4224
    %v4226 = vrot.slane %v4225, 5
    %v4227 = vsel %vm548, %v4155, %v4201
    %v4228 = vsel %vm522, %v4202, %v4203
    %v4229 = vsel %vm561, %v4228, %v4227
    %v4230 = vrot.slane %v4229, 6
    %v4231 = vsel %vm554, %v4201, %v4155
    %v4232 = vsel %vm528, %v4202, %v4203
    %v4233 = vsel %vm566, %v4232, %v4231
    %v4234 = vrot.slane %v4233, 7
    %v4243 = vadd.f32 %v4090, %v4206
    %v4244 = vadd.f32 %v4092, %v4210
    %v4245 = vadd.f32 %v4094, %v4214
    %v4246 = vadd.f32 %v4096, %v4218
    %v4247 = vadd.f32 %v4098, %v4222
    %v4248 = vadd.f32 %v4100, %v4226
    %v4249 = vadd.f32 %v4102, %v4230
    %v4250 = vadd.f32 %v4104, %v4234
    %v4251 = vxor.u32 %v4243, 2147483648
    %v4252 = vxor.u32 %v4244, 2147483648
    %v4253 = vxor.u32 %v4245, 2147483648
    %v4254 = vxor.u32 %v4246, 2147483648
    %v4255 = vxor.u32 %v4247, 2147483648
    %v4256 = vxor.u32 %v4248, 2147483648
    %v4257 = vxor.u32 %v4249, 2147483648
    %v4258 = vxor.u32 %v4250, 2147483648
    %v4259 = vmul.f32 %v4251, 1.442695
    %v4260 = vpow.pop %v4259
    %v4261 = vmul.f32 %v4252, 1.442695
    %v4262 = vpow.pop %v4261
    %v4263 = vmul.f32 %v4253, 1.442695
    %v4264 = vpow.pop %v4263
    %v4265 = vmul.f32 %v4254, 1.442695
    %v4266 = vpow.pop %v4265
    %v4267 = vmul.f32 %v4255, 1.442695
    %v4268 = vpow.pop %v4267
    %v4269 = vmul.f32 %v4256, 1.442695
    %v4270 = vpow.pop %v4269
    %v4271 = vmul.f32 %v4257, 1.442695
    %v4272 = vpow.pop %v4271
    %v4273 = vmul.f32 %v4258, 1.442695
    %v4274 = vpow.pop %v4273
    %v4275 = vadd.f32 %v4260, 1.0
    %v4276 = vadd.f32 %v4262, 1.0
    %v4277 = vadd.f32 %v4264, 1.0
    %v4278 = vadd.f32 %v4266, 1.0
    %v4279 = vadd.f32 %v4268, 1.0
    %v4280 = vadd.f32 %v4270, 1.0
    %v4281 = vadd.f32 %v4272, 1.0
    %v4282 = vadd.f32 %v4274, 1.0
    %v4283 = vrcp.pop %v4275
    %v4284 = vmul.f32 %v4275, %v4283
    %v4285 = vsub.f32 1.0, %v4284
    %v4286 = vmul.f32 %v4283, %v4285
    %v4287 = vadd.f32 %v4283, %v4286
    %vm4288 = vweird.f32 %v4275
    %vm4289 = vweird.f32 %v4283
    %vm4290 = vmor %vm4288, %vm4289
    %v4291 = vsel %vm4290, %v4283, %v4287
    %v4292 = vand.u32 2147483647, %v4275
    %vm4293 = vcmp.eq.f32.partialorder %v4292, 8.507059e+37
    %v4294 = vand.u32 %v4275, 2147483648
    %v4295 = vor.u32 1.1754944e-38, %v4294
    %v4296 = vsel %vm4293, %v4295, %v4291
    %v4297 = vmul.f32 1.0, %v4296
    %v4298 = vrcp.pop %v4276
    %v4299 = vmul.f32 %v4276, %v4298
    %v4300 = vsub.f32 1.0, %v4299
    %v4301 = vmul.f32 %v4298, %v4300
    %v4302 = vadd.f32 %v4298, %v4301
    %vm4303 = vweird.f32 %v4276
    %vm4304 = vweird.f32 %v4298
    %vm4305 = vmor %vm4303, %vm4304
    %v4306 = vsel %vm4305, %v4298, %v4302
    %v4307 = vand.u32 2147483647, %v4276
    %vm4308 = vcmp.eq.f32.partialorder %v4307, 8.507059e+37
    %v4309 = vand.u32 %v4276, 2147483648
    %v4310 = vor.u32 1.1754944e-38, %v4309
    %v4311 = vsel %vm4308, %v4310, %v4306
    %v4312 = vmul.f32 1.0, %v4311
    %v4313 = vrcp.pop %v4277
    %v4314 = vmul.f32 %v4277, %v4313
    %v4315 = vsub.f32 1.0, %v4314
    %v4316 = vmul.f32 %v4313, %v4315
    %v4317 = vadd.f32 %v4313, %v4316
    %vm4318 = vweird.f32 %v4277
    %vm4319 = vweird.f32 %v4313
    %vm4320 = vmor %vm4318, %vm4319
    %v4321 = vsel %vm4320, %v4313, %v4317
    %v4322 = vand.u32 2147483647, %v4277
    %vm4323 = vcmp.eq.f32.partialorder %v4322, 8.507059e+37
    %v4324 = vand.u32 %v4277, 2147483648
    %v4325 = vor.u32 1.1754944e-38, %v4324
    %v4326 = vsel %vm4323, %v4325, %v4321
    %v4327 = vmul.f32 1.0, %v4326
    %v4328 = vrcp.pop %v4278
    %v4329 = vmul.f32 %v4278, %v4328
    %v4330 = vsub.f32 1.0, %v4329
    %v4331 = vmul.f32 %v4328, %v4330
    %v4332 = vadd.f32 %v4328, %v4331
    %vm4333 = vweird.f32 %v4278
    %vm4334 = vweird.f32 %v4328
    %vm4335 = vmor %vm4333, %vm4334
    %v4336 = vsel %vm4335, %v4328, %v4332
    %v4337 = vand.u32 2147483647, %v4278
    %vm4338 = vcmp.eq.f32.partialorder %v4337, 8.507059e+37
    %v4339 = vand.u32 %v4278, 2147483648
    %v4340 = vor.u32 1.1754944e-38, %v4339
    %v4341 = vsel %vm4338, %v4340, %v4336
    %v4342 = vmul.f32 1.0, %v4341
    %v4343 = vrcp.pop %v4279
    %v4344 = vmul.f32 %v4279, %v4343
    %v4345 = vsub.f32 1.0, %v4344
    %v4346 = vmul.f32 %v4343, %v4345
    %v4347 = vadd.f32 %v4343, %v4346
    %vm4348 = vweird.f32 %v4279
    %vm4349 = vweird.f32 %v4343
    %vm4350 = vmor %vm4348, %vm4349
    %v4351 = vsel %vm4350, %v4343, %v4347
    %v4352 = vand.u32 2147483647, %v4279
    %vm4353 = vcmp.eq.f32.partialorder %v4352, 8.507059e+37
    %v4354 = vand.u32 %v4279, 2147483648
    %v4355 = vor.u32 1.1754944e-38, %v4354
    %v4356 = vsel %vm4353, %v4355, %v4351
    %v4357 = vmul.f32 1.0, %v4356
    %v4358 = vrcp.pop %v4280
    %v4359 = vmul.f32 %v4280, %v4358
    %v4360 = vsub.f32 1.0, %v4359
    %v4361 = vmul.f32 %v4358, %v4360
    %v4362 = vadd.f32 %v4358, %v4361
    %vm4363 = vweird.f32 %v4280
    %vm4364 = vweird.f32 %v4358
    %vm4365 = vmor %vm4363, %vm4364
    %v4366 = vsel %vm4365, %v4358, %v4362
    %v4367 = vand.u32 2147483647, %v4280
    %vm4368 = vcmp.eq.f32.partialorder %v4367, 8.507059e+37
    %v4369 = vand.u32 %v4280, 2147483648
    %v4370 = vor.u32 1.1754944e-38, %v4369
    %v4371 = vsel %vm4368, %v4370, %v4366
    %v4372 = vmul.f32 1.0, %v4371
    %v4373 = vrcp.pop %v4281
    %v4374 = vmul.f32 %v4281, %v4373
    %v4375 = vsub.f32 1.0, %v4374
    %v4376 = vmul.f32 %v4373, %v4375
    %v4377 = vadd.f32 %v4373, %v4376
    %vm4378 = vweird.f32 %v4281
    %vm4379 = vweird.f32 %v4373
    %vm4380 = vmor %vm4378, %vm4379
    %v4381 = vsel %vm4380, %v4373, %v4377
    %v4382 = vand.u32 2147483647, %v4281
    %vm4383 = vcmp.eq.f32.partialorder %v4382, 8.507059e+37
    %v4384 = vand.u32 %v4281, 2147483648
    %v4385 = vor.u32 1.1754944e-38, %v4384
    %v4386 = vsel %vm4383, %v4385, %v4381
    %v4387 = vmul.f32 1.0, %v4386
    %v4388 = vrcp.pop %v4282
    %v4389 = vmul.f32 %v4282, %v4388
    %v4390 = vsub.f32 1.0, %v4389
    %v4391 = vmul.f32 %v4388, %v4390
    %v4392 = vadd.f32 %v4388, %v4391
    %vm4393 = vweird.f32 %v4282
    %vm4394 = vweird.f32 %v4388
    %vm4395 = vmor %vm4393, %vm4394
    %v4396 = vsel %vm4395, %v4388, %v4392
    %v4397 = vand.u32 2147483647, %v4282
    %vm4398 = vcmp.eq.f32.partialorder %v4397, 8.507059e+37
    %v4399 = vand.u32 %v4282, 2147483648
    %v4400 = vor.u32 1.1754944e-38, %v4399
    %v4401 = vsel %vm4398, %v4400, %v4396
    %v4402 = vmul.f32 1.0, %v4401
    %v4411 = vrot.slane %v4243, 1
    %v4412 = vrot.slane %v4244, 1
    %v4413 = vrot.slane %v4245, 1
    %v4414 = vrot.slane %v4246, 1
    %v4415 = vrot.slane %v4247, 1
    %v4416 = vrot.slane %v4248, 1
    %v4417 = vrot.slane %v4249, 1
    %v4418 = vrot.slane %v4250, 1
    %v4427 = vxor.u32 %v4411, 2147483648
    %v4428 = vxor.u32 %v4412, 2147483648
    %v4429 = vxor.u32 %v4413, 2147483648
    %v4430 = vxor.u32 %v4414, 2147483648
    %v4431 = vxor.u32 %v4415, 2147483648
    %v4432 = vxor.u32 %v4416, 2147483648
    %v4433 = vxor.u32 %v4417, 2147483648
    %v4434 = vxor.u32 %v4418, 2147483648
    %v4435 = vmul.f32 %v4427, 1.442695
    %v4436 = vpow.pop %v4435
    %v4437 = vmul.f32 %v4428, 1.442695
    %v4438 = vpow.pop %v4437
    %v4439 = vmul.f32 %v4429, 1.442695
    %v4440 = vpow.pop %v4439
    %v4441 = vmul.f32 %v4430, 1.442695
    %v4442 = vpow.pop %v4441
    %v4443 = vmul.f32 %v4431, 1.442695
    %v4444 = vpow.pop %v4443
    %v4445 = vmul.f32 %v4432, 1.442695
    %v4446 = vpow.pop %v4445
    %v4447 = vmul.f32 %v4433, 1.442695
    %v4448 = vpow.pop %v4447
    %v4449 = vmul.f32 %v4434, 1.442695
    %v4450 = vpow.pop %v4449
    %v4451 = vadd.f32 %v4436, 1.0
    %v4452 = vadd.f32 %v4438, 1.0
    %v4453 = vadd.f32 %v4440, 1.0
    %v4454 = vadd.f32 %v4442, 1.0
    %v4455 = vadd.f32 %v4444, 1.0
    %v4456 = vadd.f32 %v4446, 1.0
    %v4457 = vadd.f32 %v4448, 1.0
    %v4458 = vadd.f32 %v4450, 1.0
    %v4459 = vrcp.pop %v4451
    %v4460 = vmul.f32 %v4451, %v4459
    %v4461 = vsub.f32 1.0, %v4460
    %v4462 = vmul.f32 %v4459, %v4461
    %v4463 = vadd.f32 %v4459, %v4462
    %vm4464 = vweird.f32 %v4451
    %vm4465 = vweird.f32 %v4459
    %vm4466 = vmor %vm4464, %vm4465
    %v4467 = vsel %vm4466, %v4459, %v4463
    %v4468 = vand.u32 2147483647, %v4451
    %vm4469 = vcmp.eq.f32.partialorder %v4468, 8.507059e+37
    %v4470 = vand.u32 %v4451, 2147483648
    %v4471 = vor.u32 1.1754944e-38, %v4470
    %v4472 = vsel %vm4469, %v4471, %v4467
    %v4473 = vmul.f32 1.0, %v4472
    %v4474 = vrcp.pop %v4452
    %v4475 = vmul.f32 %v4452, %v4474
    %v4476 = vsub.f32 1.0, %v4475
    %v4477 = vmul.f32 %v4474, %v4476
    %v4478 = vadd.f32 %v4474, %v4477
    %vm4479 = vweird.f32 %v4452
    %vm4480 = vweird.f32 %v4474
    %vm4481 = vmor %vm4479, %vm4480
    %v4482 = vsel %vm4481, %v4474, %v4478
    %v4483 = vand.u32 2147483647, %v4452
    %vm4484 = vcmp.eq.f32.partialorder %v4483, 8.507059e+37
    %v4485 = vand.u32 %v4452, 2147483648
    %v4486 = vor.u32 1.1754944e-38, %v4485
    %v4487 = vsel %vm4484, %v4486, %v4482
    %v4488 = vmul.f32 1.0, %v4487
    %v4489 = vrcp.pop %v4453
    %v4490 = vmul.f32 %v4453, %v4489
    %v4491 = vsub.f32 1.0, %v4490
    %v4492 = vmul.f32 %v4489, %v4491
    %v4493 = vadd.f32 %v4489, %v4492
    %vm4494 = vweird.f32 %v4453
    %vm4495 = vweird.f32 %v4489
    %vm4496 = vmor %vm4494, %vm4495
    %v4497 = vsel %vm4496, %v4489, %v4493
    %v4498 = vand.u32 2147483647, %v4453
    %vm4499 = vcmp.eq.f32.partialorder %v4498, 8.507059e+37
    %v4500 = vand.u32 %v4453, 2147483648
    %v4501 = vor.u32 1.1754944e-38, %v4500
    %v4502 = vsel %vm4499, %v4501, %v4497
    %v4503 = vmul.f32 1.0, %v4502
    %v4504 = vrcp.pop %v4454
    %v4505 = vmul.f32 %v4454, %v4504
    %v4506 = vsub.f32 1.0, %v4505
    %v4507 = vmul.f32 %v4504, %v4506
    %v4508 = vadd.f32 %v4504, %v4507
    %vm4509 = vweird.f32 %v4454
    %vm4510 = vweird.f32 %v4504
    %vm4511 = vmor %vm4509, %vm4510
    %v4512 = vsel %vm4511, %v4504, %v4508
    %v4513 = vand.u32 2147483647, %v4454
    %vm4514 = vcmp.eq.f32.partialorder %v4513, 8.507059e+37
    %v4515 = vand.u32 %v4454, 2147483648
    %v4516 = vor.u32 1.1754944e-38, %v4515
    %v4517 = vsel %vm4514, %v4516, %v4512
    %v4518 = vmul.f32 1.0, %v4517
    %v4519 = vrcp.pop %v4455
    %v4520 = vmul.f32 %v4455, %v4519
    %v4521 = vsub.f32 1.0, %v4520
    %v4522 = vmul.f32 %v4519, %v4521
    %v4523 = vadd.f32 %v4519, %v4522
    %vm4524 = vweird.f32 %v4455
    %vm4525 = vweird.f32 %v4519
    %vm4526 = vmor %vm4524, %vm4525
    %v4527 = vsel %vm4526, %v4519, %v4523
    %v4528 = vand.u32 2147483647, %v4455
    %vm4529 = vcmp.eq.f32.partialorder %v4528, 8.507059e+37
    %v4530 = vand.u32 %v4455, 2147483648
    %v4531 = vor.u32 1.1754944e-38, %v4530
    %v4532 = vsel %vm4529, %v4531, %v4527
    %v4533 = vmul.f32 1.0, %v4532
    %v4534 = vrcp.pop %v4456
    %v4535 = vmul.f32 %v4456, %v4534
    %v4536 = vsub.f32 1.0, %v4535
    %v4537 = vmul.f32 %v4534, %v4536
    %v4538 = vadd.f32 %v4534, %v4537
    %vm4539 = vweird.f32 %v4456
    %vm4540 = vweird.f32 %v4534
    %vm4541 = vmor %vm4539, %vm4540
    %v4542 = vsel %vm4541, %v4534, %v4538
    %v4543 = vand.u32 2147483647, %v4456
    %vm4544 = vcmp.eq.f32.partialorder %v4543, 8.507059e+37
    %v4545 = vand.u32 %v4456, 2147483648
    %v4546 = vor.u32 1.1754944e-38, %v4545
    %v4547 = vsel %vm4544, %v4546, %v4542
    %v4548 = vmul.f32 1.0, %v4547
    %v4549 = vrcp.pop %v4457
    %v4550 = vmul.f32 %v4457, %v4549
    %v4551 = vsub.f32 1.0, %v4550
    %v4552 = vmul.f32 %v4549, %v4551
    %v4553 = vadd.f32 %v4549, %v4552
    %vm4554 = vweird.f32 %v4457
    %vm4555 = vweird.f32 %v4549
    %vm4556 = vmor %vm4554, %vm4555
    %v4557 = vsel %vm4556, %v4549, %v4553
    %v4558 = vand.u32 2147483647, %v4457
    %vm4559 = vcmp.eq.f32.partialorder %v4558, 8.507059e+37
    %v4560 = vand.u32 %v4457, 2147483648
    %v4561 = vor.u32 1.1754944e-38, %v4560
    %v4562 = vsel %vm4559, %v4561, %v4557
    %v4563 = vmul.f32 1.0, %v4562
    %v4564 = vrcp.pop %v4458
    %v4565 = vmul.f32 %v4458, %v4564
    %v4566 = vsub.f32 1.0, %v4565
    %v4567 = vmul.f32 %v4564, %v4566
    %v4568 = vadd.f32 %v4564, %v4567
    %vm4569 = vweird.f32 %v4458
    %vm4570 = vweird.f32 %v4564
    %vm4571 = vmor %vm4569, %vm4570
    %v4572 = vsel %vm4571, %v4564, %v4568
    %v4573 = vand.u32 2147483647, %v4458
    %vm4574 = vcmp.eq.f32.partialorder %v4573, 8.507059e+37
    %v4575 = vand.u32 %v4458, 2147483648
    %v4576 = vor.u32 1.1754944e-38, %v4575
    %v4577 = vsel %vm4574, %v4576, %v4572
    %v4578 = vmul.f32 1.0, %v4577
    %v4579 = vrot.slane %v4243, 2
    %v4580 = vrot.slane %v4244, 2
    %v4581 = vrot.slane %v4245, 2
    %v4582 = vrot.slane %v4246, 2
    %v4583 = vrot.slane %v4247, 2
    %v4584 = vrot.slane %v4248, 2
    %v4585 = vrot.slane %v4249, 2
    %v4586 = vrot.slane %v4250, 2
    %v4595 = vtanh.pop %v4579
    %v4596 = vtanh.pop %v4580
    %v4597 = vtanh.pop %v4581
    %v4598 = vtanh.pop %v4582
    %v4599 = vtanh.pop %v4583
    %v4600 = vtanh.pop %v4584
    %v4601 = vtanh.pop %v4585
    %v4602 = vtanh.pop %v4586
    %v4603 = vrot.slane %v4243, 3
    %v4604 = vrot.slane %v4244, 3
    %v4605 = vrot.slane %v4245, 3
    %v4606 = vrot.slane %v4246, 3
    %v4607 = vrot.slane %v4247, 3
    %v4608 = vrot.slane %v4248, 3
    %v4609 = vrot.slane %v4249, 3
    %v4610 = vrot.slane %v4250, 3
    %v4619 = vxor.u32 %v4603, 2147483648
    %v4620 = vxor.u32 %v4604, 2147483648
    %v4621 = vxor.u32 %v4605, 2147483648
    %v4622 = vxor.u32 %v4606, 2147483648
    %v4623 = vxor.u32 %v4607, 2147483648
    %v4624 = vxor.u32 %v4608, 2147483648
    %v4625 = vxor.u32 %v4609, 2147483648
    %v4626 = vxor.u32 %v4610, 2147483648
    %v4627 = vmul.f32 %v4619, 1.442695
    %v4628 = vpow.pop %v4627
    %v4629 = vmul.f32 %v4620, 1.442695
    %v4630 = vpow.pop %v4629
    %v4631 = vmul.f32 %v4621, 1.442695
    %v4632 = vpow.pop %v4631
    %v4633 = vmul.f32 %v4622, 1.442695
    %v4634 = vpow.pop %v4633
    %v4635 = vmul.f32 %v4623, 1.442695
    %v4636 = vpow.pop %v4635
    %v4637 = vmul.f32 %v4624, 1.442695
    %v4638 = vpow.pop %v4637
    %v4639 = vmul.f32 %v4625, 1.442695
    %v4640 = vpow.pop %v4639
    %v4641 = vmul.f32 %v4626, 1.442695
    %v4642 = vpow.pop %v4641
    %v4643 = vadd.f32 %v4628, 1.0
    %v4644 = vadd.f32 %v4630, 1.0
    %v4645 = vadd.f32 %v4632, 1.0
    %v4646 = vadd.f32 %v4634, 1.0
    %v4647 = vadd.f32 %v4636, 1.0
    %v4648 = vadd.f32 %v4638, 1.0
    %v4649 = vadd.f32 %v4640, 1.0
    %v4650 = vadd.f32 %v4642, 1.0
    %v4651 = vrcp.pop %v4643
    %v4652 = vmul.f32 %v4643, %v4651
    %v4653 = vsub.f32 1.0, %v4652
    %v4654 = vmul.f32 %v4651, %v4653
    %v4655 = vadd.f32 %v4651, %v4654
    %vm4656 = vweird.f32 %v4643
    %vm4657 = vweird.f32 %v4651
    %vm4658 = vmor %vm4656, %vm4657
    %v4659 = vsel %vm4658, %v4651, %v4655
    %v4660 = vand.u32 2147483647, %v4643
    %vm4661 = vcmp.eq.f32.partialorder %v4660, 8.507059e+37
    %v4662 = vand.u32 %v4643, 2147483648
    %v4663 = vor.u32 1.1754944e-38, %v4662
    %v4664 = vsel %vm4661, %v4663, %v4659
    %v4665 = vmul.f32 1.0, %v4664
    %v4666 = vrcp.pop %v4644
    %v4667 = vmul.f32 %v4644, %v4666
    %v4668 = vsub.f32 1.0, %v4667
    %v4669 = vmul.f32 %v4666, %v4668
    %v4670 = vadd.f32 %v4666, %v4669
    %vm4671 = vweird.f32 %v4644
    %vm4672 = vweird.f32 %v4666
    %vm4673 = vmor %vm4671, %vm4672
    %v4674 = vsel %vm4673, %v4666, %v4670
    %v4675 = vand.u32 2147483647, %v4644
    %vm4676 = vcmp.eq.f32.partialorder %v4675, 8.507059e+37
    %v4677 = vand.u32 %v4644, 2147483648
    %v4678 = vor.u32 1.1754944e-38, %v4677
    %v4679 = vsel %vm4676, %v4678, %v4674
    %v4680 = vmul.f32 1.0, %v4679
    %v4681 = vrcp.pop %v4645
    %v4682 = vmul.f32 %v4645, %v4681
    %v4683 = vsub.f32 1.0, %v4682
    %v4684 = vmul.f32 %v4681, %v4683
    %v4685 = vadd.f32 %v4681, %v4684
    %vm4686 = vweird.f32 %v4645
    %vm4687 = vweird.f32 %v4681
    %vm4688 = vmor %vm4686, %vm4687
    %v4689 = vsel %vm4688, %v4681, %v4685
    %v4690 = vand.u32 2147483647, %v4645
    %vm4691 = vcmp.eq.f32.partialorder %v4690, 8.507059e+37
    %v4692 = vand.u32 %v4645, 2147483648
    %v4693 = vor.u32 1.1754944e-38, %v4692
    %v4694 = vsel %vm4691, %v4693, %v4689
    %v4695 = vmul.f32 1.0, %v4694
    %v4696 = vrcp.pop %v4646
    %v4697 = vmul.f32 %v4646, %v4696
    %v4698 = vsub.f32 1.0, %v4697
    %v4699 = vmul.f32 %v4696, %v4698
    %v4700 = vadd.f32 %v4696, %v4699
    %vm4701 = vweird.f32 %v4646
    %vm4702 = vweird.f32 %v4696
    %vm4703 = vmor %vm4701, %vm4702
    %v4704 = vsel %vm4703, %v4696, %v4700
    %v4705 = vand.u32 2147483647, %v4646
    %vm4706 = vcmp.eq.f32.partialorder %v4705, 8.507059e+37
    %v4707 = vand.u32 %v4646, 2147483648
    %v4708 = vor.u32 1.1754944e-38, %v4707
    %v4709 = vsel %vm4706, %v4708, %v4704
    %v4710 = vmul.f32 1.0, %v4709
    %v4711 = vrcp.pop %v4647
    %v4712 = vmul.f32 %v4647, %v4711
    %v4713 = vsub.f32 1.0, %v4712
    %v4714 = vmul.f32 %v4711, %v4713
    %v4715 = vadd.f32 %v4711, %v4714
    %vm4716 = vweird.f32 %v4647
    %vm4717 = vweird.f32 %v4711
    %vm4718 = vmor %vm4716, %vm4717
    %v4719 = vsel %vm4718, %v4711, %v4715
    %v4720 = vand.u32 2147483647, %v4647
    %vm4721 = vcmp.eq.f32.partialorder %v4720, 8.507059e+37
    %v4722 = vand.u32 %v4647, 2147483648
    %v4723 = vor.u32 1.1754944e-38, %v4722
    %v4724 = vsel %vm4721, %v4723, %v4719
    %v4725 = vmul.f32 1.0, %v4724
    %v4726 = vrcp.pop %v4648
    %v4727 = vmul.f32 %v4648, %v4726
    %v4728 = vsub.f32 1.0, %v4727
    %v4729 = vmul.f32 %v4726, %v4728
    %v4730 = vadd.f32 %v4726, %v4729
    %vm4731 = vweird.f32 %v4648
    %vm4732 = vweird.f32 %v4726
    %vm4733 = vmor %vm4731, %vm4732
    %v4734 = vsel %vm4733, %v4726, %v4730
    %v4735 = vand.u32 2147483647, %v4648
    %vm4736 = vcmp.eq.f32.partialorder %v4735, 8.507059e+37
    %v4737 = vand.u32 %v4648, 2147483648
    %v4738 = vor.u32 1.1754944e-38, %v4737
    %v4739 = vsel %vm4736, %v4738, %v4734
    %v4740 = vmul.f32 1.0, %v4739
    %v4741 = vrcp.pop %v4649
    %v4742 = vmul.f32 %v4649, %v4741
    %v4743 = vsub.f32 1.0, %v4742
    %v4744 = vmul.f32 %v4741, %v4743
    %v4745 = vadd.f32 %v4741, %v4744
    %vm4746 = vweird.f32 %v4649
    %vm4747 = vweird.f32 %v4741
    %vm4748 = vmor %vm4746, %vm4747
    %v4749 = vsel %vm4748, %v4741, %v4745
    %v4750 = vand.u32 2147483647, %v4649
    %vm4751 = vcmp.eq.f32.partialorder %v4750, 8.507059e+37
    %v4752 = vand.u32 %v4649, 2147483648
    %v4753 = vor.u32 1.1754944e-38, %v4752
    %v4754 = vsel %vm4751, %v4753, %v4749
    %v4755 = vmul.f32 1.0, %v4754
    %v4756 = vrcp.pop %v4650
    %v4757 = vmul.f32 %v4650, %v4756
    %v4758 = vsub.f32 1.0, %v4757
    %v4759 = vmul.f32 %v4756, %v4758
    %v4760 = vadd.f32 %v4756, %v4759
    %vm4761 = vweird.f32 %v4650
    %vm4762 = vweird.f32 %v4756
    %vm4763 = vmor %vm4761, %vm4762
    %v4764 = vsel %vm4763, %v4756, %v4760
    %v4765 = vand.u32 2147483647, %v4650
    %vm4766 = vcmp.eq.f32.partialorder %v4765, 8.507059e+37
    %v4767 = vand.u32 %v4650, 2147483648
    %v4768 = vor.u32 1.1754944e-38, %v4767
    %v4769 = vsel %vm4766, %v4768, %v4764
    %v4770 = vmul.f32 1.0, %v4769
    %v4771 = vmul.f32 %v4473, %v4057
    %v4772 = vmul.f32 %v4488, %v4058
    %v4773 = vmul.f32 %v4503, %v4059
    %v4774 = vmul.f32 %v4518, %v4060
    %v4775 = vmul.f32 %v4533, %v4061
    %v4776 = vmul.f32 %v4548, %v4062
    %v4777 = vmul.f32 %v4563, %v4063
    %v4778 = vmul.f32 %v4578, %v4064
    %v4779 = vmul.f32 %v4297, %v4595
    %v4780 = vmul.f32 %v4312, %v4596
    %v4781 = vmul.f32 %v4327, %v4597
    %v4782 = vmul.f32 %v4342, %v4598
    %v4783 = vmul.f32 %v4357, %v4599
    %v4784 = vmul.f32 %v4372, %v4600
    %v4785 = vmul.f32 %v4387, %v4601
    %v4786 = vmul.f32 %v4402, %v4602
    %v4787 = vadd.f32 %v4771, %v4779
    %v4788 = vadd.f32 %v4772, %v4780
    %v4789 = vadd.f32 %v4773, %v4781
    %v4790 = vadd.f32 %v4774, %v4782
    %v4791 = vadd.f32 %v4775, %v4783
    %v4792 = vadd.f32 %v4776, %v4784
    %v4793 = vadd.f32 %v4777, %v4785
    %v4794 = vadd.f32 %v4778, %v4786
    %v4795 = vtanh.pop %v4787
    %v4796 = vtanh.pop %v4788
    %v4797 = vtanh.pop %v4789
    %v4798 = vtanh.pop %v4790
    %v4799 = vtanh.pop %v4791
    %v4800 = vtanh.pop %v4792
    %v4801 = vtanh.pop %v4793
    %v4802 = vtanh.pop %v4794
    %v4803 = vmul.f32 %v4665, %v4795
    %v4804 = vmul.f32 %v4680, %v4796
    %v4805 = vmul.f32 %v4695, %v4797
    %v4806 = vmul.f32 %v4710, %v4798
    %v4807 = vmul.f32 %v4725, %v4799
    %v4808 = vmul.f32 %v4740, %v4800
    %v4809 = vmul.f32 %v4755, %v4801
    %v4810 = vmul.f32 %v4770, %v4802
    %4811 = vst [vmem:[#allocation5 + $0x5] sm:$0x1] %v4803
    %4812 = vst [vmem:[#allocation5 + $0xd] sm:$0x1] %v4804
    %4813 = vst [vmem:[#allocation5 + $0x15] sm:$0x1] %v4805
    %4814 = vst [vmem:[#allocation5 + $0x1d] sm:$0x1] %v4806
    %4815 = vst [vmem:[#allocation5 + $0x25] sm:$0x1] %v4807
    %4816 = vst [vmem:[#allocation5 + $0x2d] sm:$0x1] %v4808
    %4817 = vst [vmem:[#allocation5 + $0x35] sm:$0x1] %v4809
    %4818 = vst [vmem:[#allocation5 + $0x3d] sm:$0x1] %v4810
    %s4819 = scalar_lea.vmem [#allocation4], 6
    %v4820 = vld [vmem:[%s4819] ss:$8 sm:$0xf]
    %s4821 = scalar_lea.vmem [#allocation4], 38
    %v4822 = vld [vmem:[%s4821] ss:$8 sm:$0xf]
    %s4823 = scalar_lea.vmem [#allocation4], 70
    %v4824 = vld [vmem:[%s4823] ss:$8 sm:$0xf]
    %s4825 = scalar_lea.vmem [#allocation4], 102
    %v4826 = vld [vmem:[%s4825] ss:$8 sm:$0xf]
    %s4827 = scalar_lea.vmem [#allocation4], 134
    %v4828 = vld [vmem:[%s4827] ss:$8 sm:$0xf]
    %s4829 = scalar_lea.vmem [#allocation4], 166
    %v4830 = vld [vmem:[%s4829] ss:$8 sm:$0xf]
    %s4831 = scalar_lea.vmem [#allocation4], 198
    %v4832 = vld [vmem:[%s4831] ss:$8 sm:$0xf]
    %s4833 = scalar_lea.vmem [#allocation4], 230
    %v4834 = vld [vmem:[%s4833] ss:$8 sm:$0xf]
    %v4835 = vpack.c.bf16 %v4803, %v4803
    %v4836 = vpack.c.bf16 %v4804, %v4804
    %v4837 = vpack.c.bf16 %v4805, %v4805
    %v4838 = vpack.c.bf16 %v4806, %v4806
    %v4839 = vpack.c.bf16 %v4807, %v4807
    %v4840 = vpack.c.bf16 %v4808, %v4808
    %v4841 = vpack.c.bf16 %v4809, %v4809
    %v4842 = vpack.c.bf16 %v4810, %v4810
    %v4851 = vunpack.c.l.b16 %v4835
    %v4852 = vunpack.c.l.b16 %v4836
    %v4853 = vunpack.c.l.b16 %v4837
    %v4854 = vunpack.c.l.b16 %v4838
    %v4855 = vunpack.c.l.b16 %v4839
    %v4856 = vunpack.c.l.b16 %v4840
    %v4857 = vunpack.c.l.b16 %v4841
    %v4858 = vunpack.c.l.b16 %v4842
    %v4859 = vrot.slane %v4852, 7
    %v4860 = vsel %vm528, %v4859, %v4851
    %v4861 = vrot.slane %v4853, 6
    %v4862 = vsel %vm524, %v4861, %v4860
    %v4863 = vrot.slane %v4854, 5
    %v4864 = vsel %vm530, %v4863, %v4862
    %v4865 = vrot.slane %v4855, 4
    %v4866 = vsel %vm536, %v4865, %v4864
    %v4867 = vrot.slane %v4856, 3
    %v4868 = vsel %vm542, %v4867, %v4866
    %v4869 = vrot.slane %v4857, 2
    %v4870 = vsel %vm548, %v4869, %v4868
    %v4871 = vrot.slane %v4858, 1
    %v4872 = vsel %vm1221, %v4871, %v4870
    %v4873 = vpack.c.b16 %v4872, %v4872
    %4875 = vmatpush.bf16.msra.mxu0 %v427
    %4876 = vmatpush.bf16.msra.mxu0 %v423
    %4877 = vmatpush.bf16.msra.mxu0 %v419
    %4878 = vmatpush.bf16.msra.mxu0 %v415
    %4879 = vmatpush.bf16.msra.mxu0 %v411
    %4880 = vmatpush.bf16.msra.mxu0 %v407
    %4881 = vmatpush.bf16.msra.mxu0 %v403
    %4882 = vmatpush.bf16.msra.mxu0 %v399
    %4883 = vmatmul.bf16.gmra.mxu0 %v4873
    %v4884 = vpop.f32.mrf.mxu0
    %v4885 = vadd.f32 0.0, %v4884
    %v4886 = vpop.f32.mrf.mxu0
    %4887 = vdwg.mxu0
    %4888 = vmatpush.bf16.msra.mxu0 %v428
    %4889 = vmatpush.bf16.msra.mxu0 %v424
    %4890 = vmatpush.bf16.msra.mxu0 %v420
    %4891 = vmatpush.bf16.msra.mxu0 %v416
    %4892 = vmatpush.bf16.msra.mxu0 %v412
    %4893 = vmatpush.bf16.msra.mxu0 %v408
    %4894 = vmatpush.bf16.msra.mxu0 %v404
    %4895 = vmatpush.bf16.msra.mxu0 %v400
    %4896 = vmatmul.bf16.gmra.mxu0 %v4873
    %v4897 = vpop.f32.mrf.mxu0
    %v4898 = vadd.f32 0.0, %v4897
    %v4899 = vpop.f32.mrf.mxu0
    %4900 = vdwg.mxu0
    %4901 = vmatpush.bf16.msra.mxu0 %v429
    %4902 = vmatpush.bf16.msra.mxu0 %v425
    %4903 = vmatpush.bf16.msra.mxu0 %v421
    %4904 = vmatpush.bf16.msra.mxu0 %v417
    %4905 = vmatpush.bf16.msra.mxu0 %v413
    %4906 = vmatpush.bf16.msra.mxu0 %v409
    %4907 = vmatpush.bf16.msra.mxu0 %v405
    %4908 = vmatpush.bf16.msra.mxu0 %v401
    %4909 = vmatmul.bf16.gmra.mxu0 %v4873
    %v4910 = vpop.f32.mrf.mxu0
    %v4911 = vadd.f32 0.0, %v4910
    %v4912 = vpop.f32.mrf.mxu0
    %4913 = vdwg.mxu0
    %4914 = vmatpush.bf16.msra.mxu0 %v430
    %4915 = vmatpush.bf16.msra.mxu0 %v426
    %4916 = vmatpush.bf16.msra.mxu0 %v422
    %4917 = vmatpush.bf16.msra.mxu0 %v418
    %4918 = vmatpush.bf16.msra.mxu0 %v414
    %4919 = vmatpush.bf16.msra.mxu0 %v410
    %4920 = vmatpush.bf16.msra.mxu0 %v406
    %4921 = vmatpush.bf16.msra.mxu0 %v402
    %4922 = vmatmul.bf16.gmra.mxu0 %v4873
    %v4923 = vpop.f32.mrf.mxu0
    %v4924 = vadd.f32 0.0, %v4923
    %v4925 = vpop.f32.mrf.mxu0
    %4926 = vdwg.mxu0
    %v4931 = vrot.slane %v4898, 7
    %v4932 = vrot.slane %v4911, 6
    %v4933 = vrot.slane %v4924, 5
    %v4934 = vsel %vm522, %v4885, %v4931
    %v4935 = vsel %vm524, %v4932, %v4933
    %v4936 = vsel %vm526, %v4934, %v4935
    %v4937 = vsel %vm528, %v4885, %v4931
    %v4938 = vsel %vm530, %v4932, %v4933
    %v4939 = vsel %vm532, %v4937, %v4938
    %v4940 = vrot.slane %v4939, 1
    %v4941 = vsel %vm524, %v4885, %v4931
    %v4942 = vsel %vm536, %v4932, %v4933
    %v4943 = vsel %vm538, %v4941, %v4942
    %v4944 = vrot.slane %v4943, 2
    %v4945 = vsel %vm530, %v4885, %v4931
    %v4946 = vsel %vm542, %v4932, %v4933
    %v4947 = vsel %vm544, %v4945, %v4946
    %v4948 = vrot.slane %v4947, 3
    %v4949 = vsel %vm536, %v4885, %v4931
    %v4950 = vsel %vm548, %v4932, %v4933
    %v4951 = vsel %vm550, %v4949, %v4950
    %v4952 = vrot.slane %v4951, 4
    %v4953 = vsel %vm542, %v4885, %v4931
    %v4954 = vsel %vm554, %v4933, %v4932
    %v4955 = vsel %vm556, %v4953, %v4954
    %v4956 = vrot.slane %v4955, 5
    %v4957 = vsel %vm548, %v4885, %v4931
    %v4958 = vsel %vm522, %v4932, %v4933
    %v4959 = vsel %vm561, %v4958, %v4957
    %v4960 = vrot.slane %v4959, 6
    %v4961 = vsel %vm554, %v4931, %v4885
    %v4962 = vsel %vm528, %v4932, %v4933
    %v4963 = vsel %vm566, %v4962, %v4961
    %v4964 = vrot.slane %v4963, 7
    %v4973 = vadd.f32 %v4820, %v4936
    %v4974 = vadd.f32 %v4822, %v4940
    %v4975 = vadd.f32 %v4824, %v4944
    %v4976 = vadd.f32 %v4826, %v4948
    %v4977 = vadd.f32 %v4828, %v4952
    %v4978 = vadd.f32 %v4830, %v4956
    %v4979 = vadd.f32 %v4832, %v4960
    %v4980 = vadd.f32 %v4834, %v4964
    %v4981 = vxor.u32 %v4973, 2147483648
    %v4982 = vxor.u32 %v4974, 2147483648
    %v4983 = vxor.u32 %v4975, 2147483648
    %v4984 = vxor.u32 %v4976, 2147483648
    %v4985 = vxor.u32 %v4977, 2147483648
    %v4986 = vxor.u32 %v4978, 2147483648
    %v4987 = vxor.u32 %v4979, 2147483648
    %v4988 = vxor.u32 %v4980, 2147483648
    %v4989 = vmul.f32 %v4981, 1.442695
    %v4990 = vpow.pop %v4989
    %v4991 = vmul.f32 %v4982, 1.442695
    %v4992 = vpow.pop %v4991
    %v4993 = vmul.f32 %v4983, 1.442695
    %v4994 = vpow.pop %v4993
    %v4995 = vmul.f32 %v4984, 1.442695
    %v4996 = vpow.pop %v4995
    %v4997 = vmul.f32 %v4985, 1.442695
    %v4998 = vpow.pop %v4997
    %v4999 = vmul.f32 %v4986, 1.442695
    %v5000 = vpow.pop %v4999
    %v5001 = vmul.f32 %v4987, 1.442695
    %v5002 = vpow.pop %v5001
    %v5003 = vmul.f32 %v4988, 1.442695
    %v5004 = vpow.pop %v5003
    %v5005 = vadd.f32 %v4990, 1.0
    %v5006 = vadd.f32 %v4992, 1.0
    %v5007 = vadd.f32 %v4994, 1.0
    %v5008 = vadd.f32 %v4996, 1.0
    %v5009 = vadd.f32 %v4998, 1.0
    %v5010 = vadd.f32 %v5000, 1.0
    %v5011 = vadd.f32 %v5002, 1.0
    %v5012 = vadd.f32 %v5004, 1.0
    %v5013 = vrcp.pop %v5005
    %v5014 = vmul.f32 %v5005, %v5013
    %v5015 = vsub.f32 1.0, %v5014
    %v5016 = vmul.f32 %v5013, %v5015
    %v5017 = vadd.f32 %v5013, %v5016
    %vm5018 = vweird.f32 %v5005
    %vm5019 = vweird.f32 %v5013
    %vm5020 = vmor %vm5018, %vm5019
    %v5021 = vsel %vm5020, %v5013, %v5017
    %v5022 = vand.u32 2147483647, %v5005
    %vm5023 = vcmp.eq.f32.partialorder %v5022, 8.507059e+37
    %v5024 = vand.u32 %v5005, 2147483648
    %v5025 = vor.u32 1.1754944e-38, %v5024
    %v5026 = vsel %vm5023, %v5025, %v5021
    %v5027 = vmul.f32 1.0, %v5026
    %v5028 = vrcp.pop %v5006
    %v5029 = vmul.f32 %v5006, %v5028
    %v5030 = vsub.f32 1.0, %v5029
    %v5031 = vmul.f32 %v5028, %v5030
    %v5032 = vadd.f32 %v5028, %v5031
    %vm5033 = vweird.f32 %v5006
    %vm5034 = vweird.f32 %v5028
    %vm5035 = vmor %vm5033, %vm5034
    %v5036 = vsel %vm5035, %v5028, %v5032
    %v5037 = vand.u32 2147483647, %v5006
    %vm5038 = vcmp.eq.f32.partialorder %v5037, 8.507059e+37
    %v5039 = vand.u32 %v5006, 2147483648
    %v5040 = vor.u32 1.1754944e-38, %v5039
    %v5041 = vsel %vm5038, %v5040, %v5036
    %v5042 = vmul.f32 1.0, %v5041
    %v5043 = vrcp.pop %v5007
    %v5044 = vmul.f32 %v5007, %v5043
    %v5045 = vsub.f32 1.0, %v5044
    %v5046 = vmul.f32 %v5043, %v5045
    %v5047 = vadd.f32 %v5043, %v5046
    %vm5048 = vweird.f32 %v5007
    %vm5049 = vweird.f32 %v5043
    %vm5050 = vmor %vm5048, %vm5049
    %v5051 = vsel %vm5050, %v5043, %v5047
    %v5052 = vand.u32 2147483647, %v5007
    %vm5053 = vcmp.eq.f32.partialorder %v5052, 8.507059e+37
    %v5054 = vand.u32 %v5007, 2147483648
    %v5055 = vor.u32 1.1754944e-38, %v5054
    %v5056 = vsel %vm5053, %v5055, %v5051
    %v5057 = vmul.f32 1.0, %v5056
    %v5058 = vrcp.pop %v5008
    %v5059 = vmul.f32 %v5008, %v5058
    %v5060 = vsub.f32 1.0, %v5059
    %v5061 = vmul.f32 %v5058, %v5060
    %v5062 = vadd.f32 %v5058, %v5061
    %vm5063 = vweird.f32 %v5008
    %vm5064 = vweird.f32 %v5058
    %vm5065 = vmor %vm5063, %vm5064
    %v5066 = vsel %vm5065, %v5058, %v5062
    %v5067 = vand.u32 2147483647, %v5008
    %vm5068 = vcmp.eq.f32.partialorder %v5067, 8.507059e+37
    %v5069 = vand.u32 %v5008, 2147483648
    %v5070 = vor.u32 1.1754944e-38, %v5069
    %v5071 = vsel %vm5068, %v5070, %v5066
    %v5072 = vmul.f32 1.0, %v5071
    %v5073 = vrcp.pop %v5009
    %v5074 = vmul.f32 %v5009, %v5073
    %v5075 = vsub.f32 1.0, %v5074
    %v5076 = vmul.f32 %v5073, %v5075
    %v5077 = vadd.f32 %v5073, %v5076
    %vm5078 = vweird.f32 %v5009
    %vm5079 = vweird.f32 %v5073
    %vm5080 = vmor %vm5078, %vm5079
    %v5081 = vsel %vm5080, %v5073, %v5077
    %v5082 = vand.u32 2147483647, %v5009
    %vm5083 = vcmp.eq.f32.partialorder %v5082, 8.507059e+37
    %v5084 = vand.u32 %v5009, 2147483648
    %v5085 = vor.u32 1.1754944e-38, %v5084
    %v5086 = vsel %vm5083, %v5085, %v5081
    %v5087 = vmul.f32 1.0, %v5086
    %v5088 = vrcp.pop %v5010
    %v5089 = vmul.f32 %v5010, %v5088
    %v5090 = vsub.f32 1.0, %v5089
    %v5091 = vmul.f32 %v5088, %v5090
    %v5092 = vadd.f32 %v5088, %v5091
    %vm5093 = vweird.f32 %v5010
    %vm5094 = vweird.f32 %v5088
    %vm5095 = vmor %vm5093, %vm5094
    %v5096 = vsel %vm5095, %v5088, %v5092
    %v5097 = vand.u32 2147483647, %v5010
    %vm5098 = vcmp.eq.f32.partialorder %v5097, 8.507059e+37
    %v5099 = vand.u32 %v5010, 2147483648
    %v5100 = vor.u32 1.1754944e-38, %v5099
    %v5101 = vsel %vm5098, %v5100, %v5096
    %v5102 = vmul.f32 1.0, %v5101
    %v5103 = vrcp.pop %v5011
    %v5104 = vmul.f32 %v5011, %v5103
    %v5105 = vsub.f32 1.0, %v5104
    %v5106 = vmul.f32 %v5103, %v5105
    %v5107 = vadd.f32 %v5103, %v5106
    %vm5108 = vweird.f32 %v5011
    %vm5109 = vweird.f32 %v5103
    %vm5110 = vmor %vm5108, %vm5109
    %v5111 = vsel %vm5110, %v5103, %v5107
    %v5112 = vand.u32 2147483647, %v5011
    %vm5113 = vcmp.eq.f32.partialorder %v5112, 8.507059e+37
    %v5114 = vand.u32 %v5011, 2147483648
    %v5115 = vor.u32 1.1754944e-38, %v5114
    %v5116 = vsel %vm5113, %v5115, %v5111
    %v5117 = vmul.f32 1.0, %v5116
    %v5118 = vrcp.pop %v5012
    %v5119 = vmul.f32 %v5012, %v5118
    %v5120 = vsub.f32 1.0, %v5119
    %v5121 = vmul.f32 %v5118, %v5120
    %v5122 = vadd.f32 %v5118, %v5121
    %vm5123 = vweird.f32 %v5012
    %vm5124 = vweird.f32 %v5118
    %vm5125 = vmor %vm5123, %vm5124
    %v5126 = vsel %vm5125, %v5118, %v5122
    %v5127 = vand.u32 2147483647, %v5012
    %vm5128 = vcmp.eq.f32.partialorder %v5127, 8.507059e+37
    %v5129 = vand.u32 %v5012, 2147483648
    %v5130 = vor.u32 1.1754944e-38, %v5129
    %v5131 = vsel %vm5128, %v5130, %v5126
    %v5132 = vmul.f32 1.0, %v5131
    %v5141 = vrot.slane %v4973, 1
    %v5142 = vrot.slane %v4974, 1
    %v5143 = vrot.slane %v4975, 1
    %v5144 = vrot.slane %v4976, 1
    %v5145 = vrot.slane %v4977, 1
    %v5146 = vrot.slane %v4978, 1
    %v5147 = vrot.slane %v4979, 1
    %v5148 = vrot.slane %v4980, 1
    %v5157 = vxor.u32 %v5141, 2147483648
    %v5158 = vxor.u32 %v5142, 2147483648
    %v5159 = vxor.u32 %v5143, 2147483648
    %v5160 = vxor.u32 %v5144, 2147483648
    %v5161 = vxor.u32 %v5145, 2147483648
    %v5162 = vxor.u32 %v5146, 2147483648
    %v5163 = vxor.u32 %v5147, 2147483648
    %v5164 = vxor.u32 %v5148, 2147483648
    %v5165 = vmul.f32 %v5157, 1.442695
    %v5166 = vpow.pop %v5165
    %v5167 = vmul.f32 %v5158, 1.442695
    %v5168 = vpow.pop %v5167
    %v5169 = vmul.f32 %v5159, 1.442695
    %v5170 = vpow.pop %v5169
    %v5171 = vmul.f32 %v5160, 1.442695
    %v5172 = vpow.pop %v5171
    %v5173 = vmul.f32 %v5161, 1.442695
    %v5174 = vpow.pop %v5173
    %v5175 = vmul.f32 %v5162, 1.442695
    %v5176 = vpow.pop %v5175
    %v5177 = vmul.f32 %v5163, 1.442695
    %v5178 = vpow.pop %v5177
    %v5179 = vmul.f32 %v5164, 1.442695
    %v5180 = vpow.pop %v5179
    %v5181 = vadd.f32 %v5166, 1.0
    %v5182 = vadd.f32 %v5168, 1.0
    %v5183 = vadd.f32 %v5170, 1.0
    %v5184 = vadd.f32 %v5172, 1.0
    %v5185 = vadd.f32 %v5174, 1.0
    %v5186 = vadd.f32 %v5176, 1.0
    %v5187 = vadd.f32 %v5178, 1.0
    %v5188 = vadd.f32 %v5180, 1.0
    %v5189 = vrcp.pop %v5181
    %v5190 = vmul.f32 %v5181, %v5189
    %v5191 = vsub.f32 1.0, %v5190
    %v5192 = vmul.f32 %v5189, %v5191
    %v5193 = vadd.f32 %v5189, %v5192
    %vm5194 = vweird.f32 %v5181
    %vm5195 = vweird.f32 %v5189
    %vm5196 = vmor %vm5194, %vm5195
    %v5197 = vsel %vm5196, %v5189, %v5193
    %v5198 = vand.u32 2147483647, %v5181
    %vm5199 = vcmp.eq.f32.partialorder %v5198, 8.507059e+37
    %v5200 = vand.u32 %v5181, 2147483648
    %v5201 = vor.u32 1.1754944e-38, %v5200
    %v5202 = vsel %vm5199, %v5201, %v5197
    %v5203 = vmul.f32 1.0, %v5202
    %v5204 = vrcp.pop %v5182
    %v5205 = vmul.f32 %v5182, %v5204
    %v5206 = vsub.f32 1.0, %v5205
    %v5207 = vmul.f32 %v5204, %v5206
    %v5208 = vadd.f32 %v5204, %v5207
    %vm5209 = vweird.f32 %v5182
    %vm5210 = vweird.f32 %v5204
    %vm5211 = vmor %vm5209, %vm5210
    %v5212 = vsel %vm5211, %v5204, %v5208
    %v5213 = vand.u32 2147483647, %v5182
    %vm5214 = vcmp.eq.f32.partialorder %v5213, 8.507059e+37
    %v5215 = vand.u32 %v5182, 2147483648
    %v5216 = vor.u32 1.1754944e-38, %v5215
    %v5217 = vsel %vm5214, %v5216, %v5212
    %v5218 = vmul.f32 1.0, %v5217
    %v5219 = vrcp.pop %v5183
    %v5220 = vmul.f32 %v5183, %v5219
    %v5221 = vsub.f32 1.0, %v5220
    %v5222 = vmul.f32 %v5219, %v5221
    %v5223 = vadd.f32 %v5219, %v5222
    %vm5224 = vweird.f32 %v5183
    %vm5225 = vweird.f32 %v5219
    %vm5226 = vmor %vm5224, %vm5225
    %v5227 = vsel %vm5226, %v5219, %v5223
    %v5228 = vand.u32 2147483647, %v5183
    %vm5229 = vcmp.eq.f32.partialorder %v5228, 8.507059e+37
    %v5230 = vand.u32 %v5183, 2147483648
    %v5231 = vor.u32 1.1754944e-38, %v5230
    %v5232 = vsel %vm5229, %v5231, %v5227
    %v5233 = vmul.f32 1.0, %v5232
    %v5234 = vrcp.pop %v5184
    %v5235 = vmul.f32 %v5184, %v5234
    %v5236 = vsub.f32 1.0, %v5235
    %v5237 = vmul.f32 %v5234, %v5236
    %v5238 = vadd.f32 %v5234, %v5237
    %vm5239 = vweird.f32 %v5184
    %vm5240 = vweird.f32 %v5234
    %vm5241 = vmor %vm5239, %vm5240
    %v5242 = vsel %vm5241, %v5234, %v5238
    %v5243 = vand.u32 2147483647, %v5184
    %vm5244 = vcmp.eq.f32.partialorder %v5243, 8.507059e+37
    %v5245 = vand.u32 %v5184, 2147483648
    %v5246 = vor.u32 1.1754944e-38, %v5245
    %v5247 = vsel %vm5244, %v5246, %v5242
    %v5248 = vmul.f32 1.0, %v5247
    %v5249 = vrcp.pop %v5185
    %v5250 = vmul.f32 %v5185, %v5249
    %v5251 = vsub.f32 1.0, %v5250
    %v5252 = vmul.f32 %v5249, %v5251
    %v5253 = vadd.f32 %v5249, %v5252
    %vm5254 = vweird.f32 %v5185
    %vm5255 = vweird.f32 %v5249
    %vm5256 = vmor %vm5254, %vm5255
    %v5257 = vsel %vm5256, %v5249, %v5253
    %v5258 = vand.u32 2147483647, %v5185
    %vm5259 = vcmp.eq.f32.partialorder %v5258, 8.507059e+37
    %v5260 = vand.u32 %v5185, 2147483648
    %v5261 = vor.u32 1.1754944e-38, %v5260
    %v5262 = vsel %vm5259, %v5261, %v5257
    %v5263 = vmul.f32 1.0, %v5262
    %v5264 = vrcp.pop %v5186
    %v5265 = vmul.f32 %v5186, %v5264
    %v5266 = vsub.f32 1.0, %v5265
    %v5267 = vmul.f32 %v5264, %v5266
    %v5268 = vadd.f32 %v5264, %v5267
    %vm5269 = vweird.f32 %v5186
    %vm5270 = vweird.f32 %v5264
    %vm5271 = vmor %vm5269, %vm5270
    %v5272 = vsel %vm5271, %v5264, %v5268
    %v5273 = vand.u32 2147483647, %v5186
    %vm5274 = vcmp.eq.f32.partialorder %v5273, 8.507059e+37
    %v5275 = vand.u32 %v5186, 2147483648
    %v5276 = vor.u32 1.1754944e-38, %v5275
    %v5277 = vsel %vm5274, %v5276, %v5272
    %v5278 = vmul.f32 1.0, %v5277
    %v5279 = vrcp.pop %v5187
    %v5280 = vmul.f32 %v5187, %v5279
    %v5281 = vsub.f32 1.0, %v5280
    %v5282 = vmul.f32 %v5279, %v5281
    %v5283 = vadd.f32 %v5279, %v5282
    %vm5284 = vweird.f32 %v5187
    %vm5285 = vweird.f32 %v5279
    %vm5286 = vmor %vm5284, %vm5285
    %v5287 = vsel %vm5286, %v5279, %v5283
    %v5288 = vand.u32 2147483647, %v5187
    %vm5289 = vcmp.eq.f32.partialorder %v5288, 8.507059e+37
    %v5290 = vand.u32 %v5187, 2147483648
    %v5291 = vor.u32 1.1754944e-38, %v5290
    %v5292 = vsel %vm5289, %v5291, %v5287
    %v5293 = vmul.f32 1.0, %v5292
    %v5294 = vrcp.pop %v5188
    %v5295 = vmul.f32 %v5188, %v5294
    %v5296 = vsub.f32 1.0, %v5295
    %v5297 = vmul.f32 %v5294, %v5296
    %v5298 = vadd.f32 %v5294, %v5297
    %vm5299 = vweird.f32 %v5188
    %vm5300 = vweird.f32 %v5294
    %vm5301 = vmor %vm5299, %vm5300
    %v5302 = vsel %vm5301, %v5294, %v5298
    %v5303 = vand.u32 2147483647, %v5188
    %vm5304 = vcmp.eq.f32.partialorder %v5303, 8.507059e+37
    %v5305 = vand.u32 %v5188, 2147483648
    %v5306 = vor.u32 1.1754944e-38, %v5305
    %v5307 = vsel %vm5304, %v5306, %v5302
    %v5308 = vmul.f32 1.0, %v5307
    %v5309 = vrot.slane %v4973, 2
    %v5310 = vrot.slane %v4974, 2
    %v5311 = vrot.slane %v4975, 2
    %v5312 = vrot.slane %v4976, 2
    %v5313 = vrot.slane %v4977, 2
    %v5314 = vrot.slane %v4978, 2
    %v5315 = vrot.slane %v4979, 2
    %v5316 = vrot.slane %v4980, 2
    %v5325 = vtanh.pop %v5309
    %v5326 = vtanh.pop %v5310
    %v5327 = vtanh.pop %v5311
    %v5328 = vtanh.pop %v5312
    %v5329 = vtanh.pop %v5313
    %v5330 = vtanh.pop %v5314
    %v5331 = vtanh.pop %v5315
    %v5332 = vtanh.pop %v5316
    %v5333 = vrot.slane %v4973, 3
    %v5334 = vrot.slane %v4974, 3
    %v5335 = vrot.slane %v4975, 3
    %v5336 = vrot.slane %v4976, 3
    %v5337 = vrot.slane %v4977, 3
    %v5338 = vrot.slane %v4978, 3
    %v5339 = vrot.slane %v4979, 3
    %v5340 = vrot.slane %v4980, 3
    %v5349 = vxor.u32 %v5333, 2147483648
    %v5350 = vxor.u32 %v5334, 2147483648
    %v5351 = vxor.u32 %v5335, 2147483648
    %v5352 = vxor.u32 %v5336, 2147483648
    %v5353 = vxor.u32 %v5337, 2147483648
    %v5354 = vxor.u32 %v5338, 2147483648
    %v5355 = vxor.u32 %v5339, 2147483648
    %v5356 = vxor.u32 %v5340, 2147483648
    %v5357 = vmul.f32 %v5349, 1.442695
    %v5358 = vpow.pop %v5357
    %v5359 = vmul.f32 %v5350, 1.442695
    %v5360 = vpow.pop %v5359
    %v5361 = vmul.f32 %v5351, 1.442695
    %v5362 = vpow.pop %v5361
    %v5363 = vmul.f32 %v5352, 1.442695
    %v5364 = vpow.pop %v5363
    %v5365 = vmul.f32 %v5353, 1.442695
    %v5366 = vpow.pop %v5365
    %v5367 = vmul.f32 %v5354, 1.442695
    %v5368 = vpow.pop %v5367
    %v5369 = vmul.f32 %v5355, 1.442695
    %v5370 = vpow.pop %v5369
    %v5371 = vmul.f32 %v5356, 1.442695
    %v5372 = vpow.pop %v5371
    %v5373 = vadd.f32 %v5358, 1.0
    %v5374 = vadd.f32 %v5360, 1.0
    %v5375 = vadd.f32 %v5362, 1.0
    %v5376 = vadd.f32 %v5364, 1.0
    %v5377 = vadd.f32 %v5366, 1.0
    %v5378 = vadd.f32 %v5368, 1.0
    %v5379 = vadd.f32 %v5370, 1.0
    %v5380 = vadd.f32 %v5372, 1.0
    %v5381 = vrcp.pop %v5373
    %v5382 = vmul.f32 %v5373, %v5381
    %v5383 = vsub.f32 1.0, %v5382
    %v5384 = vmul.f32 %v5381, %v5383
    %v5385 = vadd.f32 %v5381, %v5384
    %vm5386 = vweird.f32 %v5373
    %vm5387 = vweird.f32 %v5381
    %vm5388 = vmor %vm5386, %vm5387
    %v5389 = vsel %vm5388, %v5381, %v5385
    %v5390 = vand.u32 2147483647, %v5373
    %vm5391 = vcmp.eq.f32.partialorder %v5390, 8.507059e+37
    %v5392 = vand.u32 %v5373, 2147483648
    %v5393 = vor.u32 1.1754944e-38, %v5392
    %v5394 = vsel %vm5391, %v5393, %v5389
    %v5395 = vmul.f32 1.0, %v5394
    %v5396 = vrcp.pop %v5374
    %v5397 = vmul.f32 %v5374, %v5396
    %v5398 = vsub.f32 1.0, %v5397
    %v5399 = vmul.f32 %v5396, %v5398
    %v5400 = vadd.f32 %v5396, %v5399
    %vm5401 = vweird.f32 %v5374
    %vm5402 = vweird.f32 %v5396
    %vm5403 = vmor %vm5401, %vm5402
    %v5404 = vsel %vm5403, %v5396, %v5400
    %v5405 = vand.u32 2147483647, %v5374
    %vm5406 = vcmp.eq.f32.partialorder %v5405, 8.507059e+37
    %v5407 = vand.u32 %v5374, 2147483648
    %v5408 = vor.u32 1.1754944e-38, %v5407
    %v5409 = vsel %vm5406, %v5408, %v5404
    %v5410 = vmul.f32 1.0, %v5409
    %v5411 = vrcp.pop %v5375
    %v5412 = vmul.f32 %v5375, %v5411
    %v5413 = vsub.f32 1.0, %v5412
    %v5414 = vmul.f32 %v5411, %v5413
    %v5415 = vadd.f32 %v5411, %v5414
    %vm5416 = vweird.f32 %v5375
    %vm5417 = vweird.f32 %v5411
    %vm5418 = vmor %vm5416, %vm5417
    %v5419 = vsel %vm5418, %v5411, %v5415
    %v5420 = vand.u32 2147483647, %v5375
    %vm5421 = vcmp.eq.f32.partialorder %v5420, 8.507059e+37
    %v5422 = vand.u32 %v5375, 2147483648
    %v5423 = vor.u32 1.1754944e-38, %v5422
    %v5424 = vsel %vm5421, %v5423, %v5419
    %v5425 = vmul.f32 1.0, %v5424
    %v5426 = vrcp.pop %v5376
    %v5427 = vmul.f32 %v5376, %v5426
    %v5428 = vsub.f32 1.0, %v5427
    %v5429 = vmul.f32 %v5426, %v5428
    %v5430 = vadd.f32 %v5426, %v5429
    %vm5431 = vweird.f32 %v5376
    %vm5432 = vweird.f32 %v5426
    %vm5433 = vmor %vm5431, %vm5432
    %v5434 = vsel %vm5433, %v5426, %v5430
    %v5435 = vand.u32 2147483647, %v5376
    %vm5436 = vcmp.eq.f32.partialorder %v5435, 8.507059e+37
    %v5437 = vand.u32 %v5376, 2147483648
    %v5438 = vor.u32 1.1754944e-38, %v5437
    %v5439 = vsel %vm5436, %v5438, %v5434
    %v5440 = vmul.f32 1.0, %v5439
    %v5441 = vrcp.pop %v5377
    %v5442 = vmul.f32 %v5377, %v5441
    %v5443 = vsub.f32 1.0, %v5442
    %v5444 = vmul.f32 %v5441, %v5443
    %v5445 = vadd.f32 %v5441, %v5444
    %vm5446 = vweird.f32 %v5377
    %vm5447 = vweird.f32 %v5441
    %vm5448 = vmor %vm5446, %vm5447
    %v5449 = vsel %vm5448, %v5441, %v5445
    %v5450 = vand.u32 2147483647, %v5377
    %vm5451 = vcmp.eq.f32.partialorder %v5450, 8.507059e+37
    %v5452 = vand.u32 %v5377, 2147483648
    %v5453 = vor.u32 1.1754944e-38, %v5452
    %v5454 = vsel %vm5451, %v5453, %v5449
    %v5455 = vmul.f32 1.0, %v5454
    %v5456 = vrcp.pop %v5378
    %v5457 = vmul.f32 %v5378, %v5456
    %v5458 = vsub.f32 1.0, %v5457
    %v5459 = vmul.f32 %v5456, %v5458
    %v5460 = vadd.f32 %v5456, %v5459
    %vm5461 = vweird.f32 %v5378
    %vm5462 = vweird.f32 %v5456
    %vm5463 = vmor %vm5461, %vm5462
    %v5464 = vsel %vm5463, %v5456, %v5460
    %v5465 = vand.u32 2147483647, %v5378
    %vm5466 = vcmp.eq.f32.partialorder %v5465, 8.507059e+37
    %v5467 = vand.u32 %v5378, 2147483648
    %v5468 = vor.u32 1.1754944e-38, %v5467
    %v5469 = vsel %vm5466, %v5468, %v5464
    %v5470 = vmul.f32 1.0, %v5469
    %v5471 = vrcp.pop %v5379
    %v5472 = vmul.f32 %v5379, %v5471
    %v5473 = vsub.f32 1.0, %v5472
    %v5474 = vmul.f32 %v5471, %v5473
    %v5475 = vadd.f32 %v5471, %v5474
    %vm5476 = vweird.f32 %v5379
    %vm5477 = vweird.f32 %v5471
    %vm5478 = vmor %vm5476, %vm5477
    %v5479 = vsel %vm5478, %v5471, %v5475
    %v5480 = vand.u32 2147483647, %v5379
    %vm5481 = vcmp.eq.f32.partialorder %v5480, 8.507059e+37
    %v5482 = vand.u32 %v5379, 2147483648
    %v5483 = vor.u32 1.1754944e-38, %v5482
    %v5484 = vsel %vm5481, %v5483, %v5479
    %v5485 = vmul.f32 1.0, %v5484
    %v5486 = vrcp.pop %v5380
    %v5487 = vmul.f32 %v5380, %v5486
    %v5488 = vsub.f32 1.0, %v5487
    %v5489 = vmul.f32 %v5486, %v5488
    %v5490 = vadd.f32 %v5486, %v5489
    %vm5491 = vweird.f32 %v5380
    %vm5492 = vweird.f32 %v5486
    %vm5493 = vmor %vm5491, %vm5492
    %v5494 = vsel %vm5493, %v5486, %v5490
    %v5495 = vand.u32 2147483647, %v5380
    %vm5496 = vcmp.eq.f32.partialorder %v5495, 8.507059e+37
    %v5497 = vand.u32 %v5380, 2147483648
    %v5498 = vor.u32 1.1754944e-38, %v5497
    %v5499 = vsel %vm5496, %v5498, %v5494
    %v5500 = vmul.f32 1.0, %v5499
    %v5501 = vmul.f32 %v5203, %v4787
    %v5502 = vmul.f32 %v5218, %v4788
    %v5503 = vmul.f32 %v5233, %v4789
    %v5504 = vmul.f32 %v5248, %v4790
    %v5505 = vmul.f32 %v5263, %v4791
    %v5506 = vmul.f32 %v5278, %v4792
    %v5507 = vmul.f32 %v5293, %v4793
    %v5508 = vmul.f32 %v5308, %v4794
    %v5509 = vmul.f32 %v5027, %v5325
    %v5510 = vmul.f32 %v5042, %v5326
    %v5511 = vmul.f32 %v5057, %v5327
    %v5512 = vmul.f32 %v5072, %v5328
    %v5513 = vmul.f32 %v5087, %v5329
    %v5514 = vmul.f32 %v5102, %v5330
    %v5515 = vmul.f32 %v5117, %v5331
    %v5516 = vmul.f32 %v5132, %v5332
    %v5517 = vadd.f32 %v5501, %v5509
    %v5518 = vadd.f32 %v5502, %v5510
    %v5519 = vadd.f32 %v5503, %v5511
    %v5520 = vadd.f32 %v5504, %v5512
    %v5521 = vadd.f32 %v5505, %v5513
    %v5522 = vadd.f32 %v5506, %v5514
    %v5523 = vadd.f32 %v5507, %v5515
    %v5524 = vadd.f32 %v5508, %v5516
    %v5525 = vtanh.pop %v5517
    %v5526 = vtanh.pop %v5518
    %v5527 = vtanh.pop %v5519
    %v5528 = vtanh.pop %v5520
    %v5529 = vtanh.pop %v5521
    %v5530 = vtanh.pop %v5522
    %v5531 = vtanh.pop %v5523
    %v5532 = vtanh.pop %v5524
    %v5533 = vmul.f32 %v5395, %v5525
    %v5534 = vmul.f32 %v5410, %v5526
    %v5535 = vmul.f32 %v5425, %v5527
    %v5536 = vmul.f32 %v5440, %v5528
    %v5537 = vmul.f32 %v5455, %v5529
    %v5538 = vmul.f32 %v5470, %v5530
    %v5539 = vmul.f32 %v5485, %v5531
    %v5540 = vmul.f32 %v5500, %v5532
    %5541 = vst [vmem:[#allocation5 + $0x6] sm:$0x1] %v5533
    %5542 = vst [vmem:[#allocation5 + $0xe] sm:$0x1] %v5534
    %5543 = vst [vmem:[#allocation5 + $0x16] sm:$0x1] %v5535
    %5544 = vst [vmem:[#allocation5 + $0x1e] sm:$0x1] %v5536
    %5545 = vst [vmem:[#allocation5 + $0x26] sm:$0x1] %v5537
    %5546 = vst [vmem:[#allocation5 + $0x2e] sm:$0x1] %v5538
    %5547 = vst [vmem:[#allocation5 + $0x36] sm:$0x1] %v5539
    %5548 = vst [vmem:[#allocation5 + $0x3e] sm:$0x1] %v5540
    %s5549 = scalar_lea.vmem [#allocation4], 7
    %v5550 = vld [vmem:[%s5549] ss:$8 sm:$0xf]
    %s5551 = scalar_lea.vmem [#allocation4], 39
    %v5552 = vld [vmem:[%s5551] ss:$8 sm:$0xf]
    %s5553 = scalar_lea.vmem [#allocation4], 71
    %v5554 = vld [vmem:[%s5553] ss:$8 sm:$0xf]
    %s5555 = scalar_lea.vmem [#allocation4], 103
    %v5556 = vld [vmem:[%s5555] ss:$8 sm:$0xf]
    %s5557 = scalar_lea.vmem [#allocation4], 135
    %v5558 = vld [vmem:[%s5557] ss:$8 sm:$0xf]
    %s5559 = scalar_lea.vmem [#allocation4], 167
    %v5560 = vld [vmem:[%s5559] ss:$8 sm:$0xf]
    %s5561 = scalar_lea.vmem [#allocation4], 199
    %v5562 = vld [vmem:[%s5561] ss:$8 sm:$0xf]
    %s5563 = scalar_lea.vmem [#allocation4], 231
    %v5564 = vld [vmem:[%s5563] ss:$8 sm:$0xf]
    %v5565 = vpack.c.bf16 %v5533, %v5533
    %v5566 = vpack.c.bf16 %v5534, %v5534
    %v5567 = vpack.c.bf16 %v5535, %v5535
    %v5568 = vpack.c.bf16 %v5536, %v5536
    %v5569 = vpack.c.bf16 %v5537, %v5537
    %v5570 = vpack.c.bf16 %v5538, %v5538
    %v5571 = vpack.c.bf16 %v5539, %v5539
    %v5572 = vpack.c.bf16 %v5540, %v5540
    %v5581 = vunpack.c.l.b16 %v5565
    %v5582 = vunpack.c.l.b16 %v5566
    %v5583 = vunpack.c.l.b16 %v5567
    %v5584 = vunpack.c.l.b16 %v5568
    %v5585 = vunpack.c.l.b16 %v5569
    %v5586 = vunpack.c.l.b16 %v5570
    %v5587 = vunpack.c.l.b16 %v5571
    %v5588 = vunpack.c.l.b16 %v5572
    %v5589 = vrot.slane %v5582, 7
    %v5590 = vsel %vm528, %v5589, %v5581
    %v5591 = vrot.slane %v5583, 6
    %v5592 = vsel %vm524, %v5591, %v5590
    %v5593 = vrot.slane %v5584, 5
    %v5594 = vsel %vm530, %v5593, %v5592
    %v5595 = vrot.slane %v5585, 4
    %v5596 = vsel %vm536, %v5595, %v5594
    %v5597 = vrot.slane %v5586, 3
    %v5598 = vsel %vm542, %v5597, %v5596
    %v5599 = vrot.slane %v5587, 2
    %v5600 = vsel %vm548, %v5599, %v5598
    %v5601 = vrot.slane %v5588, 1
    %v5602 = vsel %vm1221, %v5601, %v5600
    %v5603 = vpack.c.b16 %v5602, %v5602
    %5605 = vmatpush.bf16.msra.mxu0 %v427
    %5606 = vmatpush.bf16.msra.mxu0 %v423
    %5607 = vmatpush.bf16.msra.mxu0 %v419
    %5608 = vmatpush.bf16.msra.mxu0 %v415
    %5609 = vmatpush.bf16.msra.mxu0 %v411
    %5610 = vmatpush.bf16.msra.mxu0 %v407
    %5611 = vmatpush.bf16.msra.mxu0 %v403
    %5612 = vmatpush.bf16.msra.mxu0 %v399
    %5613 = vmatmul.bf16.gmra.mxu0 %v5603
    %v5614 = vpop.f32.mrf.mxu0
    %v5615 = vadd.f32 0.0, %v5614
    %v5616 = vpop.f32.mrf.mxu0
    %5617 = vdwg.mxu0
    %5618 = vmatpush.bf16.msra.mxu0 %v428
    %5619 = vmatpush.bf16.msra.mxu0 %v424
    %5620 = vmatpush.bf16.msra.mxu0 %v420
    %5621 = vmatpush.bf16.msra.mxu0 %v416
    %5622 = vmatpush.bf16.msra.mxu0 %v412
    %5623 = vmatpush.bf16.msra.mxu0 %v408
    %5624 = vmatpush.bf16.msra.mxu0 %v404
    %5625 = vmatpush.bf16.msra.mxu0 %v400
    %5626 = vmatmul.bf16.gmra.mxu0 %v5603
    %v5627 = vpop.f32.mrf.mxu0
    %v5628 = vadd.f32 0.0, %v5627
    %v5629 = vpop.f32.mrf.mxu0
    %5630 = vdwg.mxu0
    %5631 = vmatpush.bf16.msra.mxu0 %v429
    %5632 = vmatpush.bf16.msra.mxu0 %v425
    %5633 = vmatpush.bf16.msra.mxu0 %v421
    %5634 = vmatpush.bf16.msra.mxu0 %v417
    %5635 = vmatpush.bf16.msra.mxu0 %v413
    %5636 = vmatpush.bf16.msra.mxu0 %v409
    %5637 = vmatpush.bf16.msra.mxu0 %v405
    %5638 = vmatpush.bf16.msra.mxu0 %v401
    %5639 = vmatmul.bf16.gmra.mxu0 %v5603
    %v5640 = vpop.f32.mrf.mxu0
    %v5641 = vadd.f32 0.0, %v5640
    %v5642 = vpop.f32.mrf.mxu0
    %5643 = vdwg.mxu0
    %5644 = vmatpush.bf16.msra.mxu0 %v430
    %5645 = vmatpush.bf16.msra.mxu0 %v426
    %5646 = vmatpush.bf16.msra.mxu0 %v422
    %5647 = vmatpush.bf16.msra.mxu0 %v418
    %5648 = vmatpush.bf16.msra.mxu0 %v414
    %5649 = vmatpush.bf16.msra.mxu0 %v410
    %5650 = vmatpush.bf16.msra.mxu0 %v406
    %5651 = vmatpush.bf16.msra.mxu0 %v402
    %5652 = vmatmul.bf16.gmra.mxu0 %v5603
    %v5653 = vpop.f32.mrf.mxu0
    %v5654 = vadd.f32 0.0, %v5653
    %v5655 = vpop.f32.mrf.mxu0
    %5656 = vdwg.mxu0
    %v5661 = vrot.slane %v5628, 7
    %v5662 = vrot.slane %v5641, 6
    %v5663 = vrot.slane %v5654, 5
    %v5664 = vsel %vm522, %v5615, %v5661
    %v5665 = vsel %vm524, %v5662, %v5663
    %v5666 = vsel %vm526, %v5664, %v5665
    %v5667 = vsel %vm528, %v5615, %v5661
    %v5668 = vsel %vm530, %v5662, %v5663
    %v5669 = vsel %vm532, %v5667, %v5668
    %v5670 = vrot.slane %v5669, 1
    %v5671 = vsel %vm524, %v5615, %v5661
    %v5672 = vsel %vm536, %v5662, %v5663
    %v5673 = vsel %vm538, %v5671, %v5672
    %v5674 = vrot.slane %v5673, 2
    %v5675 = vsel %vm530, %v5615, %v5661
    %v5676 = vsel %vm542, %v5662, %v5663
    %v5677 = vsel %vm544, %v5675, %v5676
    %v5678 = vrot.slane %v5677, 3
    %v5679 = vsel %vm536, %v5615, %v5661
    %v5680 = vsel %vm548, %v5662, %v5663
    %v5681 = vsel %vm550, %v5679, %v5680
    %v5682 = vrot.slane %v5681, 4
    %v5683 = vsel %vm542, %v5615, %v5661
    %v5684 = vsel %vm554, %v5663, %v5662
    %v5685 = vsel %vm556, %v5683, %v5684
    %v5686 = vrot.slane %v5685, 5
    %v5687 = vsel %vm548, %v5615, %v5661
    %v5688 = vsel %vm522, %v5662, %v5663
    %v5689 = vsel %vm561, %v5688, %v5687
    %v5690 = vrot.slane %v5689, 6
    %v5691 = vsel %vm554, %v5661, %v5615
    %v5692 = vsel %vm528, %v5662, %v5663
    %v5693 = vsel %vm566, %v5692, %v5691
    %v5694 = vrot.slane %v5693, 7
    %v5703 = vadd.f32 %v5550, %v5666
    %v5704 = vadd.f32 %v5552, %v5670
    %v5705 = vadd.f32 %v5554, %v5674
    %v5706 = vadd.f32 %v5556, %v5678
    %v5707 = vadd.f32 %v5558, %v5682
    %v5708 = vadd.f32 %v5560, %v5686
    %v5709 = vadd.f32 %v5562, %v5690
    %v5710 = vadd.f32 %v5564, %v5694
    %v5711 = vxor.u32 %v5703, 2147483648
    %v5712 = vxor.u32 %v5704, 2147483648
    %v5713 = vxor.u32 %v5705, 2147483648
    %v5714 = vxor.u32 %v5706, 2147483648
    %v5715 = vxor.u32 %v5707, 2147483648
    %v5716 = vxor.u32 %v5708, 2147483648
    %v5717 = vxor.u32 %v5709, 2147483648
    %v5718 = vxor.u32 %v5710, 2147483648
    %v5719 = vmul.f32 %v5711, 1.442695
    %v5720 = vpow.pop %v5719
    %v5721 = vmul.f32 %v5712, 1.442695
    %v5722 = vpow.pop %v5721
    %v5723 = vmul.f32 %v5713, 1.442695
    %v5724 = vpow.pop %v5723
    %v5725 = vmul.f32 %v5714, 1.442695
    %v5726 = vpow.pop %v5725
    %v5727 = vmul.f32 %v5715, 1.442695
    %v5728 = vpow.pop %v5727
    %v5729 = vmul.f32 %v5716, 1.442695
    %v5730 = vpow.pop %v5729
    %v5731 = vmul.f32 %v5717, 1.442695
    %v5732 = vpow.pop %v5731
    %v5733 = vmul.f32 %v5718, 1.442695
    %v5734 = vpow.pop %v5733
    %v5735 = vadd.f32 %v5720, 1.0
    %v5736 = vadd.f32 %v5722, 1.0
    %v5737 = vadd.f32 %v5724, 1.0
    %v5738 = vadd.f32 %v5726, 1.0
    %v5739 = vadd.f32 %v5728, 1.0
    %v5740 = vadd.f32 %v5730, 1.0
    %v5741 = vadd.f32 %v5732, 1.0
    %v5742 = vadd.f32 %v5734, 1.0
    %v5743 = vrcp.pop %v5735
    %v5744 = vmul.f32 %v5735, %v5743
    %v5745 = vsub.f32 1.0, %v5744
    %v5746 = vmul.f32 %v5743, %v5745
    %v5747 = vadd.f32 %v5743, %v5746
    %vm5748 = vweird.f32 %v5735
    %vm5749 = vweird.f32 %v5743
    %vm5750 = vmor %vm5748, %vm5749
    %v5751 = vsel %vm5750, %v5743, %v5747
    %v5752 = vand.u32 2147483647, %v5735
    %vm5753 = vcmp.eq.f32.partialorder %v5752, 8.507059e+37
    %v5754 = vand.u32 %v5735, 2147483648
    %v5755 = vor.u32 1.1754944e-38, %v5754
    %v5756 = vsel %vm5753, %v5755, %v5751
    %v5757 = vmul.f32 1.0, %v5756
    %v5758 = vrcp.pop %v5736
    %v5759 = vmul.f32 %v5736, %v5758
    %v5760 = vsub.f32 1.0, %v5759
    %v5761 = vmul.f32 %v5758, %v5760
    %v5762 = vadd.f32 %v5758, %v5761
    %vm5763 = vweird.f32 %v5736
    %vm5764 = vweird.f32 %v5758
    %vm5765 = vmor %vm5763, %vm5764
    %v5766 = vsel %vm5765, %v5758, %v5762
    %v5767 = vand.u32 2147483647, %v5736
    %vm5768 = vcmp.eq.f32.partialorder %v5767, 8.507059e+37
    %v5769 = vand.u32 %v5736, 2147483648
    %v5770 = vor.u32 1.1754944e-38, %v5769
    %v5771 = vsel %vm5768, %v5770, %v5766
    %v5772 = vmul.f32 1.0, %v5771
    %v5773 = vrcp.pop %v5737
    %v5774 = vmul.f32 %v5737, %v5773
    %v5775 = vsub.f32 1.0, %v5774
    %v5776 = vmul.f32 %v5773, %v5775
    %v5777 = vadd.f32 %v5773, %v5776
    %vm5778 = vweird.f32 %v5737
    %vm5779 = vweird.f32 %v5773
    %vm5780 = vmor %vm5778, %vm5779
    %v5781 = vsel %vm5780, %v5773, %v5777
    %v5782 = vand.u32 2147483647, %v5737
    %vm5783 = vcmp.eq.f32.partialorder %v5782, 8.507059e+37
    %v5784 = vand.u32 %v5737, 2147483648
    %v5785 = vor.u32 1.1754944e-38, %v5784
    %v5786 = vsel %vm5783, %v5785, %v5781
    %v5787 = vmul.f32 1.0, %v5786
    %v5788 = vrcp.pop %v5738
    %v5789 = vmul.f32 %v5738, %v5788
    %v5790 = vsub.f32 1.0, %v5789
    %v5791 = vmul.f32 %v5788, %v5790
    %v5792 = vadd.f32 %v5788, %v5791
    %vm5793 = vweird.f32 %v5738
    %vm5794 = vweird.f32 %v5788
    %vm5795 = vmor %vm5793, %vm5794
    %v5796 = vsel %vm5795, %v5788, %v5792
    %v5797 = vand.u32 2147483647, %v5738
    %vm5798 = vcmp.eq.f32.partialorder %v5797, 8.507059e+37
    %v5799 = vand.u32 %v5738, 2147483648
    %v5800 = vor.u32 1.1754944e-38, %v5799
    %v5801 = vsel %vm5798, %v5800, %v5796
    %v5802 = vmul.f32 1.0, %v5801
    %v5803 = vrcp.pop %v5739
    %v5804 = vmul.f32 %v5739, %v5803
    %v5805 = vsub.f32 1.0, %v5804
    %v5806 = vmul.f32 %v5803, %v5805
    %v5807 = vadd.f32 %v5803, %v5806
    %vm5808 = vweird.f32 %v5739
    %vm5809 = vweird.f32 %v5803
    %vm5810 = vmor %vm5808, %vm5809
    %v5811 = vsel %vm5810, %v5803, %v5807
    %v5812 = vand.u32 2147483647, %v5739
    %vm5813 = vcmp.eq.f32.partialorder %v5812, 8.507059e+37
    %v5814 = vand.u32 %v5739, 2147483648
    %v5815 = vor.u32 1.1754944e-38, %v5814
    %v5816 = vsel %vm5813, %v5815, %v5811
    %v5817 = vmul.f32 1.0, %v5816
    %v5818 = vrcp.pop %v5740
    %v5819 = vmul.f32 %v5740, %v5818
    %v5820 = vsub.f32 1.0, %v5819
    %v5821 = vmul.f32 %v5818, %v5820
    %v5822 = vadd.f32 %v5818, %v5821
    %vm5823 = vweird.f32 %v5740
    %vm5824 = vweird.f32 %v5818
    %vm5825 = vmor %vm5823, %vm5824
    %v5826 = vsel %vm5825, %v5818, %v5822
    %v5827 = vand.u32 2147483647, %v5740
    %vm5828 = vcmp.eq.f32.partialorder %v5827, 8.507059e+37
    %v5829 = vand.u32 %v5740, 2147483648
    %v5830 = vor.u32 1.1754944e-38, %v5829
    %v5831 = vsel %vm5828, %v5830, %v5826
    %v5832 = vmul.f32 1.0, %v5831
    %v5833 = vrcp.pop %v5741
    %v5834 = vmul.f32 %v5741, %v5833
    %v5835 = vsub.f32 1.0, %v5834
    %v5836 = vmul.f32 %v5833, %v5835
    %v5837 = vadd.f32 %v5833, %v5836
    %vm5838 = vweird.f32 %v5741
    %vm5839 = vweird.f32 %v5833
    %vm5840 = vmor %vm5838, %vm5839
    %v5841 = vsel %vm5840, %v5833, %v5837
    %v5842 = vand.u32 2147483647, %v5741
    %vm5843 = vcmp.eq.f32.partialorder %v5842, 8.507059e+37
    %v5844 = vand.u32 %v5741, 2147483648
    %v5845 = vor.u32 1.1754944e-38, %v5844
    %v5846 = vsel %vm5843, %v5845, %v5841
    %v5847 = vmul.f32 1.0, %v5846
    %v5848 = vrcp.pop %v5742
    %v5849 = vmul.f32 %v5742, %v5848
    %v5850 = vsub.f32 1.0, %v5849
    %v5851 = vmul.f32 %v5848, %v5850
    %v5852 = vadd.f32 %v5848, %v5851
    %vm5853 = vweird.f32 %v5742
    %vm5854 = vweird.f32 %v5848
    %vm5855 = vmor %vm5853, %vm5854
    %v5856 = vsel %vm5855, %v5848, %v5852
    %v5857 = vand.u32 2147483647, %v5742
    %vm5858 = vcmp.eq.f32.partialorder %v5857, 8.507059e+37
    %v5859 = vand.u32 %v5742, 2147483648
    %v5860 = vor.u32 1.1754944e-38, %v5859
    %v5861 = vsel %vm5858, %v5860, %v5856
    %v5862 = vmul.f32 1.0, %v5861
    %v5871 = vrot.slane %v5703, 1
    %v5872 = vrot.slane %v5704, 1
    %v5873 = vrot.slane %v5705, 1
    %v5874 = vrot.slane %v5706, 1
    %v5875 = vrot.slane %v5707, 1
    %v5876 = vrot.slane %v5708, 1
    %v5877 = vrot.slane %v5709, 1
    %v5878 = vrot.slane %v5710, 1
    %v5887 = vxor.u32 %v5871, 2147483648
    %v5888 = vxor.u32 %v5872, 2147483648
    %v5889 = vxor.u32 %v5873, 2147483648
    %v5890 = vxor.u32 %v5874, 2147483648
    %v5891 = vxor.u32 %v5875, 2147483648
    %v5892 = vxor.u32 %v5876, 2147483648
    %v5893 = vxor.u32 %v5877, 2147483648
    %v5894 = vxor.u32 %v5878, 2147483648
    %v5895 = vmul.f32 %v5887, 1.442695
    %v5896 = vpow.pop %v5895
    %v5897 = vmul.f32 %v5888, 1.442695
    %v5898 = vpow.pop %v5897
    %v5899 = vmul.f32 %v5889, 1.442695
    %v5900 = vpow.pop %v5899
    %v5901 = vmul.f32 %v5890, 1.442695
    %v5902 = vpow.pop %v5901
    %v5903 = vmul.f32 %v5891, 1.442695
    %v5904 = vpow.pop %v5903
    %v5905 = vmul.f32 %v5892, 1.442695
    %v5906 = vpow.pop %v5905
    %v5907 = vmul.f32 %v5893, 1.442695
    %v5908 = vpow.pop %v5907
    %v5909 = vmul.f32 %v5894, 1.442695
    %v5910 = vpow.pop %v5909
    %v5911 = vadd.f32 %v5896, 1.0
    %v5912 = vadd.f32 %v5898, 1.0
    %v5913 = vadd.f32 %v5900, 1.0
    %v5914 = vadd.f32 %v5902, 1.0
    %v5915 = vadd.f32 %v5904, 1.0
    %v5916 = vadd.f32 %v5906, 1.0
    %v5917 = vadd.f32 %v5908, 1.0
    %v5918 = vadd.f32 %v5910, 1.0
    %v5919 = vrcp.pop %v5911
    %v5920 = vmul.f32 %v5911, %v5919
    %v5921 = vsub.f32 1.0, %v5920
    %v5922 = vmul.f32 %v5919, %v5921
    %v5923 = vadd.f32 %v5919, %v5922
    %vm5924 = vweird.f32 %v5911
    %vm5925 = vweird.f32 %v5919
    %vm5926 = vmor %vm5924, %vm5925
    %v5927 = vsel %vm5926, %v5919, %v5923
    %v5928 = vand.u32 2147483647, %v5911
    %vm5929 = vcmp.eq.f32.partialorder %v5928, 8.507059e+37
    %v5930 = vand.u32 %v5911, 2147483648
    %v5931 = vor.u32 1.1754944e-38, %v5930
    %v5932 = vsel %vm5929, %v5931, %v5927
    %v5933 = vmul.f32 1.0, %v5932
    %v5934 = vrcp.pop %v5912
    %v5935 = vmul.f32 %v5912, %v5934
    %v5936 = vsub.f32 1.0, %v5935
    %v5937 = vmul.f32 %v5934, %v5936
    %v5938 = vadd.f32 %v5934, %v5937
    %vm5939 = vweird.f32 %v5912
    %vm5940 = vweird.f32 %v5934
    %vm5941 = vmor %vm5939, %vm5940
    %v5942 = vsel %vm5941, %v5934, %v5938
    %v5943 = vand.u32 2147483647, %v5912
    %vm5944 = vcmp.eq.f32.partialorder %v5943, 8.507059e+37
    %v5945 = vand.u32 %v5912, 2147483648
    %v5946 = vor.u32 1.1754944e-38, %v5945
    %v5947 = vsel %vm5944, %v5946, %v5942
    %v5948 = vmul.f32 1.0, %v5947
    %v5949 = vrcp.pop %v5913
    %v5950 = vmul.f32 %v5913, %v5949
    %v5951 = vsub.f32 1.0, %v5950
    %v5952 = vmul.f32 %v5949, %v5951
    %v5953 = vadd.f32 %v5949, %v5952
    %vm5954 = vweird.f32 %v5913
    %vm5955 = vweird.f32 %v5949
    %vm5956 = vmor %vm5954, %vm5955
    %v5957 = vsel %vm5956, %v5949, %v5953
    %v5958 = vand.u32 2147483647, %v5913
    %vm5959 = vcmp.eq.f32.partialorder %v5958, 8.507059e+37
    %v5960 = vand.u32 %v5913, 2147483648
    %v5961 = vor.u32 1.1754944e-38, %v5960
    %v5962 = vsel %vm5959, %v5961, %v5957
    %v5963 = vmul.f32 1.0, %v5962
    %v5964 = vrcp.pop %v5914
    %v5965 = vmul.f32 %v5914, %v5964
    %v5966 = vsub.f32 1.0, %v5965
    %v5967 = vmul.f32 %v5964, %v5966
    %v5968 = vadd.f32 %v5964, %v5967
    %vm5969 = vweird.f32 %v5914
    %vm5970 = vweird.f32 %v5964
    %vm5971 = vmor %vm5969, %vm5970
    %v5972 = vsel %vm5971, %v5964, %v5968
    %v5973 = vand.u32 2147483647, %v5914
    %vm5974 = vcmp.eq.f32.partialorder %v5973, 8.507059e+37
    %v5975 = vand.u32 %v5914, 2147483648
    %v5976 = vor.u32 1.1754944e-38, %v5975
    %v5977 = vsel %vm5974, %v5976, %v5972
    %v5978 = vmul.f32 1.0, %v5977
    %v5979 = vrcp.pop %v5915
    %v5980 = vmul.f32 %v5915, %v5979
    %v5981 = vsub.f32 1.0, %v5980
    %v5982 = vmul.f32 %v5979, %v5981
    %v5983 = vadd.f32 %v5979, %v5982
    %vm5984 = vweird.f32 %v5915
    %vm5985 = vweird.f32 %v5979
    %vm5986 = vmor %vm5984, %vm5985
    %v5987 = vsel %vm5986, %v5979, %v5983
    %v5988 = vand.u32 2147483647, %v5915
    %vm5989 = vcmp.eq.f32.partialorder %v5988, 8.507059e+37
    %v5990 = vand.u32 %v5915, 2147483648
    %v5991 = vor.u32 1.1754944e-38, %v5990
    %v5992 = vsel %vm5989, %v5991, %v5987
    %v5993 = vmul.f32 1.0, %v5992
    %v5994 = vrcp.pop %v5916
    %v5995 = vmul.f32 %v5916, %v5994
    %v5996 = vsub.f32 1.0, %v5995
    %v5997 = vmul.f32 %v5994, %v5996
    %v5998 = vadd.f32 %v5994, %v5997
    %vm5999 = vweird.f32 %v5916
    %vm6000 = vweird.f32 %v5994
    %vm6001 = vmor %vm5999, %vm6000
    %v6002 = vsel %vm6001, %v5994, %v5998
    %v6003 = vand.u32 2147483647, %v5916
    %vm6004 = vcmp.eq.f32.partialorder %v6003, 8.507059e+37
    %v6005 = vand.u32 %v5916, 2147483648
    %v6006 = vor.u32 1.1754944e-38, %v6005
    %v6007 = vsel %vm6004, %v6006, %v6002
    %v6008 = vmul.f32 1.0, %v6007
    %v6009 = vrcp.pop %v5917
    %v6010 = vmul.f32 %v5917, %v6009
    %v6011 = vsub.f32 1.0, %v6010
    %v6012 = vmul.f32 %v6009, %v6011
    %v6013 = vadd.f32 %v6009, %v6012
    %vm6014 = vweird.f32 %v5917
    %vm6015 = vweird.f32 %v6009
    %vm6016 = vmor %vm6014, %vm6015
    %v6017 = vsel %vm6016, %v6009, %v6013
    %v6018 = vand.u32 2147483647, %v5917
    %vm6019 = vcmp.eq.f32.partialorder %v6018, 8.507059e+37
    %v6020 = vand.u32 %v5917, 2147483648
    %v6021 = vor.u32 1.1754944e-38, %v6020
    %v6022 = vsel %vm6019, %v6021, %v6017
    %v6023 = vmul.f32 1.0, %v6022
    %v6024 = vrcp.pop %v5918
    %v6025 = vmul.f32 %v5918, %v6024
    %v6026 = vsub.f32 1.0, %v6025
    %v6027 = vmul.f32 %v6024, %v6026
    %v6028 = vadd.f32 %v6024, %v6027
    %vm6029 = vweird.f32 %v5918
    %vm6030 = vweird.f32 %v6024
    %vm6031 = vmor %vm6029, %vm6030
    %v6032 = vsel %vm6031, %v6024, %v6028
    %v6033 = vand.u32 2147483647, %v5918
    %vm6034 = vcmp.eq.f32.partialorder %v6033, 8.507059e+37
    %v6035 = vand.u32 %v5918, 2147483648
    %v6036 = vor.u32 1.1754944e-38, %v6035
    %v6037 = vsel %vm6034, %v6036, %v6032
    %v6038 = vmul.f32 1.0, %v6037
    %v6039 = vrot.slane %v5703, 2
    %v6040 = vrot.slane %v5704, 2
    %v6041 = vrot.slane %v5705, 2
    %v6042 = vrot.slane %v5706, 2
    %v6043 = vrot.slane %v5707, 2
    %v6044 = vrot.slane %v5708, 2
    %v6045 = vrot.slane %v5709, 2
    %v6046 = vrot.slane %v5710, 2
    %v6055 = vtanh.pop %v6039
    %v6056 = vtanh.pop %v6040
    %v6057 = vtanh.pop %v6041
    %v6058 = vtanh.pop %v6042
    %v6059 = vtanh.pop %v6043
    %v6060 = vtanh.pop %v6044
    %v6061 = vtanh.pop %v6045
    %v6062 = vtanh.pop %v6046
    %v6063 = vrot.slane %v5703, 3
    %v6064 = vrot.slane %v5704, 3
    %v6065 = vrot.slane %v5705, 3
    %v6066 = vrot.slane %v5706, 3
    %v6067 = vrot.slane %v5707, 3
    %v6068 = vrot.slane %v5708, 3
    %v6069 = vrot.slane %v5709, 3
    %v6070 = vrot.slane %v5710, 3
    %v6079 = vxor.u32 %v6063, 2147483648
    %v6080 = vxor.u32 %v6064, 2147483648
    %v6081 = vxor.u32 %v6065, 2147483648
    %v6082 = vxor.u32 %v6066, 2147483648
    %v6083 = vxor.u32 %v6067, 2147483648
    %v6084 = vxor.u32 %v6068, 2147483648
    %v6085 = vxor.u32 %v6069, 2147483648
    %v6086 = vxor.u32 %v6070, 2147483648
    %v6087 = vmul.f32 %v6079, 1.442695
    %v6088 = vpow.pop %v6087
    %v6089 = vmul.f32 %v6080, 1.442695
    %v6090 = vpow.pop %v6089
    %v6091 = vmul.f32 %v6081, 1.442695
    %v6092 = vpow.pop %v6091
    %v6093 = vmul.f32 %v6082, 1.442695
    %v6094 = vpow.pop %v6093
    %v6095 = vmul.f32 %v6083, 1.442695
    %v6096 = vpow.pop %v6095
    %v6097 = vmul.f32 %v6084, 1.442695
    %v6098 = vpow.pop %v6097
    %v6099 = vmul.f32 %v6085, 1.442695
    %v6100 = vpow.pop %v6099
    %v6101 = vmul.f32 %v6086, 1.442695
    %v6102 = vpow.pop %v6101
    %v6103 = vadd.f32 %v6088, 1.0
    %v6104 = vadd.f32 %v6090, 1.0
    %v6105 = vadd.f32 %v6092, 1.0
    %v6106 = vadd.f32 %v6094, 1.0
    %v6107 = vadd.f32 %v6096, 1.0
    %v6108 = vadd.f32 %v6098, 1.0
    %v6109 = vadd.f32 %v6100, 1.0
    %v6110 = vadd.f32 %v6102, 1.0
    %v6111 = vrcp.pop %v6103
    %v6112 = vmul.f32 %v6103, %v6111
    %v6113 = vsub.f32 1.0, %v6112
    %v6114 = vmul.f32 %v6111, %v6113
    %v6115 = vadd.f32 %v6111, %v6114
    %vm6116 = vweird.f32 %v6103
    %vm6117 = vweird.f32 %v6111
    %vm6118 = vmor %vm6116, %vm6117
    %v6119 = vsel %vm6118, %v6111, %v6115
    %v6120 = vand.u32 2147483647, %v6103
    %vm6121 = vcmp.eq.f32.partialorder %v6120, 8.507059e+37
    %v6122 = vand.u32 %v6103, 2147483648
    %v6123 = vor.u32 1.1754944e-38, %v6122
    %v6124 = vsel %vm6121, %v6123, %v6119
    %v6125 = vmul.f32 1.0, %v6124
    %v6126 = vrcp.pop %v6104
    %v6127 = vmul.f32 %v6104, %v6126
    %v6128 = vsub.f32 1.0, %v6127
    %v6129 = vmul.f32 %v6126, %v6128
    %v6130 = vadd.f32 %v6126, %v6129
    %vm6131 = vweird.f32 %v6104
    %vm6132 = vweird.f32 %v6126
    %vm6133 = vmor %vm6131, %vm6132
    %v6134 = vsel %vm6133, %v6126, %v6130
    %v6135 = vand.u32 2147483647, %v6104
    %vm6136 = vcmp.eq.f32.partialorder %v6135, 8.507059e+37
    %v6137 = vand.u32 %v6104, 2147483648
    %v6138 = vor.u32 1.1754944e-38, %v6137
    %v6139 = vsel %vm6136, %v6138, %v6134
    %v6140 = vmul.f32 1.0, %v6139
    %v6141 = vrcp.pop %v6105
    %v6142 = vmul.f32 %v6105, %v6141
    %v6143 = vsub.f32 1.0, %v6142
    %v6144 = vmul.f32 %v6141, %v6143
    %v6145 = vadd.f32 %v6141, %v6144
    %vm6146 = vweird.f32 %v6105
    %vm6147 = vweird.f32 %v6141
    %vm6148 = vmor %vm6146, %vm6147
    %v6149 = vsel %vm6148, %v6141, %v6145
    %v6150 = vand.u32 2147483647, %v6105
    %vm6151 = vcmp.eq.f32.partialorder %v6150, 8.507059e+37
    %v6152 = vand.u32 %v6105, 2147483648
    %v6153 = vor.u32 1.1754944e-38, %v6152
    %v6154 = vsel %vm6151, %v6153, %v6149
    %v6155 = vmul.f32 1.0, %v6154
    %v6156 = vrcp.pop %v6106
    %v6157 = vmul.f32 %v6106, %v6156
    %v6158 = vsub.f32 1.0, %v6157
    %v6159 = vmul.f32 %v6156, %v6158
    %v6160 = vadd.f32 %v6156, %v6159
    %vm6161 = vweird.f32 %v6106
    %vm6162 = vweird.f32 %v6156
    %vm6163 = vmor %vm6161, %vm6162
    %v6164 = vsel %vm6163, %v6156, %v6160
    %v6165 = vand.u32 2147483647, %v6106
    %vm6166 = vcmp.eq.f32.partialorder %v6165, 8.507059e+37
    %v6167 = vand.u32 %v6106, 2147483648
    %v6168 = vor.u32 1.1754944e-38, %v6167
    %v6169 = vsel %vm6166, %v6168, %v6164
    %v6170 = vmul.f32 1.0, %v6169
    %v6171 = vrcp.pop %v6107
    %v6172 = vmul.f32 %v6107, %v6171
    %v6173 = vsub.f32 1.0, %v6172
    %v6174 = vmul.f32 %v6171, %v6173
    %v6175 = vadd.f32 %v6171, %v6174
    %vm6176 = vweird.f32 %v6107
    %vm6177 = vweird.f32 %v6171
    %vm6178 = vmor %vm6176, %vm6177
    %v6179 = vsel %vm6178, %v6171, %v6175
    %v6180 = vand.u32 2147483647, %v6107
    %vm6181 = vcmp.eq.f32.partialorder %v6180, 8.507059e+37
    %v6182 = vand.u32 %v6107, 2147483648
    %v6183 = vor.u32 1.1754944e-38, %v6182
    %v6184 = vsel %vm6181, %v6183, %v6179
    %v6185 = vmul.f32 1.0, %v6184
    %v6186 = vrcp.pop %v6108
    %v6187 = vmul.f32 %v6108, %v6186
    %v6188 = vsub.f32 1.0, %v6187
    %v6189 = vmul.f32 %v6186, %v6188
    %v6190 = vadd.f32 %v6186, %v6189
    %vm6191 = vweird.f32 %v6108
    %vm6192 = vweird.f32 %v6186
    %vm6193 = vmor %vm6191, %vm6192
    %v6194 = vsel %vm6193, %v6186, %v6190
    %v6195 = vand.u32 2147483647, %v6108
    %vm6196 = vcmp.eq.f32.partialorder %v6195, 8.507059e+37
    %v6197 = vand.u32 %v6108, 2147483648
    %v6198 = vor.u32 1.1754944e-38, %v6197
    %v6199 = vsel %vm6196, %v6198, %v6194
    %v6200 = vmul.f32 1.0, %v6199
    %v6201 = vrcp.pop %v6109
    %v6202 = vmul.f32 %v6109, %v6201
    %v6203 = vsub.f32 1.0, %v6202
    %v6204 = vmul.f32 %v6201, %v6203
    %v6205 = vadd.f32 %v6201, %v6204
    %vm6206 = vweird.f32 %v6109
    %vm6207 = vweird.f32 %v6201
    %vm6208 = vmor %vm6206, %vm6207
    %v6209 = vsel %vm6208, %v6201, %v6205
    %v6210 = vand.u32 2147483647, %v6109
    %vm6211 = vcmp.eq.f32.partialorder %v6210, 8.507059e+37
    %v6212 = vand.u32 %v6109, 2147483648
    %v6213 = vor.u32 1.1754944e-38, %v6212
    %v6214 = vsel %vm6211, %v6213, %v6209
    %v6215 = vmul.f32 1.0, %v6214
    %v6216 = vrcp.pop %v6110
    %v6217 = vmul.f32 %v6110, %v6216
    %v6218 = vsub.f32 1.0, %v6217
    %v6219 = vmul.f32 %v6216, %v6218
    %v6220 = vadd.f32 %v6216, %v6219
    %vm6221 = vweird.f32 %v6110
    %vm6222 = vweird.f32 %v6216
    %vm6223 = vmor %vm6221, %vm6222
    %v6224 = vsel %vm6223, %v6216, %v6220
    %v6225 = vand.u32 2147483647, %v6110
    %vm6226 = vcmp.eq.f32.partialorder %v6225, 8.507059e+37
    %v6227 = vand.u32 %v6110, 2147483648
    %v6228 = vor.u32 1.1754944e-38, %v6227
    %v6229 = vsel %vm6226, %v6228, %v6224
    %v6230 = vmul.f32 1.0, %v6229
    %v6231 = vmul.f32 %v5933, %v5517
    %v6232 = vmul.f32 %v5948, %v5518
    %v6233 = vmul.f32 %v5963, %v5519
    %v6234 = vmul.f32 %v5978, %v5520
    %v6235 = vmul.f32 %v5993, %v5521
    %v6236 = vmul.f32 %v6008, %v5522
    %v6237 = vmul.f32 %v6023, %v5523
    %v6238 = vmul.f32 %v6038, %v5524
    %v6239 = vmul.f32 %v5757, %v6055
    %v6240 = vmul.f32 %v5772, %v6056
    %v6241 = vmul.f32 %v5787, %v6057
    %v6242 = vmul.f32 %v5802, %v6058
    %v6243 = vmul.f32 %v5817, %v6059
    %v6244 = vmul.f32 %v5832, %v6060
    %v6245 = vmul.f32 %v5847, %v6061
    %v6246 = vmul.f32 %v5862, %v6062
    %v6247 = vadd.f32 %v6231, %v6239
    %v6248 = vadd.f32 %v6232, %v6240
    %v6249 = vadd.f32 %v6233, %v6241
    %v6250 = vadd.f32 %v6234, %v6242
    %v6251 = vadd.f32 %v6235, %v6243
    %v6252 = vadd.f32 %v6236, %v6244
    %v6253 = vadd.f32 %v6237, %v6245
    %v6254 = vadd.f32 %v6238, %v6246
    %v6255 = vtanh.pop %v6247
    %v6256 = vtanh.pop %v6248
    %v6257 = vtanh.pop %v6249
    %v6258 = vtanh.pop %v6250
    %v6259 = vtanh.pop %v6251
    %v6260 = vtanh.pop %v6252
    %v6261 = vtanh.pop %v6253
    %v6262 = vtanh.pop %v6254
    %v6263 = vmul.f32 %v6125, %v6255
    %v6264 = vmul.f32 %v6140, %v6256
    %v6265 = vmul.f32 %v6155, %v6257
    %v6266 = vmul.f32 %v6170, %v6258
    %v6267 = vmul.f32 %v6185, %v6259
    %v6268 = vmul.f32 %v6200, %v6260
    %v6269 = vmul.f32 %v6215, %v6261
    %v6270 = vmul.f32 %v6230, %v6262
    %6271 = vst [vmem:[#allocation5 + $0x7] sm:$0x1] %v6263
    %6272 = vst [vmem:[#allocation5 + $0xf] sm:$0x1] %v6264
    %6273 = vst [vmem:[#allocation5 + $0x17] sm:$0x1] %v6265
    %6274 = vst [vmem:[#allocation5 + $0x1f] sm:$0x1] %v6266
    %6275 = vst [vmem:[#allocation5 + $0x27] sm:$0x1] %v6267
    %6276 = vst [vmem:[#allocation5 + $0x2f] sm:$0x1] %v6268
    %6277 = vst [vmem:[#allocation5 + $0x37] sm:$0x1] %v6269
    %6278 = vst [vmem:[#allocation5 + $0x3f] sm:$0x1] %v6270
    %6287 = vst [vmem:[#allocation1] ss:$9 sm:$0xff] %v6263
    %s6288 = scalar_lea.vmem [#allocation1], 1
    %6289 = vst [vmem:[%s6288] ss:$9 sm:$0xff] %v6264
    %s6290 = scalar_lea.vmem [#allocation1], 2
    %6291 = vst [vmem:[%s6290] ss:$9 sm:$0xff] %v6265
    %s6292 = scalar_lea.vmem [#allocation1], 3
    %6293 = vst [vmem:[%s6292] ss:$9 sm:$0xff] %v6266
    %s6294 = scalar_lea.vmem [#allocation1], 4
    %6295 = vst [vmem:[%s6294] ss:$9 sm:$0xff] %v6267
    %s6296 = scalar_lea.vmem [#allocation1], 5
    %6297 = vst [vmem:[%s6296] ss:$9 sm:$0xff] %v6268
    %s6298 = scalar_lea.vmem [#allocation1], 6
    %6299 = vst [vmem:[%s6298] ss:$9 sm:$0xff] %v6269
    %s6300 = scalar_lea.vmem [#allocation1], 7
    %6301 = vst [vmem:[%s6300] ss:$9 sm:$0xff] %v6270
    %v6302 = vld [vmem:[#allocation1] sm:$0xff]
    %6304 = vst [vmem:[#allocation2] sm:$0xff] %v6302
    %6313 = vst [vmem:[#allocation1] ss:$9 sm:$0xff] %v6247
    %s6314 = scalar_lea.vmem [#allocation1], 1
    %6315 = vst [vmem:[%s6314] ss:$9 sm:$0xff] %v6248
    %s6316 = scalar_lea.vmem [#allocation1], 2
    %6317 = vst [vmem:[%s6316] ss:$9 sm:$0xff] %v6249
    %s6318 = scalar_lea.vmem [#allocation1], 3
    %6319 = vst [vmem:[%s6318] ss:$9 sm:$0xff] %v6250
    %s6320 = scalar_lea.vmem [#allocation1], 4
    %6321 = vst [vmem:[%s6320] ss:$9 sm:$0xff] %v6251
    %s6322 = scalar_lea.vmem [#allocation1], 5
    %6323 = vst [vmem:[%s6322] ss:$9 sm:$0xff] %v6252
    %s6324 = scalar_lea.vmem [#allocation1], 6
    %6325 = vst [vmem:[%s6324] ss:$9 sm:$0xff] %v6253
    %s6326 = scalar_lea.vmem [#allocation1], 7
    %6327 = vst [vmem:[%s6326] ss:$9 sm:$0xff] %v6254
    %v6328 = vld [vmem:[#allocation1] sm:$0xff]
    %6330 = vst [vmem:[#allocation3] sm:$0xff] %v6328
    %v6331 = vld [vmem:[#allocation5] sm:$0xff]
    %v6332 = vld [vmem:[#allocation5 + $0x8] sm:$0xff]
    %v6333 = vld [vmem:[#allocation5 + $0x10] sm:$0xff]
    %v6334 = vld [vmem:[#allocation5 + $0x18] sm:$0xff]
    %v6335 = vld [vmem:[#allocation5 + $0x20] sm:$0xff]
    %v6336 = vld [vmem:[#allocation5 + $0x28] sm:$0xff]
    %v6337 = vld [vmem:[#allocation5 + $0x30] sm:$0xff]
    %v6338 = vld [vmem:[#allocation5 + $0x38] sm:$0xff]
    %v6339 = vpack.c.bf16 %v6332, %v6331
    %v6340 = vpack.c.bf16 %v6334, %v6333
    %v6341 = vpack.c.bf16 %v6336, %v6335
    %v6342 = vpack.c.bf16 %v6338, %v6337
    %v6343 = vld [vmem:[%s4] sm:$0xf]
    %v6344 = vld [vmem:[%s4 + $0x4] sm:$0xf]
    %v6345 = vld [vmem:[%s4 + $0x8] sm:$0xf]
    %v6346 = vld [vmem:[%s4 + $0xc] sm:$0xf]
    %v6347 = vld [vmem:[%s4 + $0x10] sm:$0xf]
    %v6348 = vld [vmem:[%s4 + $0x14] sm:$0xf]
    %v6349 = vld [vmem:[%s4 + $0x18] sm:$0xf]
    %v6350 = vld [vmem:[%s4 + $0x1c] sm:$0xf]
    %v6351 = vld [vmem:[%s4 + $0x20] sm:$0xf]
    %v6352 = vld [vmem:[%s4 + $0x24] sm:$0xf]
    %v6353 = vld [vmem:[%s4 + $0x28] sm:$0xf]
    %v6354 = vld [vmem:[%s4 + $0x2c] sm:$0xf]
    %v6355 = vld [vmem:[%s4 + $0x30] sm:$0xf]
    %v6356 = vld [vmem:[%s4 + $0x34] sm:$0xf]
    %v6357 = vld [vmem:[%s4 + $0x38] sm:$0xf]
    %v6358 = vld [vmem:[%s4 + $0x3c] sm:$0xf]
    %v6359 = vld [vmem:[%s5] sm:$0x1]
    %v6361 = vperm.slane %v6359, 0
    %v6379 = vunpack.c.l.b16 %v6343
    %v6380 = vunpack.c.l.b16 %v6344
    %v6381 = vunpack.c.l.b16 %v6345
    %v6382 = vunpack.c.l.b16 %v6346
    %v6383 = vunpack.c.l.b16 %v6347
    %v6384 = vunpack.c.l.b16 %v6348
    %v6385 = vunpack.c.l.b16 %v6349
    %v6386 = vunpack.c.l.b16 %v6350
    %v6387 = vunpack.c.l.b16 %v6351
    %v6388 = vunpack.c.l.b16 %v6352
    %v6389 = vunpack.c.l.b16 %v6353
    %v6390 = vunpack.c.l.b16 %v6354
    %v6391 = vunpack.c.l.b16 %v6355
    %v6392 = vunpack.c.l.b16 %v6356
    %v6393 = vunpack.c.l.b16 %v6357
    %v6394 = vunpack.c.l.b16 %v6358
    %v6395 = vpack.c.b16 %v6380, %v6379
    %v6396 = vpack.c.b16 %v6382, %v6381
    %v6397 = vpack.c.b16 %v6384, %v6383
    %v6398 = vpack.c.b16 %v6386, %v6385
    %v6399 = vpack.c.b16 %v6388, %v6387
    %v6400 = vpack.c.b16 %v6390, %v6389
    %v6401 = vpack.c.b16 %v6392, %v6391
    %v6402 = vpack.c.b16 %v6394, %v6393
    %6411 = vmatpush.bf16.msra.mxu0 %v6402
    %6412 = vmatpush.bf16.msra.mxu0 %v6401
    %6413 = vmatpush.bf16.msra.mxu0 %v6400
    %6414 = vmatpush.bf16.msra.mxu0 %v6399
    %6415 = vmatpush.bf16.msra.mxu0 %v6398
    %6416 = vmatpush.bf16.msra.mxu0 %v6397
    %6417 = vmatpush.bf16.msra.mxu0 %v6396
    %6418 = vmatpush.bf16.msra.mxu0 %v6395
    %6419 = vmatmul.bf16.gmra.mxu0 %v6339
    %v6420 = vpop.f32.mrf.mxu0
    %v6421 = vadd.f32 %v6361, %v6420
    %v6422 = vpop.f32.mrf.mxu0
    %v6423 = vadd.f32 %v6361, %v6422
    %6424 = vmatmul.bf16.gmra.mxu0 %v6340
    %v6425 = vpop.f32.mrf.mxu0
    %v6426 = vadd.f32 %v6361, %v6425
    %v6427 = vpop.f32.mrf.mxu0
    %v6428 = vadd.f32 %v6361, %v6427
    %6429 = vmatmul.bf16.gmra.mxu0 %v6341
    %v6430 = vpop.f32.mrf.mxu0
    %v6431 = vadd.f32 %v6361, %v6430
    %v6432 = vpop.f32.mrf.mxu0
    %v6433 = vadd.f32 %v6361, %v6432
    %6434 = vmatmul.bf16.gmra.mxu0 %v6342
    %v6435 = vpop.f32.mrf.mxu0
    %v6436 = vadd.f32 %v6361, %v6435
    %v6437 = vpop.f32.mrf.mxu0
    %v6438 = vadd.f32 %v6361, %v6437
    %6439 = vdwg.mxu0
    %6440 = vst [vmem:[%s6] sm:$0xff] %v6421
    %6441 = vst [vmem:[%s6 + $0x8] sm:$0xff] %v6423
    %6442 = vst [vmem:[%s6 + $0x10] sm:$0xff] %v6426
    %6443 = vst [vmem:[%s6 + $0x18] sm:$0xff] %v6428
    %6444 = vst [vmem:[%s6 + $0x20] sm:$0xff] %v6431
    %6445 = vst [vmem:[%s6 + $0x28] sm:$0xff] %v6433
    %6446 = vst [vmem:[%s6 + $0x30] sm:$0xff] %v6436
    %6447 = vst [vmem:[%s6 + $0x38] sm:$0xff] %v6438
    // Predicated region
    $region34: #{_lambda_.1} parent=1 // pred_check
      _
    $region35: #{_lambda_.1} parent=1 // pred_check_branch
      %6449 = sbr.rel (0) target = $region37
    $region36: #{_lambda_.1} parent=1 // pred_region
      _
    $region37: #{_lambda_.1} parent=1 // pred_fallthru
      _
    // Predicated region
    $region38: #{_lambda_.1} parent=1 // pred_check
      _
    $region39: #{_lambda_.1} parent=1 // pred_check_branch
      %6451 = sbr.rel (0) target = $region41
    $region40: #{_lambda_.1} parent=1 // pred_region
      _
    $region41: #{_lambda_.1} parent=1 // pred_fallthru
      _
    %6452 = vsyncpa [#allocation7], 1

</llo_original>
